<compile_context>
chip_gen: v7x
topology: tpu7x:2x2x1
jax: 0.10.0
libtpu: 0.0.40
codegen_flags: <defaults>
</compile_context>

<pallas_src>
import jax
import jax.numpy as jnp
from jax.experimental import pallas as pl
from jax.experimental.pallas import tpu as pltpu

HIDDEN_SIZE = 128
INPUT_SIZE = 6
LINEAR1_OUT = 32
NUM_LAYERS = 2
OUTPUT_SIZE = 3


def _classify_kernel(x_ref, h0_ref, c0_ref,
                     w1_ref, b1_ref,
                     wih0_ref, b_l0_ref,
                     wh0c_hbm, whh1_hbm,
                     b_l1_ref,
                     wout_ref, bout_ref,
                     out_ref, hn_ref, cn_ref,
                     wh0c_vmem, whh1_vmem, sem):
    H = HIDDEN_SIZE
    TB = x_ref.shape[0]
    B = h0_ref.shape[1]
    T = TB // B
    H4 = 4 * H

    # ---- Kick off the recurrent-weight DMA (overlaps with hoisted matmuls). ----
    cp0 = pltpu.make_async_copy(wh0c_hbm, wh0c_vmem, sem.at[0])
    cp1 = pltpu.make_async_copy(whh1_hbm, whh1_vmem, sem.at[1])
    cp0.start()
    cp1.start()

    # ---- Hoisted non-recurrent work: input Linear + ReLU + layer-0 input
    # projection (+ layer-0 bias) for the WHOLE sequence, time-major (T*B, 4H),
    # kept in registers (no scratch / reshape round-trip). ----
    x_bf = x_ref[...].astype(jnp.bfloat16)                          # (T*B, I)
    mid = jnp.maximum(
        jnp.dot(x_bf, w1_ref[...], preferred_element_type=jnp.float32)
        + b1_ref[...], 0.0)                                         # (T*B, L1) f32
    zx0 = (jnp.dot(mid.astype(jnp.bfloat16), wih0_ref[...],
                   preferred_element_type=jnp.float32)
           + b_l0_ref[...])                                         # (T*B, 4H) f32

    # Layer-1 bias broadcast hoisted out of the unrolled loop.
    b_l1 = jnp.broadcast_to(b_l1_ref[...], (B, H4))                 # (B, 4H) f32

    cp0.wait()
    cp1.wait()

    def gates(z, c):
        i = jax.nn.sigmoid(z[:, 0 * H:1 * H])
        f = jax.nn.sigmoid(z[:, 1 * H:2 * H])
        g = jnp.tanh(z[:, 2 * H:3 * H])
        o = jax.nn.sigmoid(z[:, 3 * H:4 * H])
        c_new = f * c + i * g
        h_new = o * jnp.tanh(c_new)
        return h_new, c_new

    h0 = h0_ref[0]
    c0 = c0_ref[0]
    h1 = h0_ref[1]
    c1 = c0_ref[1]

    # Prime layer-0 recurrent term for step 0: h0_init @ Whh0 (first 4H columns).
    rec0 = jnp.dot(h0.astype(jnp.bfloat16), wh0c_vmem[:, 0:H4],
                   preferred_element_type=jnp.float32)              # (B, 4H)

    # Unrolled time loop (static t -> static zx0 row slices). Do NOT convert to a
    # grid axis: per-step grid overhead would dwarf the per-step compute.
    for t in range(T):
        # Layer-1 recurrent term: depends only on h1_{t-1} -> off the h0 chain.
        rec1 = jnp.dot(h1.astype(jnp.bfloat16), whh1_vmem[...],
                       preferred_element_type=jnp.float32)          # (B, 4H)

        # Layer 0: precomputed input projection + carried recurrent term.
        z0 = zx0[t * B:(t + 1) * B, :] + rec0                       # (B, 4H)
        h0, c0 = gates(z0, c0)

        # Single matmul on the h0 chain: [h0 @ Whh0 | h0 @ Wih1].
        if t + 1 < T:
            comb = jnp.dot(h0.astype(jnp.bfloat16), wh0c_vmem[...],
                           preferred_element_type=jnp.float32)      # (B, 8H)
            rec0 = comb[:, 0:H4]                                    # next step's z0
            z1 = comb[:, H4:2 * H4] + rec1 + b_l1
        else:
            # Last step: only the Wih1 half is needed.
            z1 = (jnp.dot(h0.astype(jnp.bfloat16), wh0c_vmem[:, H4:2 * H4],
                          preferred_element_type=jnp.float32)
                  + rec1 + b_l1)
        h1, c1 = gates(z1, c1)

    # ---- ReLU(r_out[:, -1, :]) -> out_layer (lane-padded to 128 cols). ----
    mid2 = jnp.maximum(h1, 0.0).astype(jnp.bfloat16)
    out_ref[...] = (jnp.dot(mid2, wout_ref[...],
                            preferred_element_type=jnp.float32)
                    + bout_ref[...])
    hn_ref[0] = h0
    hn_ref[1] = h1
    cn_ref[0] = c0
    cn_ref[1] = c1


def prepare_params(params):
    """One-time prep: [Whh0 | Wih1] concat along N (single h0-driven matmul per
    step), bf16 MXU weights, lane-padded output head. Biases stay f32."""
    (w1, b1, wih0, whh0, b_l0, wih1, whh1, b_l1, wout, bout) = params
    bf = jnp.bfloat16
    wh0c = jnp.concatenate([whh0, wih1], axis=1).astype(bf)         # (H, 8H)
    wout_p = jnp.pad(wout, ((0, 0), (0, 128 - OUTPUT_SIZE))).astype(bf)  # (H, 128)
    bout_p = jnp.pad(bout, ((0, 0), (0, 128 - OUTPUT_SIZE)))             # (1, 128)
    return (w1.astype(bf), b1, wih0.astype(bf), b_l0,
            wh0c, whh1.astype(bf), b_l1, wout_p, bout_p)


def classify_forward(x, h_n, c_n, prepared):
    B, T, _ = x.shape
    (w1, b1, wih0, b_l0, wh0c, whh1, b_l1, wout_p, bout_p) = prepared
    # Glue: time-major + flatten in the wrapper (free XLA metadata/copy).
    x2d = jnp.transpose(x, (1, 0, 2)).reshape(T * B, INPUT_SIZE)
    vmem = pl.BlockSpec(memory_space=pltpu.MemorySpace.VMEM)
    anym = pl.BlockSpec(memory_space=pl.ANY)
    out_pad, hn, cn = pl.pallas_call(
        _classify_kernel,
        out_shape=(
            jax.ShapeDtypeStruct((B, 128), jnp.float32),
            jax.ShapeDtypeStruct((NUM_LAYERS, B, HIDDEN_SIZE), jnp.float32),
            jax.ShapeDtypeStruct((NUM_LAYERS, B, HIDDEN_SIZE), jnp.float32),
        ),
        in_specs=[vmem, vmem, vmem,    # x2d, h_n, c_n
                  vmem, vmem,          # w1, b1
                  vmem, vmem,          # wih0, b_l0
                  anym, anym,          # wh0c, whh1 (manual, overlapped DMA)
                  vmem,                # b_l1
                  vmem, vmem],         # wout_p, bout_p
        out_specs=(vmem, vmem, vmem),
        scratch_shapes=[
            pltpu.VMEM((HIDDEN_SIZE, 8 * HIDDEN_SIZE), jnp.bfloat16),
            pltpu.VMEM((HIDDEN_SIZE, 4 * HIDDEN_SIZE), jnp.bfloat16),
            pltpu.SemaphoreType.DMA((2,)),
        ],
    )(x2d, h_n, c_n, w1, b1, wih0, b_l0, wh0c, whh1, b_l1, wout_p, bout_p)
    return out_pad[:, :OUTPUT_SIZE], hn, cn


def init_params(key):
    """Deterministic init mimicking PyTorch's U(-1/sqrt(fan), 1/sqrt(fan))."""
    ks = jax.random.split(key, 12)
    H, I, L1, O = HIDDEN_SIZE, INPUT_SIZE, LINEAR1_OUT, OUTPUT_SIZE

    def u(k, shape, fan):
        bound = 1.0 / float(fan) ** 0.5
        return jax.random.uniform(k, shape, jnp.float32, -bound, bound)

    w1 = u(ks[0], (I, L1), I)                       # input_layer weight^T
    b1 = u(ks[1], (1, L1), I)
    wih0 = u(ks[2], (L1, 4 * H), H)                 # weight_ih_l0^T (gate order i,f,g,o)
    whh0 = u(ks[3], (H, 4 * H), H)                  # weight_hh_l0^T
    b_l0 = u(ks[4], (1, 4 * H), H) + u(ks[5], (1, 4 * H), H)    # b_ih_l0 + b_hh_l0
    wih1 = u(ks[6], (H, 4 * H), H)                  # weight_ih_l1^T
    whh1 = u(ks[7], (H, 4 * H), H)                  # weight_hh_l1^T
    b_l1 = u(ks[8], (1, 4 * H), H) + u(ks[9], (1, 4 * H), H)    # b_ih_l1 + b_hh_l1
    wout = u(ks[10], (H, O), H)                     # out_layer weight^T
    bout = u(ks[11], (1, O), H)
    return (w1, b1, wih0, whh0, b_l0, wih1, whh1, b_l1, wout, bout)


if __name__ == "__main__":
    B, T = 2, 8
    key = jax.random.PRNGKey(0)
    kx, kh, kc, kp = jax.random.split(key, 4)
    x = jax.random.normal(kx, (B, T, INPUT_SIZE), jnp.float32)
    h_n = jax.random.normal(kh, (NUM_LAYERS, B, HIDDEN_SIZE), jnp.float32)
    c_n = jax.random.normal(kc, (NUM_LAYERS, B, HIDDEN_SIZE), jnp.float32)
    params = init_params(kp)
    prepared = prepare_params(params)

    out, hn, cn = classify_forward(x, h_n, c_n, prepared)
    jax.block_until_ready((out, hn, cn))
    assert out.shape == (B, OUTPUT_SIZE)
    assert hn.shape == (NUM_LAYERS, B, HIDDEN_SIZE)
    assert cn.shape == (NUM_LAYERS, B, HIDDEN_SIZE)
    assert bool(jnp.all(jnp.isfinite(out)))
    assert bool(jnp.all(jnp.isfinite(hn)))
    assert bool(jnp.all(jnp.isfinite(cn)))
    print("KERNEL_OK")
</pallas_src>

<mosaic_0001>
module attributes {stable_mosaic.version = 11 : i64} {
  func.func @_classify_kernel(%arg0: memref<16x6xf32, #tpu.memory_space<vmem>>, %arg1: memref<2x2x128xf32, #tpu.memory_space<vmem>>, %arg2: memref<2x2x128xf32, #tpu.memory_space<vmem>>, %arg3: memref<6x32xbf16, #tpu.memory_space<vmem>>, %arg4: memref<1x32xf32, #tpu.memory_space<vmem>>, %arg5: memref<32x512xbf16, #tpu.memory_space<vmem>>, %arg6: memref<1x512xf32, #tpu.memory_space<vmem>>, %arg7: memref<128x1024xbf16, #tpu.memory_space<any>>, %arg8: memref<128x512xbf16, #tpu.memory_space<any>>, %arg9: memref<1x512xf32, #tpu.memory_space<vmem>>, %arg10: memref<128x128xbf16, #tpu.memory_space<vmem>>, %arg11: memref<1x128xf32, #tpu.memory_space<vmem>>, %arg12: memref<2x128xf32, #tpu.memory_space<vmem>>, %arg13: memref<2x2x128xf32, #tpu.memory_space<vmem>>, %arg14: memref<2x2x128xf32, #tpu.memory_space<vmem>>, %arg15: memref<128x1024xbf16, #tpu.memory_space<vmem>>, %arg16: memref<128x512xbf16, #tpu.memory_space<vmem>>, %arg17: memref<2x!tpu.dma_semaphore, #tpu.memory_space<semaphore_mem>>) attributes {dimension_semantics = [], scalar_prefetch = 0 : i64, scratch_operands = 3 : i64, tpu.core_type = #tpu.core_type<tc>} {
    %c0_i32 = arith.constant 0 : i32
    %0 = tpu.memref_slice %arg17[%c0_i32] : memref<2x!tpu.dma_semaphore, #tpu.memory_space<semaphore_mem>> -> memref<1x!tpu.dma_semaphore, #tpu.memory_space<semaphore_mem>>
    %1 = tpu.memref_squeeze %0 : memref<1x!tpu.dma_semaphore, #tpu.memory_space<semaphore_mem>> -> memref<!tpu.dma_semaphore, #tpu.memory_space<semaphore_mem>>
    tpu.enqueue_dma source(%arg7 : memref<128x1024xbf16, #tpu.memory_space<any>>) target(%arg15 : memref<128x1024xbf16, #tpu.memory_space<vmem>>) target_semaphore(%1 : memref<!tpu.dma_semaphore, #tpu.memory_space<semaphore_mem>>)
    %c1_i32 = arith.constant 1 : i32
    %2 = tpu.memref_slice %arg17[%c1_i32] : memref<2x!tpu.dma_semaphore, #tpu.memory_space<semaphore_mem>> -> memref<1x!tpu.dma_semaphore, #tpu.memory_space<semaphore_mem>>
    %3 = tpu.memref_squeeze %2 : memref<1x!tpu.dma_semaphore, #tpu.memory_space<semaphore_mem>> -> memref<!tpu.dma_semaphore, #tpu.memory_space<semaphore_mem>>
    tpu.enqueue_dma source(%arg8 : memref<128x512xbf16, #tpu.memory_space<any>>) target(%arg16 : memref<128x512xbf16, #tpu.memory_space<vmem>>) target_semaphore(%3 : memref<!tpu.dma_semaphore, #tpu.memory_space<semaphore_mem>>)
    %c0 = arith.constant 0 : index
    %c0_0 = arith.constant 0 : index
    %4 = vector.load %arg0[%c0, %c0_0] : memref<16x6xf32, #tpu.memory_space<vmem>>, vector<16x6xf32>
    %5 = arith.truncf %4 : vector<16x6xf32> to vector<16x6xbf16>
    %c0_1 = arith.constant 0 : index
    %c0_2 = arith.constant 0 : index
    %6 = vector.load %arg3[%c0_1, %c0_2] : memref<6x32xbf16, #tpu.memory_space<vmem>>, vector<6x32xbf16>
    %cst = arith.constant dense<0.000000e+00> : vector<16x32xf32>
    %7 = tpu.matmul %5, %6, %cst {dimension_numbers = #tpu.dot_dimension_numbers<[1], [0], [0], [1], [0, 0, 1, 1], [], []>} : vector<16x6xbf16>, vector<6x32xbf16>, vector<16x32xf32> -> vector<16x32xf32>
    %c0_3 = arith.constant 0 : index
    %c0_4 = arith.constant 0 : index
    %8 = vector.load %arg4[%c0_3, %c0_4] : memref<1x32xf32, #tpu.memory_space<vmem>>, vector<1x32xf32>
    %9 = vector.broadcast %8 : vector<1x32xf32> to vector<16x32xf32>
    %10 = arith.addf %7, %9 : vector<16x32xf32>
    %cst_5 = arith.constant 0.000000e+00 : f32
    %11 = vector.broadcast %cst_5 : f32 to vector<16x32xf32>
    %12 = arith.maximumf %10, %11 : vector<16x32xf32>
    %13 = arith.truncf %12 : vector<16x32xf32> to vector<16x32xbf16>
    %c0_6 = arith.constant 0 : index
    %c0_7 = arith.constant 0 : index
    %14 = vector.load %arg5[%c0_6, %c0_7] : memref<32x512xbf16, #tpu.memory_space<vmem>>, vector<32x512xbf16>
    %cst_8 = arith.constant dense<0.000000e+00> : vector<16x512xf32>
    %15 = tpu.matmul %13, %14, %cst_8 {dimension_numbers = #tpu.dot_dimension_numbers<[1], [0], [0], [1], [0, 0, 1, 1], [], []>} : vector<16x32xbf16>, vector<32x512xbf16>, vector<16x512xf32> -> vector<16x512xf32>
    %c0_9 = arith.constant 0 : index
    %c0_10 = arith.constant 0 : index
    %16 = vector.load %arg6[%c0_9, %c0_10] : memref<1x512xf32, #tpu.memory_space<vmem>>, vector<1x512xf32>
    %17 = vector.broadcast %16 : vector<1x512xf32> to vector<16x512xf32>
    %18 = arith.addf %15, %17 : vector<16x512xf32>
    %c0_11 = arith.constant 0 : index
    %c0_12 = arith.constant 0 : index
    %19 = vector.load %arg9[%c0_11, %c0_12] : memref<1x512xf32, #tpu.memory_space<vmem>>, vector<1x512xf32>
    %20 = vector.shape_cast %19 : vector<1x512xf32> to vector<1x512xf32>
    %21 = vector.broadcast %20 : vector<1x512xf32> to vector<2x512xf32>
    %c0_i32_13 = arith.constant 0 : i32
    %22 = tpu.memref_slice %arg17[%c0_i32_13] : memref<2x!tpu.dma_semaphore, #tpu.memory_space<semaphore_mem>> -> memref<1x!tpu.dma_semaphore, #tpu.memory_space<semaphore_mem>>
    %23 = tpu.memref_squeeze %22 : memref<1x!tpu.dma_semaphore, #tpu.memory_space<semaphore_mem>> -> memref<!tpu.dma_semaphore, #tpu.memory_space<semaphore_mem>>
    tpu.wait_dma2 semaphore(%23 : memref<!tpu.dma_semaphore, #tpu.memory_space<semaphore_mem>>) src(%arg7 : memref<128x1024xbf16, #tpu.memory_space<any>>) dst(%arg15 : memref<128x1024xbf16, #tpu.memory_space<vmem>>)
    %c1_i32_14 = arith.constant 1 : i32
    %24 = tpu.memref_slice %arg17[%c1_i32_14] : memref<2x!tpu.dma_semaphore, #tpu.memory_space<semaphore_mem>> -> memref<1x!tpu.dma_semaphore, #tpu.memory_space<semaphore_mem>>
    %25 = tpu.memref_squeeze %24 : memref<1x!tpu.dma_semaphore, #tpu.memory_space<semaphore_mem>> -> memref<!tpu.dma_semaphore, #tpu.memory_space<semaphore_mem>>
    tpu.wait_dma2 semaphore(%25 : memref<!tpu.dma_semaphore, #tpu.memory_space<semaphore_mem>>) src(%arg8 : memref<128x512xbf16, #tpu.memory_space<any>>) dst(%arg16 : memref<128x512xbf16, #tpu.memory_space<vmem>>)
    %c0_15 = arith.constant 0 : index
    %c0_16 = arith.constant 0 : index
    %c0_17 = arith.constant 0 : index
    %26 = vector.load %arg1[%c0_15, %c0_16, %c0_17] : memref<2x2x128xf32, #tpu.memory_space<vmem>>, vector<1x2x128xf32>
    %27 = vector.shape_cast %26 : vector<1x2x128xf32> to vector<2x128xf32>
    %c0_18 = arith.constant 0 : index
    %c0_19 = arith.constant 0 : index
    %c0_20 = arith.constant 0 : index
    %28 = vector.load %arg2[%c0_18, %c0_19, %c0_20] : memref<2x2x128xf32, #tpu.memory_space<vmem>>, vector<1x2x128xf32>
    %29 = vector.shape_cast %28 : vector<1x2x128xf32> to vector<2x128xf32>
    %c1 = arith.constant 1 : index
    %c0_21 = arith.constant 0 : index
    %c0_22 = arith.constant 0 : index
    %30 = vector.load %arg1[%c1, %c0_21, %c0_22] : memref<2x2x128xf32, #tpu.memory_space<vmem>>, vector<1x2x128xf32>
    %31 = vector.shape_cast %30 : vector<1x2x128xf32> to vector<2x128xf32>
    %c1_23 = arith.constant 1 : index
    %c0_24 = arith.constant 0 : index
    %c0_25 = arith.constant 0 : index
    %32 = vector.load %arg2[%c1_23, %c0_24, %c0_25] : memref<2x2x128xf32, #tpu.memory_space<vmem>>, vector<1x2x128xf32>
    %33 = vector.shape_cast %32 : vector<1x2x128xf32> to vector<2x128xf32>
    %34 = arith.truncf %27 : vector<2x128xf32> to vector<2x128xbf16>
    %c0_26 = arith.constant 0 : index
    %c0_27 = arith.constant 0 : index
    %35 = vector.load %arg15[%c0_26, %c0_27] : memref<128x1024xbf16, #tpu.memory_space<vmem>>, vector<128x512xbf16>
    %cst_28 = arith.constant dense<0.000000e+00> : vector<2x512xf32>
    %36 = tpu.matmul %34, %35, %cst_28 {dimension_numbers = #tpu.dot_dimension_numbers<[1], [0], [0], [1], [0, 0, 1, 1], [], []>} : vector<2x128xbf16>, vector<128x512xbf16>, vector<2x512xf32> -> vector<2x512xf32>
    %37 = arith.truncf %31 : vector<2x128xf32> to vector<2x128xbf16>
    %c0_29 = arith.constant 0 : index
    %c0_30 = arith.constant 0 : index
    %38 = vector.load %arg16[%c0_29, %c0_30] : memref<128x512xbf16, #tpu.memory_space<vmem>>, vector<128x512xbf16>
    %cst_31 = arith.constant dense<0.000000e+00> : vector<2x512xf32>
    %39 = tpu.matmul %37, %38, %cst_31 {dimension_numbers = #tpu.dot_dimension_numbers<[1], [0], [0], [1], [0, 0, 1, 1], [], []>} : vector<2x128xbf16>, vector<128x512xbf16>, vector<2x512xf32> -> vector<2x512xf32>
    %40 = vector.extract_strided_slice %18 {offsets = [0, 0], sizes = [2, 512], strides = [1, 1]} : vector<16x512xf32> to vector<2x512xf32>
    %41 = arith.addf %40, %36 : vector<2x512xf32>
    %42 = vector.extract_strided_slice %41 {offsets = [0, 0], sizes = [2, 128], strides = [1, 1]} : vector<2x512xf32> to vector<2x128xf32>
    %43 = arith.negf %42 : vector<2x128xf32>
    %44 = math.exp %43 : vector<2x128xf32>
    %cst_32 = arith.constant 1.000000e+00 : f32
    %45 = vector.broadcast %cst_32 : f32 to vector<2x128xf32>
    %46 = arith.addf %45, %44 : vector<2x128xf32>
    %47 = arith.divf %45, %46 : vector<2x128xf32>
    %48 = vector.extract_strided_slice %41 {offsets = [0, 128], sizes = [2, 128], strides = [1, 1]} : vector<2x512xf32> to vector<2x128xf32>
    %49 = arith.negf %48 : vector<2x128xf32>
    %50 = math.exp %49 : vector<2x128xf32>
    %cst_33 = arith.constant 1.000000e+00 : f32
    %51 = vector.broadcast %cst_33 : f32 to vector<2x128xf32>
    %52 = arith.addf %51, %50 : vector<2x128xf32>
    %53 = arith.divf %51, %52 : vector<2x128xf32>
    %54 = vector.extract_strided_slice %41 {offsets = [0, 256], sizes = [2, 128], strides = [1, 1]} : vector<2x512xf32> to vector<2x128xf32>
    %55 = math.tanh %54 : vector<2x128xf32>
    %56 = vector.extract_strided_slice %41 {offsets = [0, 384], sizes = [2, 128], strides = [1, 1]} : vector<2x512xf32> to vector<2x128xf32>
    %57 = arith.negf %56 : vector<2x128xf32>
    %58 = math.exp %57 : vector<2x128xf32>
    %cst_34 = arith.constant 1.000000e+00 : f32
    %59 = vector.broadcast %cst_34 : f32 to vector<2x128xf32>
    %60 = arith.addf %59, %58 : vector<2x128xf32>
    %61 = arith.divf %59, %60 : vector<2x128xf32>
    %62 = arith.mulf %53, %29 : vector<2x128xf32>
    %63 = arith.mulf %47, %55 : vector<2x128xf32>
    %64 = arith.addf %62, %63 : vector<2x128xf32>
    %65 = math.tanh %64 : vector<2x128xf32>
    %66 = arith.mulf %61, %65 : vector<2x128xf32>
    %67 = arith.truncf %66 : vector<2x128xf32> to vector<2x128xbf16>
    %c0_35 = arith.constant 0 : index
    %c0_36 = arith.constant 0 : index
    %68 = vector.load %arg15[%c0_35, %c0_36] : memref<128x1024xbf16, #tpu.memory_space<vmem>>, vector<128x1024xbf16>
    %cst_37 = arith.constant dense<0.000000e+00> : vector<2x1024xf32>
    %69 = tpu.matmul %67, %68, %cst_37 {dimension_numbers = #tpu.dot_dimension_numbers<[1], [0], [0], [1], [0, 0, 1, 1], [], []>} : vector<2x128xbf16>, vector<128x1024xbf16>, vector<2x1024xf32> -> vector<2x1024xf32>
    %70 = vector.extract_strided_slice %69 {offsets = [0, 0], sizes = [2, 512], strides = [1, 1]} : vector<2x1024xf32> to vector<2x512xf32>
    %71 = vector.extract_strided_slice %69 {offsets = [0, 512], sizes = [2, 512], strides = [1, 1]} : vector<2x1024xf32> to vector<2x512xf32>
    %72 = arith.addf %71, %39 : vector<2x512xf32>
    %73 = arith.addf %72, %21 : vector<2x512xf32>
    %74 = vector.extract_strided_slice %73 {offsets = [0, 0], sizes = [2, 128], strides = [1, 1]} : vector<2x512xf32> to vector<2x128xf32>
    %75 = arith.negf %74 : vector<2x128xf32>
    %76 = math.exp %75 : vector<2x128xf32>
    %cst_38 = arith.constant 1.000000e+00 : f32
    %77 = vector.broadcast %cst_38 : f32 to vector<2x128xf32>
    %78 = arith.addf %77, %76 : vector<2x128xf32>
    %79 = arith.divf %77, %78 : vector<2x128xf32>
    %80 = vector.extract_strided_slice %73 {offsets = [0, 128], sizes = [2, 128], strides = [1, 1]} : vector<2x512xf32> to vector<2x128xf32>
    %81 = arith.negf %80 : vector<2x128xf32>
    %82 = math.exp %81 : vector<2x128xf32>
    %cst_39 = arith.constant 1.000000e+00 : f32
    %83 = vector.broadcast %cst_39 : f32 to vector<2x128xf32>
    %84 = arith.addf %83, %82 : vector<2x128xf32>
    %85 = arith.divf %83, %84 : vector<2x128xf32>
    %86 = vector.extract_strided_slice %73 {offsets = [0, 256], sizes = [2, 128], strides = [1, 1]} : vector<2x512xf32> to vector<2x128xf32>
    %87 = math.tanh %86 : vector<2x128xf32>
    %88 = vector.extract_strided_slice %73 {offsets = [0, 384], sizes = [2, 128], strides = [1, 1]} : vector<2x512xf32> to vector<2x128xf32>
    %89 = arith.negf %88 : vector<2x128xf32>
    %90 = math.exp %89 : vector<2x128xf32>
    %cst_40 = arith.constant 1.000000e+00 : f32
    %91 = vector.broadcast %cst_40 : f32 to vector<2x128xf32>
    %92 = arith.addf %91, %90 : vector<2x128xf32>
    %93 = arith.divf %91, %92 : vector<2x128xf32>
    %94 = arith.mulf %85, %33 : vector<2x128xf32>
    %95 = arith.mulf %79, %87 : vector<2x128xf32>
    %96 = arith.addf %94, %95 : vector<2x128xf32>
    %97 = math.tanh %96 : vector<2x128xf32>
    %98 = arith.mulf %93, %97 : vector<2x128xf32>
    %99 = arith.truncf %98 : vector<2x128xf32> to vector<2x128xbf16>
    %c0_41 = arith.constant 0 : index
    %c0_42 = arith.constant 0 : index
    %100 = vector.load %arg16[%c0_41, %c0_42] : memref<128x512xbf16, #tpu.memory_space<vmem>>, vector<128x512xbf16>
    %cst_43 = arith.constant dense<0.000000e+00> : vector<2x512xf32>
    %101 = tpu.matmul %99, %100, %cst_43 {dimension_numbers = #tpu.dot_dimension_numbers<[1], [0], [0], [1], [0, 0, 1, 1], [], []>} : vector<2x128xbf16>, vector<128x512xbf16>, vector<2x512xf32> -> vector<2x512xf32>
    %102 = vector.extract_strided_slice %18 {offsets = [2, 0], sizes = [2, 512], strides = [1, 1]} : vector<16x512xf32> to vector<2x512xf32>
    %103 = arith.addf %102, %70 : vector<2x512xf32>
    %104 = vector.extract_strided_slice %103 {offsets = [0, 0], sizes = [2, 128], strides = [1, 1]} : vector<2x512xf32> to vector<2x128xf32>
    %105 = arith.negf %104 : vector<2x128xf32>
    %106 = math.exp %105 : vector<2x128xf32>
    %cst_44 = arith.constant 1.000000e+00 : f32
    %107 = vector.broadcast %cst_44 : f32 to vector<2x128xf32>
    %108 = arith.addf %107, %106 : vector<2x128xf32>
    %109 = arith.divf %107, %108 : vector<2x128xf32>
    %110 = vector.extract_strided_slice %103 {offsets = [0, 128], sizes = [2, 128], strides = [1, 1]} : vector<2x512xf32> to vector<2x128xf32>
    %111 = arith.negf %110 : vector<2x128xf32>
    %112 = math.exp %111 : vector<2x128xf32>
    %cst_45 = arith.constant 1.000000e+00 : f32
    %113 = vector.broadcast %cst_45 : f32 to vector<2x128xf32>
    %114 = arith.addf %113, %112 : vector<2x128xf32>
    %115 = arith.divf %113, %114 : vector<2x128xf32>
    %116 = vector.extract_strided_slice %103 {offsets = [0, 256], sizes = [2, 128], strides = [1, 1]} : vector<2x512xf32> to vector<2x128xf32>
    %117 = math.tanh %116 : vector<2x128xf32>
    %118 = vector.extract_strided_slice %103 {offsets = [0, 384], sizes = [2, 128], strides = [1, 1]} : vector<2x512xf32> to vector<2x128xf32>
    %119 = arith.negf %118 : vector<2x128xf32>
    %120 = math.exp %119 : vector<2x128xf32>
    %cst_46 = arith.constant 1.000000e+00 : f32
    %121 = vector.broadcast %cst_46 : f32 to vector<2x128xf32>
    %122 = arith.addf %121, %120 : vector<2x128xf32>
    %123 = arith.divf %121, %122 : vector<2x128xf32>
    %124 = arith.mulf %115, %64 : vector<2x128xf32>
    %125 = arith.mulf %109, %117 : vector<2x128xf32>
    %126 = arith.addf %124, %125 : vector<2x128xf32>
    %127 = math.tanh %126 : vector<2x128xf32>
    %128 = arith.mulf %123, %127 : vector<2x128xf32>
    %129 = arith.truncf %128 : vector<2x128xf32> to vector<2x128xbf16>
    %c0_47 = arith.constant 0 : index
    %c0_48 = arith.constant 0 : index
    %130 = vector.load %arg15[%c0_47, %c0_48] : memref<128x1024xbf16, #tpu.memory_space<vmem>>, vector<128x1024xbf16>
    %cst_49 = arith.constant dense<0.000000e+00> : vector<2x1024xf32>
    %131 = tpu.matmul %129, %130, %cst_49 {dimension_numbers = #tpu.dot_dimension_numbers<[1], [0], [0], [1], [0, 0, 1, 1], [], []>} : vector<2x128xbf16>, vector<128x1024xbf16>, vector<2x1024xf32> -> vector<2x1024xf32>
    %132 = vector.extract_strided_slice %131 {offsets = [0, 0], sizes = [2, 512], strides = [1, 1]} : vector<2x1024xf32> to vector<2x512xf32>
    %133 = vector.extract_strided_slice %131 {offsets = [0, 512], sizes = [2, 512], strides = [1, 1]} : vector<2x1024xf32> to vector<2x512xf32>
    %134 = arith.addf %133, %101 : vector<2x512xf32>
    %135 = arith.addf %134, %21 : vector<2x512xf32>
    %136 = vector.extract_strided_slice %135 {offsets = [0, 0], sizes = [2, 128], strides = [1, 1]} : vector<2x512xf32> to vector<2x128xf32>
    %137 = arith.negf %136 : vector<2x128xf32>
    %138 = math.exp %137 : vector<2x128xf32>
    %cst_50 = arith.constant 1.000000e+00 : f32
    %139 = vector.broadcast %cst_50 : f32 to vector<2x128xf32>
    %140 = arith.addf %139, %138 : vector<2x128xf32>
    %141 = arith.divf %139, %140 : vector<2x128xf32>
    %142 = vector.extract_strided_slice %135 {offsets = [0, 128], sizes = [2, 128], strides = [1, 1]} : vector<2x512xf32> to vector<2x128xf32>
    %143 = arith.negf %142 : vector<2x128xf32>
    %144 = math.exp %143 : vector<2x128xf32>
    %cst_51 = arith.constant 1.000000e+00 : f32
    %145 = vector.broadcast %cst_51 : f32 to vector<2x128xf32>
    %146 = arith.addf %145, %144 : vector<2x128xf32>
    %147 = arith.divf %145, %146 : vector<2x128xf32>
    %148 = vector.extract_strided_slice %135 {offsets = [0, 256], sizes = [2, 128], strides = [1, 1]} : vector<2x512xf32> to vector<2x128xf32>
    %149 = math.tanh %148 : vector<2x128xf32>
    %150 = vector.extract_strided_slice %135 {offsets = [0, 384], sizes = [2, 128], strides = [1, 1]} : vector<2x512xf32> to vector<2x128xf32>
    %151 = arith.negf %150 : vector<2x128xf32>
    %152 = math.exp %151 : vector<2x128xf32>
    %cst_52 = arith.constant 1.000000e+00 : f32
    %153 = vector.broadcast %cst_52 : f32 to vector<2x128xf32>
    %154 = arith.addf %153, %152 : vector<2x128xf32>
    %155 = arith.divf %153, %154 : vector<2x128xf32>
    %156 = arith.mulf %147, %96 : vector<2x128xf32>
    %157 = arith.mulf %141, %149 : vector<2x128xf32>
    %158 = arith.addf %156, %157 : vector<2x128xf32>
    %159 = math.tanh %158 : vector<2x128xf32>
    %160 = arith.mulf %155, %159 : vector<2x128xf32>
    %161 = arith.truncf %160 : vector<2x128xf32> to vector<2x128xbf16>
    %c0_53 = arith.constant 0 : index
    %c0_54 = arith.constant 0 : index
    %162 = vector.load %arg16[%c0_53, %c0_54] : memref<128x512xbf16, #tpu.memory_space<vmem>>, vector<128x512xbf16>
    %cst_55 = arith.constant dense<0.000000e+00> : vector<2x512xf32>
    %163 = tpu.matmul %161, %162, %cst_55 {dimension_numbers = #tpu.dot_dimension_numbers<[1], [0], [0], [1], [0, 0, 1, 1], [], []>} : vector<2x128xbf16>, vector<128x512xbf16>, vector<2x512xf32> -> vector<2x512xf32>
    %164 = vector.extract_strided_slice %18 {offsets = [4, 0], sizes = [2, 512], strides = [1, 1]} : vector<16x512xf32> to vector<2x512xf32>
    %165 = arith.addf %164, %132 : vector<2x512xf32>
    %166 = vector.extract_strided_slice %165 {offsets = [0, 0], sizes = [2, 128], strides = [1, 1]} : vector<2x512xf32> to vector<2x128xf32>
    %167 = arith.negf %166 : vector<2x128xf32>
    %168 = math.exp %167 : vector<2x128xf32>
    %cst_56 = arith.constant 1.000000e+00 : f32
    %169 = vector.broadcast %cst_56 : f32 to vector<2x128xf32>
    %170 = arith.addf %169, %168 : vector<2x128xf32>
    %171 = arith.divf %169, %170 : vector<2x128xf32>
    %172 = vector.extract_strided_slice %165 {offsets = [0, 128], sizes = [2, 128], strides = [1, 1]} : vector<2x512xf32> to vector<2x128xf32>
    %173 = arith.negf %172 : vector<2x128xf32>
    %174 = math.exp %173 : vector<2x128xf32>
    %cst_57 = arith.constant 1.000000e+00 : f32
    %175 = vector.broadcast %cst_57 : f32 to vector<2x128xf32>
    %176 = arith.addf %175, %174 : vector<2x128xf32>
    %177 = arith.divf %175, %176 : vector<2x128xf32>
    %178 = vector.extract_strided_slice %165 {offsets = [0, 256], sizes = [2, 128], strides = [1, 1]} : vector<2x512xf32> to vector<2x128xf32>
    %179 = math.tanh %178 : vector<2x128xf32>
    %180 = vector.extract_strided_slice %165 {offsets = [0, 384], sizes = [2, 128], strides = [1, 1]} : vector<2x512xf32> to vector<2x128xf32>
    %181 = arith.negf %180 : vector<2x128xf32>
    %182 = math.exp %181 : vector<2x128xf32>
    %cst_58 = arith.constant 1.000000e+00 : f32
    %183 = vector.broadcast %cst_58 : f32 to vector<2x128xf32>
    %184 = arith.addf %183, %182 : vector<2x128xf32>
    %185 = arith.divf %183, %184 : vector<2x128xf32>
    %186 = arith.mulf %177, %126 : vector<2x128xf32>
    %187 = arith.mulf %171, %179 : vector<2x128xf32>
    %188 = arith.addf %186, %187 : vector<2x128xf32>
    %189 = math.tanh %188 : vector<2x128xf32>
    %190 = arith.mulf %185, %189 : vector<2x128xf32>
    %191 = arith.truncf %190 : vector<2x128xf32> to vector<2x128xbf16>
    %c0_59 = arith.constant 0 : index
    %c0_60 = arith.constant 0 : index
    %192 = vector.load %arg15[%c0_59, %c0_60] : memref<128x1024xbf16, #tpu.memory_space<vmem>>, vector<128x1024xbf16>
    %cst_61 = arith.constant dense<0.000000e+00> : vector<2x1024xf32>
    %193 = tpu.matmul %191, %192, %cst_61 {dimension_numbers = #tpu.dot_dimension_numbers<[1], [0], [0], [1], [0, 0, 1, 1], [], []>} : vector<2x128xbf16>, vector<128x1024xbf16>, vector<2x1024xf32> -> vector<2x1024xf32>
    %194 = vector.extract_strided_slice %193 {offsets = [0, 0], sizes = [2, 512], strides = [1, 1]} : vector<2x1024xf32> to vector<2x512xf32>
    %195 = vector.extract_strided_slice %193 {offsets = [0, 512], sizes = [2, 512], strides = [1, 1]} : vector<2x1024xf32> to vector<2x512xf32>
    %196 = arith.addf %195, %163 : vector<2x512xf32>
    %197 = arith.addf %196, %21 : vector<2x512xf32>
    %198 = vector.extract_strided_slice %197 {offsets = [0, 0], sizes = [2, 128], strides = [1, 1]} : vector<2x512xf32> to vector<2x128xf32>
    %199 = arith.negf %198 : vector<2x128xf32>
    %200 = math.exp %199 : vector<2x128xf32>
    %cst_62 = arith.constant 1.000000e+00 : f32
    %201 = vector.broadcast %cst_62 : f32 to vector<2x128xf32>
    %202 = arith.addf %201, %200 : vector<2x128xf32>
    %203 = arith.divf %201, %202 : vector<2x128xf32>
    %204 = vector.extract_strided_slice %197 {offsets = [0, 128], sizes = [2, 128], strides = [1, 1]} : vector<2x512xf32> to vector<2x128xf32>
    %205 = arith.negf %204 : vector<2x128xf32>
    %206 = math.exp %205 : vector<2x128xf32>
    %cst_63 = arith.constant 1.000000e+00 : f32
    %207 = vector.broadcast %cst_63 : f32 to vector<2x128xf32>
    %208 = arith.addf %207, %206 : vector<2x128xf32>
    %209 = arith.divf %207, %208 : vector<2x128xf32>
    %210 = vector.extract_strided_slice %197 {offsets = [0, 256], sizes = [2, 128], strides = [1, 1]} : vector<2x512xf32> to vector<2x128xf32>
    %211 = math.tanh %210 : vector<2x128xf32>
    %212 = vector.extract_strided_slice %197 {offsets = [0, 384], sizes = [2, 128], strides = [1, 1]} : vector<2x512xf32> to vector<2x128xf32>
    %213 = arith.negf %212 : vector<2x128xf32>
    %214 = math.exp %213 : vector<2x128xf32>
    %cst_64 = arith.constant 1.000000e+00 : f32
    %215 = vector.broadcast %cst_64 : f32 to vector<2x128xf32>
    %216 = arith.addf %215, %214 : vector<2x128xf32>
    %217 = arith.divf %215, %216 : vector<2x128xf32>
    %218 = arith.mulf %209, %158 : vector<2x128xf32>
    %219 = arith.mulf %203, %211 : vector<2x128xf32>
    %220 = arith.addf %218, %219 : vector<2x128xf32>
    %221 = math.tanh %220 : vector<2x128xf32>
    %222 = arith.mulf %217, %221 : vector<2x128xf32>
    %223 = arith.truncf %222 : vector<2x128xf32> to vector<2x128xbf16>
    %c0_65 = arith.constant 0 : index
    %c0_66 = arith.constant 0 : index
    %224 = vector.load %arg16[%c0_65, %c0_66] : memref<128x512xbf16, #tpu.memory_space<vmem>>, vector<128x512xbf16>
    %cst_67 = arith.constant dense<0.000000e+00> : vector<2x512xf32>
    %225 = tpu.matmul %223, %224, %cst_67 {dimension_numbers = #tpu.dot_dimension_numbers<[1], [0], [0], [1], [0, 0, 1, 1], [], []>} : vector<2x128xbf16>, vector<128x512xbf16>, vector<2x512xf32> -> vector<2x512xf32>
    %226 = vector.extract_strided_slice %18 {offsets = [6, 0], sizes = [2, 512], strides = [1, 1]} : vector<16x512xf32> to vector<2x512xf32>
    %227 = arith.addf %226, %194 : vector<2x512xf32>
    %228 = vector.extract_strided_slice %227 {offsets = [0, 0], sizes = [2, 128], strides = [1, 1]} : vector<2x512xf32> to vector<2x128xf32>
    %229 = arith.negf %228 : vector<2x128xf32>
    %230 = math.exp %229 : vector<2x128xf32>
    %cst_68 = arith.constant 1.000000e+00 : f32
    %231 = vector.broadcast %cst_68 : f32 to vector<2x128xf32>
    %232 = arith.addf %231, %230 : vector<2x128xf32>
    %233 = arith.divf %231, %232 : vector<2x128xf32>
    %234 = vector.extract_strided_slice %227 {offsets = [0, 128], sizes = [2, 128], strides = [1, 1]} : vector<2x512xf32> to vector<2x128xf32>
    %235 = arith.negf %234 : vector<2x128xf32>
    %236 = math.exp %235 : vector<2x128xf32>
    %cst_69 = arith.constant 1.000000e+00 : f32
    %237 = vector.broadcast %cst_69 : f32 to vector<2x128xf32>
    %238 = arith.addf %237, %236 : vector<2x128xf32>
    %239 = arith.divf %237, %238 : vector<2x128xf32>
    %240 = vector.extract_strided_slice %227 {offsets = [0, 256], sizes = [2, 128], strides = [1, 1]} : vector<2x512xf32> to vector<2x128xf32>
    %241 = math.tanh %240 : vector<2x128xf32>
    %242 = vector.extract_strided_slice %227 {offsets = [0, 384], sizes = [2, 128], strides = [1, 1]} : vector<2x512xf32> to vector<2x128xf32>
    %243 = arith.negf %242 : vector<2x128xf32>
    %244 = math.exp %243 : vector<2x128xf32>
    %cst_70 = arith.constant 1.000000e+00 : f32
    %245 = vector.broadcast %cst_70 : f32 to vector<2x128xf32>
    %246 = arith.addf %245, %244 : vector<2x128xf32>
    %247 = arith.divf %245, %246 : vector<2x128xf32>
    %248 = arith.mulf %239, %188 : vector<2x128xf32>
    %249 = arith.mulf %233, %241 : vector<2x128xf32>
    %250 = arith.addf %248, %249 : vector<2x128xf32>
    %251 = math.tanh %250 : vector<2x128xf32>
    %252 = arith.mulf %247, %251 : vector<2x128xf32>
    %253 = arith.truncf %252 : vector<2x128xf32> to vector<2x128xbf16>
    %c0_71 = arith.constant 0 : index
    %c0_72 = arith.constant 0 : index
    %254 = vector.load %arg15[%c0_71, %c0_72] : memref<128x1024xbf16, #tpu.memory_space<vmem>>, vector<128x1024xbf16>
    %cst_73 = arith.constant dense<0.000000e+00> : vector<2x1024xf32>
    %255 = tpu.matmul %253, %254, %cst_73 {dimension_numbers = #tpu.dot_dimension_numbers<[1], [0], [0], [1], [0, 0, 1, 1], [], []>} : vector<2x128xbf16>, vector<128x1024xbf16>, vector<2x1024xf32> -> vector<2x1024xf32>
    %256 = vector.extract_strided_slice %255 {offsets = [0, 0], sizes = [2, 512], strides = [1, 1]} : vector<2x1024xf32> to vector<2x512xf32>
    %257 = vector.extract_strided_slice %255 {offsets = [0, 512], sizes = [2, 512], strides = [1, 1]} : vector<2x1024xf32> to vector<2x512xf32>
    %258 = arith.addf %257, %225 : vector<2x512xf32>
    %259 = arith.addf %258, %21 : vector<2x512xf32>
    %260 = vector.extract_strided_slice %259 {offsets = [0, 0], sizes = [2, 128], strides = [1, 1]} : vector<2x512xf32> to vector<2x128xf32>
    %261 = arith.negf %260 : vector<2x128xf32>
    %262 = math.exp %261 : vector<2x128xf32>
    %cst_74 = arith.constant 1.000000e+00 : f32
    %263 = vector.broadcast %cst_74 : f32 to vector<2x128xf32>
    %264 = arith.addf %263, %262 : vector<2x128xf32>
    %265 = arith.divf %263, %264 : vector<2x128xf32>
    %266 = vector.extract_strided_slice %259 {offsets = [0, 128], sizes = [2, 128], strides = [1, 1]} : vector<2x512xf32> to vector<2x128xf32>
    %267 = arith.negf %266 : vector<2x128xf32>
    %268 = math.exp %267 : vector<2x128xf32>
    %cst_75 = arith.constant 1.000000e+00 : f32
    %269 = vector.broadcast %cst_75 : f32 to vector<2x128xf32>
    %270 = arith.addf %269, %268 : vector<2x128xf32>
    %271 = arith.divf %269, %270 : vector<2x128xf32>
    %272 = vector.extract_strided_slice %259 {offsets = [0, 256], sizes = [2, 128], strides = [1, 1]} : vector<2x512xf32> to vector<2x128xf32>
    %273 = math.tanh %272 : vector<2x128xf32>
    %274 = vector.extract_strided_slice %259 {offsets = [0, 384], sizes = [2, 128], strides = [1, 1]} : vector<2x512xf32> to vector<2x128xf32>
    %275 = arith.negf %274 : vector<2x128xf32>
    %276 = math.exp %275 : vector<2x128xf32>
    %cst_76 = arith.constant 1.000000e+00 : f32
    %277 = vector.broadcast %cst_76 : f32 to vector<2x128xf32>
    %278 = arith.addf %277, %276 : vector<2x128xf32>
    %279 = arith.divf %277, %278 : vector<2x128xf32>
    %280 = arith.mulf %271, %220 : vector<2x128xf32>
    %281 = arith.mulf %265, %273 : vector<2x128xf32>
    %282 = arith.addf %280, %281 : vector<2x128xf32>
    %283 = math.tanh %282 : vector<2x128xf32>
    %284 = arith.mulf %279, %283 : vector<2x128xf32>
    %285 = arith.truncf %284 : vector<2x128xf32> to vector<2x128xbf16>
    %c0_77 = arith.constant 0 : index
    %c0_78 = arith.constant 0 : index
    %286 = vector.load %arg16[%c0_77, %c0_78] : memref<128x512xbf16, #tpu.memory_space<vmem>>, vector<128x512xbf16>
    %cst_79 = arith.constant dense<0.000000e+00> : vector<2x512xf32>
    %287 = tpu.matmul %285, %286, %cst_79 {dimension_numbers = #tpu.dot_dimension_numbers<[1], [0], [0], [1], [0, 0, 1, 1], [], []>} : vector<2x128xbf16>, vector<128x512xbf16>, vector<2x512xf32> -> vector<2x512xf32>
    %288 = vector.extract_strided_slice %18 {offsets = [8, 0], sizes = [2, 512], strides = [1, 1]} : vector<16x512xf32> to vector<2x512xf32>
    %289 = arith.addf %288, %256 : vector<2x512xf32>
    %290 = vector.extract_strided_slice %289 {offsets = [0, 0], sizes = [2, 128], strides = [1, 1]} : vector<2x512xf32> to vector<2x128xf32>
    %291 = arith.negf %290 : vector<2x128xf32>
    %292 = math.exp %291 : vector<2x128xf32>
    %cst_80 = arith.constant 1.000000e+00 : f32
    %293 = vector.broadcast %cst_80 : f32 to vector<2x128xf32>
    %294 = arith.addf %293, %292 : vector<2x128xf32>
    %295 = arith.divf %293, %294 : vector<2x128xf32>
    %296 = vector.extract_strided_slice %289 {offsets = [0, 128], sizes = [2, 128], strides = [1, 1]} : vector<2x512xf32> to vector<2x128xf32>
    %297 = arith.negf %296 : vector<2x128xf32>
    %298 = math.exp %297 : vector<2x128xf32>
    %cst_81 = arith.constant 1.000000e+00 : f32
    %299 = vector.broadcast %cst_81 : f32 to vector<2x128xf32>
    %300 = arith.addf %299, %298 : vector<2x128xf32>
    %301 = arith.divf %299, %300 : vector<2x128xf32>
    %302 = vector.extract_strided_slice %289 {offsets = [0, 256], sizes = [2, 128], strides = [1, 1]} : vector<2x512xf32> to vector<2x128xf32>
    %303 = math.tanh %302 : vector<2x128xf32>
    %304 = vector.extract_strided_slice %289 {offsets = [0, 384], sizes = [2, 128], strides = [1, 1]} : vector<2x512xf32> to vector<2x128xf32>
    %305 = arith.negf %304 : vector<2x128xf32>
    %306 = math.exp %305 : vector<2x128xf32>
    %cst_82 = arith.constant 1.000000e+00 : f32
    %307 = vector.broadcast %cst_82 : f32 to vector<2x128xf32>
    %308 = arith.addf %307, %306 : vector<2x128xf32>
    %309 = arith.divf %307, %308 : vector<2x128xf32>
    %310 = arith.mulf %301, %250 : vector<2x128xf32>
    %311 = arith.mulf %295, %303 : vector<2x128xf32>
    %312 = arith.addf %310, %311 : vector<2x128xf32>
    %313 = math.tanh %312 : vector<2x128xf32>
    %314 = arith.mulf %309, %313 : vector<2x128xf32>
    %315 = arith.truncf %314 : vector<2x128xf32> to vector<2x128xbf16>
    %c0_83 = arith.constant 0 : index
    %c0_84 = arith.constant 0 : index
    %316 = vector.load %arg15[%c0_83, %c0_84] : memref<128x1024xbf16, #tpu.memory_space<vmem>>, vector<128x1024xbf16>
    %cst_85 = arith.constant dense<0.000000e+00> : vector<2x1024xf32>
    %317 = tpu.matmul %315, %316, %cst_85 {dimension_numbers = #tpu.dot_dimension_numbers<[1], [0], [0], [1], [0, 0, 1, 1], [], []>} : vector<2x128xbf16>, vector<128x1024xbf16>, vector<2x1024xf32> -> vector<2x1024xf32>
    %318 = vector.extract_strided_slice %317 {offsets = [0, 0], sizes = [2, 512], strides = [1, 1]} : vector<2x1024xf32> to vector<2x512xf32>
    %319 = vector.extract_strided_slice %317 {offsets = [0, 512], sizes = [2, 512], strides = [1, 1]} : vector<2x1024xf32> to vector<2x512xf32>
    %320 = arith.addf %319, %287 : vector<2x512xf32>
    %321 = arith.addf %320, %21 : vector<2x512xf32>
    %322 = vector.extract_strided_slice %321 {offsets = [0, 0], sizes = [2, 128], strides = [1, 1]} : vector<2x512xf32> to vector<2x128xf32>
    %323 = arith.negf %322 : vector<2x128xf32>
    %324 = math.exp %323 : vector<2x128xf32>
    %cst_86 = arith.constant 1.000000e+00 : f32
    %325 = vector.broadcast %cst_86 : f32 to vector<2x128xf32>
    %326 = arith.addf %325, %324 : vector<2x128xf32>
    %327 = arith.divf %325, %326 : vector<2x128xf32>
    %328 = vector.extract_strided_slice %321 {offsets = [0, 128], sizes = [2, 128], strides = [1, 1]} : vector<2x512xf32> to vector<2x128xf32>
    %329 = arith.negf %328 : vector<2x128xf32>
    %330 = math.exp %329 : vector<2x128xf32>
    %cst_87 = arith.constant 1.000000e+00 : f32
    %331 = vector.broadcast %cst_87 : f32 to vector<2x128xf32>
    %332 = arith.addf %331, %330 : vector<2x128xf32>
    %333 = arith.divf %331, %332 : vector<2x128xf32>
    %334 = vector.extract_strided_slice %321 {offsets = [0, 256], sizes = [2, 128], strides = [1, 1]} : vector<2x512xf32> to vector<2x128xf32>
    %335 = math.tanh %334 : vector<2x128xf32>
    %336 = vector.extract_strided_slice %321 {offsets = [0, 384], sizes = [2, 128], strides = [1, 1]} : vector<2x512xf32> to vector<2x128xf32>
    %337 = arith.negf %336 : vector<2x128xf32>
    %338 = math.exp %337 : vector<2x128xf32>
    %cst_88 = arith.constant 1.000000e+00 : f32
    %339 = vector.broadcast %cst_88 : f32 to vector<2x128xf32>
    %340 = arith.addf %339, %338 : vector<2x128xf32>
    %341 = arith.divf %339, %340 : vector<2x128xf32>
    %342 = arith.mulf %333, %282 : vector<2x128xf32>
    %343 = arith.mulf %327, %335 : vector<2x128xf32>
    %344 = arith.addf %342, %343 : vector<2x128xf32>
    %345 = math.tanh %344 : vector<2x128xf32>
    %346 = arith.mulf %341, %345 : vector<2x128xf32>
    %347 = arith.truncf %346 : vector<2x128xf32> to vector<2x128xbf16>
    %c0_89 = arith.constant 0 : index
    %c0_90 = arith.constant 0 : index
    %348 = vector.load %arg16[%c0_89, %c0_90] : memref<128x512xbf16, #tpu.memory_space<vmem>>, vector<128x512xbf16>
    %cst_91 = arith.constant dense<0.000000e+00> : vector<2x512xf32>
    %349 = tpu.matmul %347, %348, %cst_91 {dimension_numbers = #tpu.dot_dimension_numbers<[1], [0], [0], [1], [0, 0, 1, 1], [], []>} : vector<2x128xbf16>, vector<128x512xbf16>, vector<2x512xf32> -> vector<2x512xf32>
    %350 = vector.extract_strided_slice %18 {offsets = [10, 0], sizes = [2, 512], strides = [1, 1]} : vector<16x512xf32> to vector<2x512xf32>
    %351 = arith.addf %350, %318 : vector<2x512xf32>
    %352 = vector.extract_strided_slice %351 {offsets = [0, 0], sizes = [2, 128], strides = [1, 1]} : vector<2x512xf32> to vector<2x128xf32>
    %353 = arith.negf %352 : vector<2x128xf32>
    %354 = math.exp %353 : vector<2x128xf32>
    %cst_92 = arith.constant 1.000000e+00 : f32
    %355 = vector.broadcast %cst_92 : f32 to vector<2x128xf32>
    %356 = arith.addf %355, %354 : vector<2x128xf32>
    %357 = arith.divf %355, %356 : vector<2x128xf32>
    %358 = vector.extract_strided_slice %351 {offsets = [0, 128], sizes = [2, 128], strides = [1, 1]} : vector<2x512xf32> to vector<2x128xf32>
    %359 = arith.negf %358 : vector<2x128xf32>
    %360 = math.exp %359 : vector<2x128xf32>
    %cst_93 = arith.constant 1.000000e+00 : f32
    %361 = vector.broadcast %cst_93 : f32 to vector<2x128xf32>
    %362 = arith.addf %361, %360 : vector<2x128xf32>
    %363 = arith.divf %361, %362 : vector<2x128xf32>
    %364 = vector.extract_strided_slice %351 {offsets = [0, 256], sizes = [2, 128], strides = [1, 1]} : vector<2x512xf32> to vector<2x128xf32>
    %365 = math.tanh %364 : vector<2x128xf32>
    %366 = vector.extract_strided_slice %351 {offsets = [0, 384], sizes = [2, 128], strides = [1, 1]} : vector<2x512xf32> to vector<2x128xf32>
    %367 = arith.negf %366 : vector<2x128xf32>
    %368 = math.exp %367 : vector<2x128xf32>
    %cst_94 = arith.constant 1.000000e+00 : f32
    %369 = vector.broadcast %cst_94 : f32 to vector<2x128xf32>
    %370 = arith.addf %369, %368 : vector<2x128xf32>
    %371 = arith.divf %369, %370 : vector<2x128xf32>
    %372 = arith.mulf %363, %312 : vector<2x128xf32>
    %373 = arith.mulf %357, %365 : vector<2x128xf32>
    %374 = arith.addf %372, %373 : vector<2x128xf32>
    %375 = math.tanh %374 : vector<2x128xf32>
    %376 = arith.mulf %371, %375 : vector<2x128xf32>
    %377 = arith.truncf %376 : vector<2x128xf32> to vector<2x128xbf16>
    %c0_95 = arith.constant 0 : index
    %c0_96 = arith.constant 0 : index
    %378 = vector.load %arg15[%c0_95, %c0_96] : memref<128x1024xbf16, #tpu.memory_space<vmem>>, vector<128x1024xbf16>
    %cst_97 = arith.constant dense<0.000000e+00> : vector<2x1024xf32>
    %379 = tpu.matmul %377, %378, %cst_97 {dimension_numbers = #tpu.dot_dimension_numbers<[1], [0], [0], [1], [0, 0, 1, 1], [], []>} : vector<2x128xbf16>, vector<128x1024xbf16>, vector<2x1024xf32> -> vector<2x1024xf32>
    %380 = vector.extract_strided_slice %379 {offsets = [0, 0], sizes = [2, 512], strides = [1, 1]} : vector<2x1024xf32> to vector<2x512xf32>
    %381 = vector.extract_strided_slice %379 {offsets = [0, 512], sizes = [2, 512], strides = [1, 1]} : vector<2x1024xf32> to vector<2x512xf32>
    %382 = arith.addf %381, %349 : vector<2x512xf32>
    %383 = arith.addf %382, %21 : vector<2x512xf32>
    %384 = vector.extract_strided_slice %383 {offsets = [0, 0], sizes = [2, 128], strides = [1, 1]} : vector<2x512xf32> to vector<2x128xf32>
    %385 = arith.negf %384 : vector<2x128xf32>
    %386 = math.exp %385 : vector<2x128xf32>
    %cst_98 = arith.constant 1.000000e+00 : f32
    %387 = vector.broadcast %cst_98 : f32 to vector<2x128xf32>
    %388 = arith.addf %387, %386 : vector<2x128xf32>
    %389 = arith.divf %387, %388 : vector<2x128xf32>
    %390 = vector.extract_strided_slice %383 {offsets = [0, 128], sizes = [2, 128], strides = [1, 1]} : vector<2x512xf32> to vector<2x128xf32>
    %391 = arith.negf %390 : vector<2x128xf32>
    %392 = math.exp %391 : vector<2x128xf32>
    %cst_99 = arith.constant 1.000000e+00 : f32
    %393 = vector.broadcast %cst_99 : f32 to vector<2x128xf32>
    %394 = arith.addf %393, %392 : vector<2x128xf32>
    %395 = arith.divf %393, %394 : vector<2x128xf32>
    %396 = vector.extract_strided_slice %383 {offsets = [0, 256], sizes = [2, 128], strides = [1, 1]} : vector<2x512xf32> to vector<2x128xf32>
    %397 = math.tanh %396 : vector<2x128xf32>
    %398 = vector.extract_strided_slice %383 {offsets = [0, 384], sizes = [2, 128], strides = [1, 1]} : vector<2x512xf32> to vector<2x128xf32>
    %399 = arith.negf %398 : vector<2x128xf32>
    %400 = math.exp %399 : vector<2x128xf32>
    %cst_100 = arith.constant 1.000000e+00 : f32
    %401 = vector.broadcast %cst_100 : f32 to vector<2x128xf32>
    %402 = arith.addf %401, %400 : vector<2x128xf32>
    %403 = arith.divf %401, %402 : vector<2x128xf32>
    %404 = arith.mulf %395, %344 : vector<2x128xf32>
    %405 = arith.mulf %389, %397 : vector<2x128xf32>
    %406 = arith.addf %404, %405 : vector<2x128xf32>
    %407 = math.tanh %406 : vector<2x128xf32>
    %408 = arith.mulf %403, %407 : vector<2x128xf32>
    %409 = arith.truncf %408 : vector<2x128xf32> to vector<2x128xbf16>
    %c0_101 = arith.constant 0 : index
    %c0_102 = arith.constant 0 : index
    %410 = vector.load %arg16[%c0_101, %c0_102] : memref<128x512xbf16, #tpu.memory_space<vmem>>, vector<128x512xbf16>
    %cst_103 = arith.constant dense<0.000000e+00> : vector<2x512xf32>
    %411 = tpu.matmul %409, %410, %cst_103 {dimension_numbers = #tpu.dot_dimension_numbers<[1], [0], [0], [1], [0, 0, 1, 1], [], []>} : vector<2x128xbf16>, vector<128x512xbf16>, vector<2x512xf32> -> vector<2x512xf32>
    %412 = vector.extract_strided_slice %18 {offsets = [12, 0], sizes = [2, 512], strides = [1, 1]} : vector<16x512xf32> to vector<2x512xf32>
    %413 = arith.addf %412, %380 : vector<2x512xf32>
    %414 = vector.extract_strided_slice %413 {offsets = [0, 0], sizes = [2, 128], strides = [1, 1]} : vector<2x512xf32> to vector<2x128xf32>
    %415 = arith.negf %414 : vector<2x128xf32>
    %416 = math.exp %415 : vector<2x128xf32>
    %cst_104 = arith.constant 1.000000e+00 : f32
    %417 = vector.broadcast %cst_104 : f32 to vector<2x128xf32>
    %418 = arith.addf %417, %416 : vector<2x128xf32>
    %419 = arith.divf %417, %418 : vector<2x128xf32>
    %420 = vector.extract_strided_slice %413 {offsets = [0, 128], sizes = [2, 128], strides = [1, 1]} : vector<2x512xf32> to vector<2x128xf32>
    %421 = arith.negf %420 : vector<2x128xf32>
    %422 = math.exp %421 : vector<2x128xf32>
    %cst_105 = arith.constant 1.000000e+00 : f32
    %423 = vector.broadcast %cst_105 : f32 to vector<2x128xf32>
    %424 = arith.addf %423, %422 : vector<2x128xf32>
    %425 = arith.divf %423, %424 : vector<2x128xf32>
    %426 = vector.extract_strided_slice %413 {offsets = [0, 256], sizes = [2, 128], strides = [1, 1]} : vector<2x512xf32> to vector<2x128xf32>
    %427 = math.tanh %426 : vector<2x128xf32>
    %428 = vector.extract_strided_slice %413 {offsets = [0, 384], sizes = [2, 128], strides = [1, 1]} : vector<2x512xf32> to vector<2x128xf32>
    %429 = arith.negf %428 : vector<2x128xf32>
    %430 = math.exp %429 : vector<2x128xf32>
    %cst_106 = arith.constant 1.000000e+00 : f32
    %431 = vector.broadcast %cst_106 : f32 to vector<2x128xf32>
    %432 = arith.addf %431, %430 : vector<2x128xf32>
    %433 = arith.divf %431, %432 : vector<2x128xf32>
    %434 = arith.mulf %425, %374 : vector<2x128xf32>
    %435 = arith.mulf %419, %427 : vector<2x128xf32>
    %436 = arith.addf %434, %435 : vector<2x128xf32>
    %437 = math.tanh %436 : vector<2x128xf32>
    %438 = arith.mulf %433, %437 : vector<2x128xf32>
    %439 = arith.truncf %438 : vector<2x128xf32> to vector<2x128xbf16>
    %c0_107 = arith.constant 0 : index
    %c0_108 = arith.constant 0 : index
    %440 = vector.load %arg15[%c0_107, %c0_108] : memref<128x1024xbf16, #tpu.memory_space<vmem>>, vector<128x1024xbf16>
    %cst_109 = arith.constant dense<0.000000e+00> : vector<2x1024xf32>
    %441 = tpu.matmul %439, %440, %cst_109 {dimension_numbers = #tpu.dot_dimension_numbers<[1], [0], [0], [1], [0, 0, 1, 1], [], []>} : vector<2x128xbf16>, vector<128x1024xbf16>, vector<2x1024xf32> -> vector<2x1024xf32>
    %442 = vector.extract_strided_slice %441 {offsets = [0, 0], sizes = [2, 512], strides = [1, 1]} : vector<2x1024xf32> to vector<2x512xf32>
    %443 = vector.extract_strided_slice %441 {offsets = [0, 512], sizes = [2, 512], strides = [1, 1]} : vector<2x1024xf32> to vector<2x512xf32>
    %444 = arith.addf %443, %411 : vector<2x512xf32>
    %445 = arith.addf %444, %21 : vector<2x512xf32>
    %446 = vector.extract_strided_slice %445 {offsets = [0, 0], sizes = [2, 128], strides = [1, 1]} : vector<2x512xf32> to vector<2x128xf32>
    %447 = arith.negf %446 : vector<2x128xf32>
    %448 = math.exp %447 : vector<2x128xf32>
    %cst_110 = arith.constant 1.000000e+00 : f32
    %449 = vector.broadcast %cst_110 : f32 to vector<2x128xf32>
    %450 = arith.addf %449, %448 : vector<2x128xf32>
    %451 = arith.divf %449, %450 : vector<2x128xf32>
    %452 = vector.extract_strided_slice %445 {offsets = [0, 128], sizes = [2, 128], strides = [1, 1]} : vector<2x512xf32> to vector<2x128xf32>
    %453 = arith.negf %452 : vector<2x128xf32>
    %454 = math.exp %453 : vector<2x128xf32>
    %cst_111 = arith.constant 1.000000e+00 : f32
    %455 = vector.broadcast %cst_111 : f32 to vector<2x128xf32>
    %456 = arith.addf %455, %454 : vector<2x128xf32>
    %457 = arith.divf %455, %456 : vector<2x128xf32>
    %458 = vector.extract_strided_slice %445 {offsets = [0, 256], sizes = [2, 128], strides = [1, 1]} : vector<2x512xf32> to vector<2x128xf32>
    %459 = math.tanh %458 : vector<2x128xf32>
    %460 = vector.extract_strided_slice %445 {offsets = [0, 384], sizes = [2, 128], strides = [1, 1]} : vector<2x512xf32> to vector<2x128xf32>
    %461 = arith.negf %460 : vector<2x128xf32>
    %462 = math.exp %461 : vector<2x128xf32>
    %cst_112 = arith.constant 1.000000e+00 : f32
    %463 = vector.broadcast %cst_112 : f32 to vector<2x128xf32>
    %464 = arith.addf %463, %462 : vector<2x128xf32>
    %465 = arith.divf %463, %464 : vector<2x128xf32>
    %466 = arith.mulf %457, %406 : vector<2x128xf32>
    %467 = arith.mulf %451, %459 : vector<2x128xf32>
    %468 = arith.addf %466, %467 : vector<2x128xf32>
    %469 = math.tanh %468 : vector<2x128xf32>
    %470 = arith.mulf %465, %469 : vector<2x128xf32>
    %471 = arith.truncf %470 : vector<2x128xf32> to vector<2x128xbf16>
    %c0_113 = arith.constant 0 : index
    %c0_114 = arith.constant 0 : index
    %472 = vector.load %arg16[%c0_113, %c0_114] : memref<128x512xbf16, #tpu.memory_space<vmem>>, vector<128x512xbf16>
    %cst_115 = arith.constant dense<0.000000e+00> : vector<2x512xf32>
    %473 = tpu.matmul %471, %472, %cst_115 {dimension_numbers = #tpu.dot_dimension_numbers<[1], [0], [0], [1], [0, 0, 1, 1], [], []>} : vector<2x128xbf16>, vector<128x512xbf16>, vector<2x512xf32> -> vector<2x512xf32>
    %474 = vector.extract_strided_slice %18 {offsets = [14, 0], sizes = [2, 512], strides = [1, 1]} : vector<16x512xf32> to vector<2x512xf32>
    %475 = arith.addf %474, %442 : vector<2x512xf32>
    %476 = vector.extract_strided_slice %475 {offsets = [0, 0], sizes = [2, 128], strides = [1, 1]} : vector<2x512xf32> to vector<2x128xf32>
    %477 = arith.negf %476 : vector<2x128xf32>
    %478 = math.exp %477 : vector<2x128xf32>
    %cst_116 = arith.constant 1.000000e+00 : f32
    %479 = vector.broadcast %cst_116 : f32 to vector<2x128xf32>
    %480 = arith.addf %479, %478 : vector<2x128xf32>
    %481 = arith.divf %479, %480 : vector<2x128xf32>
    %482 = vector.extract_strided_slice %475 {offsets = [0, 128], sizes = [2, 128], strides = [1, 1]} : vector<2x512xf32> to vector<2x128xf32>
    %483 = arith.negf %482 : vector<2x128xf32>
    %484 = math.exp %483 : vector<2x128xf32>
    %cst_117 = arith.constant 1.000000e+00 : f32
    %485 = vector.broadcast %cst_117 : f32 to vector<2x128xf32>
    %486 = arith.addf %485, %484 : vector<2x128xf32>
    %487 = arith.divf %485, %486 : vector<2x128xf32>
    %488 = vector.extract_strided_slice %475 {offsets = [0, 256], sizes = [2, 128], strides = [1, 1]} : vector<2x512xf32> to vector<2x128xf32>
    %489 = math.tanh %488 : vector<2x128xf32>
    %490 = vector.extract_strided_slice %475 {offsets = [0, 384], sizes = [2, 128], strides = [1, 1]} : vector<2x512xf32> to vector<2x128xf32>
    %491 = arith.negf %490 : vector<2x128xf32>
    %492 = math.exp %491 : vector<2x128xf32>
    %cst_118 = arith.constant 1.000000e+00 : f32
    %493 = vector.broadcast %cst_118 : f32 to vector<2x128xf32>
    %494 = arith.addf %493, %492 : vector<2x128xf32>
    %495 = arith.divf %493, %494 : vector<2x128xf32>
    %496 = arith.mulf %487, %436 : vector<2x128xf32>
    %497 = arith.mulf %481, %489 : vector<2x128xf32>
    %498 = arith.addf %496, %497 : vector<2x128xf32>
    %499 = math.tanh %498 : vector<2x128xf32>
    %500 = arith.mulf %495, %499 : vector<2x128xf32>
    %501 = arith.truncf %500 : vector<2x128xf32> to vector<2x128xbf16>
    %c0_119 = arith.constant 0 : index
    %c512 = arith.constant 512 : index
    %502 = vector.load %arg15[%c0_119, %c512] : memref<128x1024xbf16, #tpu.memory_space<vmem>>, vector<128x512xbf16>
    %cst_120 = arith.constant dense<0.000000e+00> : vector<2x512xf32>
    %503 = tpu.matmul %501, %502, %cst_120 {dimension_numbers = #tpu.dot_dimension_numbers<[1], [0], [0], [1], [0, 0, 1, 1], [], []>} : vector<2x128xbf16>, vector<128x512xbf16>, vector<2x512xf32> -> vector<2x512xf32>
    %504 = arith.addf %503, %473 : vector<2x512xf32>
    %505 = arith.addf %504, %21 : vector<2x512xf32>
    %506 = vector.extract_strided_slice %505 {offsets = [0, 0], sizes = [2, 128], strides = [1, 1]} : vector<2x512xf32> to vector<2x128xf32>
    %507 = arith.negf %506 : vector<2x128xf32>
    %508 = math.exp %507 : vector<2x128xf32>
    %cst_121 = arith.constant 1.000000e+00 : f32
    %509 = vector.broadcast %cst_121 : f32 to vector<2x128xf32>
    %510 = arith.addf %509, %508 : vector<2x128xf32>
    %511 = arith.divf %509, %510 : vector<2x128xf32>
    %512 = vector.extract_strided_slice %505 {offsets = [0, 128], sizes = [2, 128], strides = [1, 1]} : vector<2x512xf32> to vector<2x128xf32>
    %513 = arith.negf %512 : vector<2x128xf32>
    %514 = math.exp %513 : vector<2x128xf32>
    %cst_122 = arith.constant 1.000000e+00 : f32
    %515 = vector.broadcast %cst_122 : f32 to vector<2x128xf32>
    %516 = arith.addf %515, %514 : vector<2x128xf32>
    %517 = arith.divf %515, %516 : vector<2x128xf32>
    %518 = vector.extract_strided_slice %505 {offsets = [0, 256], sizes = [2, 128], strides = [1, 1]} : vector<2x512xf32> to vector<2x128xf32>
    %519 = math.tanh %518 : vector<2x128xf32>
    %520 = vector.extract_strided_slice %505 {offsets = [0, 384], sizes = [2, 128], strides = [1, 1]} : vector<2x512xf32> to vector<2x128xf32>
    %521 = arith.negf %520 : vector<2x128xf32>
    %522 = math.exp %521 : vector<2x128xf32>
    %cst_123 = arith.constant 1.000000e+00 : f32
    %523 = vector.broadcast %cst_123 : f32 to vector<2x128xf32>
    %524 = arith.addf %523, %522 : vector<2x128xf32>
    %525 = arith.divf %523, %524 : vector<2x128xf32>
    %526 = arith.mulf %517, %468 : vector<2x128xf32>
    %527 = arith.mulf %511, %519 : vector<2x128xf32>
    %528 = arith.addf %526, %527 : vector<2x128xf32>
    %529 = math.tanh %528 : vector<2x128xf32>
    %530 = arith.mulf %525, %529 : vector<2x128xf32>
    %cst_124 = arith.constant 0.000000e+00 : f32
    %531 = vector.broadcast %cst_124 : f32 to vector<2x128xf32>
    %532 = arith.maximumf %530, %531 : vector<2x128xf32>
    %533 = arith.truncf %532 : vector<2x128xf32> to vector<2x128xbf16>
    %c0_125 = arith.constant 0 : index
    %c0_126 = arith.constant 0 : index
    %534 = vector.load %arg10[%c0_125, %c0_126] : memref<128x128xbf16, #tpu.memory_space<vmem>>, vector<128x128xbf16>
    %cst_127 = arith.constant dense<0.000000e+00> : vector<2x128xf32>
    %535 = tpu.matmul %533, %534, %cst_127 {dimension_numbers = #tpu.dot_dimension_numbers<[1], [0], [0], [1], [0, 0, 1, 1], [], []>} : vector<2x128xbf16>, vector<128x128xbf16>, vector<2x128xf32> -> vector<2x128xf32>
    %c0_128 = arith.constant 0 : index
    %c0_129 = arith.constant 0 : index
    %536 = vector.load %arg11[%c0_128, %c0_129] : memref<1x128xf32, #tpu.memory_space<vmem>>, vector<1x128xf32>
    %537 = vector.broadcast %536 : vector<1x128xf32> to vector<2x128xf32>
    %538 = arith.addf %535, %537 : vector<2x128xf32>
    %c0_130 = arith.constant 0 : index
    %c0_131 = arith.constant 0 : index
    %539 = vector.load %arg12[%c0_130, %c0_131] : memref<2x128xf32, #tpu.memory_space<vmem>>, vector<2x128xf32>
    tpu.vector_store %arg12[%c0_130, %c0_131], %538 {strides = array<i32>} : memref<2x128xf32, #tpu.memory_space<vmem>>, vector<2x128xf32>,
    %c0_132 = arith.constant 0 : index
    %c0_133 = arith.constant 0 : index
    %c0_134 = arith.constant 0 : index
    %540 = vector.load %arg13[%c0_132, %c0_133, %c0_134] : memref<2x2x128xf32, #tpu.memory_space<vmem>>, vector<1x2x128xf32>
    %541 = vector.shape_cast %540 : vector<1x2x128xf32> to vector<2x128xf32>
    %542 = vector.shape_cast %500 : vector<2x128xf32> to vector<1x2x128xf32>
    tpu.vector_store %arg13[%c0_132, %c0_133, %c0_134], %542 {strides = array<i32>} : memref<2x2x128xf32, #tpu.memory_space<vmem>>, vector<1x2x128xf32>,
    %c1_135 = arith.constant 1 : index
    %c0_136 = arith.constant 0 : index
    %c0_137 = arith.constant 0 : index
    %543 = vector.load %arg13[%c1_135, %c0_136, %c0_137] : memref<2x2x128xf32, #tpu.memory_space<vmem>>, vector<1x2x128xf32>
    %544 = vector.shape_cast %543 : vector<1x2x128xf32> to vector<2x128xf32>
    %545 = vector.shape_cast %530 : vector<2x128xf32> to vector<1x2x128xf32>
    tpu.vector_store %arg13[%c1_135, %c0_136, %c0_137], %545 {strides = array<i32>} : memref<2x2x128xf32, #tpu.memory_space<vmem>>, vector<1x2x128xf32>,
    %c0_138 = arith.constant 0 : index
    %c0_139 = arith.constant 0 : index
    %c0_140 = arith.constant 0 : index
    %546 = vector.load %arg14[%c0_138, %c0_139, %c0_140] : memref<2x2x128xf32, #tpu.memory_space<vmem>>, vector<1x2x128xf32>
    %547 = vector.shape_cast %546 : vector<1x2x128xf32> to vector<2x128xf32>
    %548 = vector.shape_cast %498 : vector<2x128xf32> to vector<1x2x128xf32>
    tpu.vector_store %arg14[%c0_138, %c0_139, %c0_140], %548 {strides = array<i32>} : memref<2x2x128xf32, #tpu.memory_space<vmem>>, vector<1x2x128xf32>,
    %c1_141 = arith.constant 1 : index
    %c0_142 = arith.constant 0 : index
    %c0_143 = arith.constant 0 : index
    %549 = vector.load %arg14[%c1_141, %c0_142, %c0_143] : memref<2x2x128xf32, #tpu.memory_space<vmem>>, vector<1x2x128xf32>
    %550 = vector.shape_cast %549 : vector<1x2x128xf32> to vector<2x128xf32>
    %551 = vector.shape_cast %528 : vector<2x128xf32> to vector<1x2x128xf32>
    tpu.vector_store %arg14[%c1_141, %c0_142, %c0_143], %551 {strides = array<i32>} : memref<2x2x128xf32, #tpu.memory_space<vmem>>, vector<1x2x128xf32>,
    return
  }
}

</mosaic_0001>

<llo_original>
// kernel: tpu_custom_call.1
$region0: #{tpu_custom_call.1}
  #allocation0 [shape = 'u32[]', space=smem, size = 0x4, offset = 0x4, fixed_abs, tag = 'smem constant byte address 0x4 - core index']
  #allocation1 [shape = 'u32[144,128]{1,0:T(1,128)}', space=vmem, size = 0x12000, scoped, tag = 'internal scratch']
  #allocation2 [shape = 'bf16[128,1024]{1,0:T(16,128)(2,1)}', space=vmem, size = 0x40000, scoped, tag = 'scratch operand']
  #allocation3 [shape = 'bf16[128,512]{1,0:T(16,128)(2,1)}', space=vmem, size = 0x20000, scoped, tag = 'scratch operand']
  #allocation4 [shape = 's32[2]{0}', space=sflag, size = 0x8, scoped, tag = 'scratch operand']
  #allocation14 [shape = 's32[]', space=sflag, size = 0x4, offset = 0, fixed_abs, tag = 'sflag constant byte address 0x0 - dummy sync flag']
  #allocation16 [shape = 's32[]', space=sflag, size = 0x4, offset = 0, fixed_abs, tag = 'sflag constant byte address 0x0 - dummy sync flag']
  %s0 = inlined_call_operand.vmem [shape: f32[16,6], index: 0, kind: input, shape index: {}]
  %s1 = inlined_call_operand.vmem [shape: f32[2,2,128], index: 1, kind: input, shape index: {}]
  %s2 = inlined_call_operand.vmem [shape: f32[2,2,128], index: 2, kind: input, shape index: {}]
  %s3 = inlined_call_operand.vmem [shape: bf16[6,32], index: 3, kind: input, shape index: {}]
  %s4 = inlined_call_operand.vmem [shape: f32[1,32], index: 4, kind: input, shape index: {}]
  %s5 = inlined_call_operand.hbm [shape: bf16[32,512], index: 5, kind: input, shape index: {}]
  %s6 = inlined_call_operand.vmem [shape: f32[1,512], index: 6, kind: input, shape index: {}]
  %s7 = inlined_call_operand.hbm [shape: bf16[128,1024], index: 7, kind: input, shape index: {}]
  %s8 = inlined_call_operand.hbm [shape: bf16[128,512], index: 8, kind: input, shape index: {}]
  %s9 = inlined_call_operand.vmem [shape: f32[1,512], index: 9, kind: input, shape index: {}]
  %s10 = inlined_call_operand.hbm [shape: bf16[128,128], index: 10, kind: input, shape index: {}]
  %s11 = inlined_call_operand.vmem [shape: f32[1,128], index: 11, kind: input, shape index: {}]
  %s12 = inlined_call_operand.hbm [shape: f32[2,128], index: 12, kind: output, shape index: {0}]
  %s13 = inlined_call_operand.hbm [shape: f32[2,2,128], index: 13, kind: output, shape index: {1}]
  %s14 = inlined_call_operand.hbm [shape: f32[2,2,128], index: 14, kind: output, shape index: {2}]
  %15 = xla_tuple %s12, %s13, %s14
  %s16 = sld [smem:[#allocation0]]
  $region74: #{tpu_custom_call.1} parent=0
    _
  %s18 = ssub.s32 1, %s16
  %s19 = scalar_select 0, %s18, %s16
  $region1: #{tpu_custom_call.1} parent=0
    #allocation5 [shape = 'u8[32768]{0}', space=vmem, size = 0x8000, scoped, tag = 'input window, operand 5, single buffered']
    #allocation6 [shape = 's32[1]{0}', space=sflag, size = 0x4, scoped, tag = 'scoped memory for tpu_custom_call.1']
    #allocation7 [shape = 's32[1]{0}', space=sflag, size = 0x4, scoped, tag = 'scoped memory for tpu_custom_call.1']
    #allocation8 [shape = 'u8[32768]{0}', space=vmem, size = 0x8000, scoped, tag = 'input window, operand 10, single buffered']
    #allocation9 [shape = 's32[1]{0}', space=sflag, size = 0x4, scoped, tag = 'scoped memory for tpu_custom_call.1']
    #allocation10 [shape = 'u8[1024]{0}', space=vmem, size = 0x400, scoped, tag = 'output window, operand 0, single buffered']
    #allocation11 [shape = 'u8[2048]{0}', space=vmem, size = 0x800, scoped, tag = 'output window, operand 1, single buffered']
    #allocation12 [shape = 's32[1]{0}', space=sflag, size = 0x4, scoped, tag = 'scoped memory for tpu_custom_call.1']
    #allocation13 [shape = 'u8[2048]{0}', space=vmem, size = 0x800, scoped, tag = 'output window, operand 2, single buffered']
    #allocation15 [shape = 'u32[9]{0}', space=smem, size = 0x24, scoped, tag = 'DMA stride descriptor']
    #allocation17 [shape = 'u32[9]{0}', space=smem, size = 0x24, scoped, tag = 'DMA stride descriptor']
    %20 = vsyncpa [#allocation6], 0
    %21 = vsyncpa [#allocation9], 0
    %22 = vsyncpa [#allocation7], 0
    %23 = vsyncpa [#allocation12], 0
    // Predicated region
    $region2: #{tpu_custom_call.1} parent=1 // pred_check
      _
    $region3: #{tpu_custom_call.1} parent=1 // pred_check_branch
      %25 = sbr.rel (0) target = $region5
    $region4: #{tpu_custom_call.1} parent=1 // pred_region
      _
    $region5: #{tpu_custom_call.1} parent=1 // pred_fallthru
      _
    // Predicated region
    $region6: #{tpu_custom_call.1} parent=1 // pred_check
      _
    $region7: #{tpu_custom_call.1} parent=1 // pred_check_branch
      %27 = sbr.rel (0) target = $region9
    $region8: #{tpu_custom_call.1} parent=1 // pred_region
      _
    $region9: #{tpu_custom_call.1} parent=1 // pred_fallthru
      _
    // Predicated region
    $region10: #{tpu_custom_call.1} parent=1 // pred_check
      _
    $region11: #{tpu_custom_call.1} parent=1 // pred_check_branch
      %29 = sbr.rel (0) target = $region13
    $region12: #{tpu_custom_call.1} parent=1 // pred_region
      _
    $region13: #{tpu_custom_call.1} parent=1 // pred_fallthru
      _
    // Predicated region
    $region14: #{tpu_custom_call.1} parent=1 // pred_check
      _
    $region15: #{tpu_custom_call.1} parent=1 // pred_check_branch
      %31 = sbr.rel (0) target = $region17
    $region16: #{tpu_custom_call.1} parent=1 // pred_region
      _
    $region17: #{tpu_custom_call.1} parent=1 // pred_fallthru
      _
    // Predicated region
    $region18: #{tpu_custom_call.1} parent=1 // pred_check
      _
    $region19: #{tpu_custom_call.1} parent=1 // pred_check_branch
      %33 = sbr.rel (0) target = $region21
    $region20: #{tpu_custom_call.1} parent=1 // pred_region
      _
    $region21: #{tpu_custom_call.1} parent=1 // pred_fallthru
      _
    // Predicated region
    $region22: #{tpu_custom_call.1} parent=1 // pred_check
      _
    $region23: #{tpu_custom_call.1} parent=1 // pred_check_branch
      %35 = sbr.rel (0) target = $region25
    $region24: #{tpu_custom_call.1} parent=1 // pred_region
      %s37 = ssub.s32 1024, 1024
      %38 = vsyncadd [#allocation6], %s37
      %s39 = sshll.u32 [#allocation5], 4
      %s40 = int_to_ptr.vmem [resolvable:$true] %s39
      %45 = dma.hbm_to_vmem [thread:$0]  %s5, 1024, %s40, [#allocation6], 256, 256, 16
    $region25: #{tpu_custom_call.1} parent=1 // pred_fallthru
      _
    // Predicated region
    $region26: #{tpu_custom_call.1} parent=1 // pred_check
      _
    $region27: #{tpu_custom_call.1} parent=1 // pred_check_branch
      %47 = sbr.rel (0) target = $region29
    $region28: #{tpu_custom_call.1} parent=1 // pred_region
      _
    $region29: #{tpu_custom_call.1} parent=1 // pred_fallthru
      _
    // Predicated region
    $region30: #{tpu_custom_call.1} parent=1 // pred_check
      _
    $region31: #{tpu_custom_call.1} parent=1 // pred_check_branch
      %49 = sbr.rel (0) target = $region33
    $region32: #{tpu_custom_call.1} parent=1 // pred_region
      _
    $region33: #{tpu_custom_call.1} parent=1 // pred_fallthru
      _
    // Predicated region
    $region34: #{tpu_custom_call.1} parent=1 // pred_check
      _
    $region35: #{tpu_custom_call.1} parent=1 // pred_check_branch
      %51 = sbr.rel (0) target = $region37
    $region36: #{tpu_custom_call.1} parent=1 // pred_region
      %s53 = ssub.s32 1024, 1024
      %54 = vsyncadd [#allocation9], %s53
      %s55 = sshll.u32 [#allocation8], 4
      %s56 = int_to_ptr.vmem [resolvable:$true] %s55
      %61 = dma.hbm_to_vmem [thread:$0]  %s10, 1024, %s56, [#allocation9], 64, 64, 4
    $region37: #{tpu_custom_call.1} parent=1 // pred_fallthru
      _
    // Predicated region
    $region38: #{tpu_custom_call.1} parent=1 // pred_check
      _
    $region39: #{tpu_custom_call.1} parent=1 // pred_check_branch
      %63 = sbr.rel (0) target = $region41
    $region40: #{tpu_custom_call.1} parent=1 // pred_region
      _
    $region41: #{tpu_custom_call.1} parent=1 // pred_fallthru
      _
    // Predicated region
    $region42: #{tpu_custom_call.1} parent=1 // pred_check
      _
    $region43: #{tpu_custom_call.1} parent=1 // pred_check_branch
      %65 = sbr.rel (0) target = $region45
    $region44: #{tpu_custom_call.1} parent=1 // pred_region
      %66 = dma.done [#allocation6], 1024
    $region45: #{tpu_custom_call.1} parent=1 // pred_fallthru
      _
    // Predicated region
    $region46: #{tpu_custom_call.1} parent=1 // pred_check
      _
    $region47: #{tpu_custom_call.1} parent=1 // pred_check_branch
      %68 = sbr.rel (0) target = $region49
    $region48: #{tpu_custom_call.1} parent=1 // pred_region
      %69 = dma.done [#allocation9], 1024
    $region49: #{tpu_custom_call.1} parent=1 // pred_fallthru
      _
    %s72 = sshll.u32 1, 14
    %s73 = sxor.u32 4294967295, %s72
    %s75 = sld [smem:[#allocation0]]
    %s76 = sadd.s32 2, %s75
    %s78 = sshll.u32 7, 26
    %s79 = sxor.u32 4294967295, %s78
    %s80 = sand.u32 0, %s79
    %s81 = sshll.u32 %s76, 26
    %s82 = sor.u32 %s80, %s81
    %s83 = sshll.u32 [#allocation2], 4
    %s84 = int_to_ptr.vmem [resolvable:$true] %s83
    %87 = sst [smem:[#allocation15]] 1024
    %s88 = scalar_lea.smem [#allocation15], 1
    %89 = sst [smem:[%s88]] 1024
    %s90 = scalar_lea.smem [#allocation15], 2
    %91 = sst [smem:[%s90]] 8
    %s92 = scalar_lea.smem [#allocation15], 3
    %93 = sst [smem:[%s92]] 64
    %s94 = scalar_lea.smem [#allocation15], 4
    %95 = sst [smem:[%s94]] 128
    %s96 = scalar_lea.smem [#allocation15], 5
    %97 = sst [smem:[%s96]] 2
    %s98 = scalar_lea.smem [#allocation15], 6
    %99 = sst [smem:[%s98]] 512
    %s100 = scalar_lea.smem [#allocation15], 7
    %101 = sst [smem:[%s100]] 64
    %s102 = scalar_lea.smem [#allocation15], 8
    %103 = sst [smem:[%s102]] 4
    %105 = dma.general %s7, 8192, %s84, [#allocation4], [#allocation14], [#allocation15], %s82, 0
    %s106 = scalar_lea.sflag [#allocation4], 1
    %s108 = sshll.u32 1, 14
    %s109 = sxor.u32 4294967295, %s108
    %s111 = sadd.s32 2, %s75
    %s113 = sshll.u32 7, 26
    %s114 = sxor.u32 4294967295, %s113
    %s115 = sand.u32 0, %s114
    %s116 = sshll.u32 %s111, 26
    %s117 = sor.u32 %s115, %s116
    %s118 = sshll.u32 [#allocation3], 4
    %s119 = int_to_ptr.vmem [resolvable:$true] %s118
    %122 = sst [smem:[#allocation17]] 512
    %s123 = scalar_lea.smem [#allocation17], 1
    %124 = sst [smem:[%s123]] 512
    %s125 = scalar_lea.smem [#allocation17], 2
    %126 = sst [smem:[%s125]] 4
    %s127 = scalar_lea.smem [#allocation17], 3
    %128 = sst [smem:[%s127]] 64
    %s129 = scalar_lea.smem [#allocation17], 4
    %130 = sst [smem:[%s129]] 128
    %s131 = scalar_lea.smem [#allocation17], 5
    %132 = sst [smem:[%s131]] 2
    %s133 = scalar_lea.smem [#allocation17], 6
    %134 = sst [smem:[%s133]] 256
    %s135 = scalar_lea.smem [#allocation17], 7
    %136 = sst [smem:[%s135]] 64
    %s137 = scalar_lea.smem [#allocation17], 8
    %138 = sst [smem:[%s137]] 4
    %140 = dma.general %s8, 4096, %s119, %s106, [#allocation16], [#allocation17], %s117, 0
    %v141 = vld [vmem:[%s0] sm:$0xff]
    %v142 = vld [vmem:[%s0 + $0x8] sm:$0xff]
    %v143 = vpack.c.bf16 %v142, %v141
    %v144 = vld [vmem:[%s3] sm:$0x7]
    %v145 = vld [vmem:[%s4] sm:$0x1]
    %v147 = vlaneseq
    %v148 = vshrl.u32 %v147, 7
    %v149 = vsub.s32 0, %v148
    %v150 = vrot.slane %v145, %v149
    %vm152 = vcmask 48128
    %v154 = vsel %vm152, %v143, 0
    %vm156 = vcmask 1042432
    %v158 = vsel %vm156, %v144, 0
    %160 = vmatprep.subr.bf16.mxu0 0
    %161 = vmatpush1.bf16.msra.mxu0 %v158
    %162 = vmatprep.subr.bf16.mxu0 0
    %163 = vmatpush1.bf16.msra.mxu0 0
    %164 = vmatprep.subr.bf16.mxu0 0
    %165 = vmatpush1.bf16.msra.mxu0 0
    %166 = vmatprep.subr.bf16.mxu0 0
    %167 = vmatpush1.bf16.msra.mxu0 0
    %168 = vmatprep.subr.bf16.mxu0 0
    %169 = vmatpush1.bf16.msra.mxu0 0
    %170 = vmatprep.subr.bf16.mxu0 0
    %171 = vmatpush1.bf16.msra.mxu0 0
    %172 = vmatprep.subr.bf16.mxu0 0
    %173 = vmatpush1.bf16.msra.mxu0 0
    %174 = vmatprep.subr.bf16.mxu0 0
    %175 = vmatpush1.bf16.msra.mxu0 0
    %176 = vmatprep.subr.bf16.mxu0 0
    %177 = vmatpush1.bf16.msra.mxu0 0
    %178 = vmatprep.subr.bf16.mxu0 0
    %179 = vmatpush1.bf16.msra.mxu0 0
    %180 = vmatprep.subr.bf16.mxu0 0
    %181 = vmatpush1.bf16.msra.mxu0 0
    %182 = vmatprep.subr.bf16.mxu0 0
    %183 = vmatpush1.bf16.msra.mxu0 0
    %184 = vmatprep.subr.bf16.mxu0 0
    %185 = vmatpush1.bf16.msra.mxu0 0
    %186 = vmatprep.subr.bf16.mxu0 0
    %187 = vmatpush1.bf16.msra.mxu0 0
    %188 = vmatprep.subr.bf16.mxu0 0
    %189 = vmatpush1.bf16.msra.mxu0 0
    %190 = vmatprep.subr.bf16.mxu0 0
    %191 = vmatpush1.bf16.msra.mxu0 0
    %192 = vmatprep.mubr.bf16.mxu0 0
    %193 = vmatmul.mubr.bf16.gmra.mrb[0].mxu0 %v154
    %v194 = vpop.f32.mrb[0].mxu0
    %v195 = vadd.f32 %v150, %v194
    %v196 = vpop.f32.mrb[0].mxu0
    %v197 = vpop.f32.mrb[0].mxu0
    %v198 = vadd.f32 %v150, %v197
    %v199 = vpop.f32.mrb[0].mxu0
    %200 = vdwg.mxu0
    %v201 = vmax.f32 %v195, 0.0
    %v202 = vmax.f32 %v198, 0.0
    %v203 = vpack.c.bf16 %v202, %v201
    %v204 = vld [vmem:[#allocation5] sm:$0xff]
    %v205 = vld [vmem:[#allocation5 + $0x8] sm:$0xff]
    %v206 = vld [vmem:[#allocation5 + $0x10] sm:$0xff]
    %v207 = vld [vmem:[#allocation5 + $0x18] sm:$0xff]
    %v208 = vld [vmem:[#allocation5 + $0x20] sm:$0xff]
    %v209 = vld [vmem:[#allocation5 + $0x28] sm:$0xff]
    %v210 = vld [vmem:[#allocation5 + $0x30] sm:$0xff]
    %v211 = vld [vmem:[#allocation5 + $0x38] sm:$0xff]
    %v212 = vld [vmem:[%s6] sm:$0xf]
    %v214 = vlaneseq
    %v215 = vshrl.u32 %v214, 7
    %v216 = vsub.s32 0, %v215
    %v217 = vrot.slane %v212, %v216
    %v218 = vlaneseq
    %v219 = vshrl.u32 %v218, 7
    %v220 = vsub.s32 1, %v219
    %v221 = vrot.slane %v212, %v220
    %v222 = vlaneseq
    %v223 = vshrl.u32 %v222, 7
    %v224 = vsub.s32 2, %v223
    %v225 = vrot.slane %v212, %v224
    %v226 = vlaneseq
    %v227 = vshrl.u32 %v226, 7
    %v228 = vsub.s32 3, %v227
    %v229 = vrot.slane %v212, %v228
    %v242 = vunpack.c.l.b16 %v204
    %v243 = vunpack.c.h.b16 %v204
    %v244 = vunpack.c.l.b16 %v205
    %v245 = vunpack.c.h.b16 %v205
    %v246 = vunpack.c.l.b16 %v206
    %v247 = vunpack.c.h.b16 %v206
    %v248 = vunpack.c.l.b16 %v207
    %v249 = vunpack.c.h.b16 %v207
    %v250 = vunpack.c.l.b16 %v208
    %v251 = vunpack.c.h.b16 %v208
    %v252 = vunpack.c.l.b16 %v209
    %v253 = vunpack.c.h.b16 %v209
    %v254 = vunpack.c.l.b16 %v210
    %v255 = vunpack.c.h.b16 %v210
    %v256 = vunpack.c.l.b16 %v211
    %v257 = vunpack.c.h.b16 %v211
    %v258 = vpack.c.b16 %v246, %v242
    %v259 = vpack.c.b16 %v247, %v243
    %v260 = vpack.c.b16 %v248, %v244
    %v261 = vpack.c.b16 %v249, %v245
    %v262 = vpack.c.b16 %v254, %v250
    %v263 = vpack.c.b16 %v255, %v251
    %v264 = vpack.c.b16 %v256, %v252
    %v265 = vpack.c.b16 %v257, %v253
    %vm274 = vcmask 261120
    %v276 = vsel %vm274, %v203, 0
    %278 = vmatprep.subr.bf16.mxu0 %v259
    %279 = vmatpush1.bf16.msra.mxu0 %v258
    %280 = vmatprep.subr.bf16.mxu0 %v263
    %281 = vmatpush1.bf16.msra.mxu0 %v262
    %282 = vmatprep.subr.bf16.mxu0 0
    %283 = vmatpush1.bf16.msra.mxu0 0
    %284 = vmatprep.subr.bf16.mxu0 0
    %285 = vmatpush1.bf16.msra.mxu0 0
    %286 = vmatprep.subr.bf16.mxu0 0
    %287 = vmatpush1.bf16.msra.mxu0 0
    %288 = vmatprep.subr.bf16.mxu0 0
    %289 = vmatpush1.bf16.msra.mxu0 0
    %290 = vmatprep.subr.bf16.mxu0 0
    %291 = vmatpush1.bf16.msra.mxu0 0
    %292 = vmatprep.subr.bf16.mxu0 0
    %293 = vmatpush1.bf16.msra.mxu0 0
    %294 = vmatprep.subr.bf16.mxu0 0
    %295 = vmatpush1.bf16.msra.mxu0 0
    %296 = vmatprep.subr.bf16.mxu0 0
    %297 = vmatpush1.bf16.msra.mxu0 0
    %298 = vmatprep.subr.bf16.mxu0 0
    %299 = vmatpush1.bf16.msra.mxu0 0
    %300 = vmatprep.subr.bf16.mxu0 0
    %301 = vmatpush1.bf16.msra.mxu0 0
    %302 = vmatprep.subr.bf16.mxu0 0
    %303 = vmatpush1.bf16.msra.mxu0 0
    %304 = vmatprep.subr.bf16.mxu0 0
    %305 = vmatpush1.bf16.msra.mxu0 0
    %306 = vmatprep.subr.bf16.mxu0 0
    %307 = vmatpush1.bf16.msra.mxu0 0
    %308 = vmatprep.subr.bf16.mxu0 0
    %309 = vmatpush1.bf16.msra.mxu0 0
    %310 = vmatprep.mubr.bf16.mxu0 0
    %311 = vmatmul.mubr.bf16.gmra.mrb[0].mxu0 %v276
    %v312 = vpop.f32.mrb[0].mxu0
    %v313 = vadd.f32 %v217, %v312
    %v314 = vpop.f32.mrb[0].mxu0
    %v315 = vadd.f32 %v221, %v314
    %v316 = vpop.f32.mrb[0].mxu0
    %v317 = vadd.f32 %v217, %v316
    %v318 = vpop.f32.mrb[0].mxu0
    %v319 = vadd.f32 %v221, %v318
    %320 = vdwg.mxu0
    %321 = vmatprep.subr.bf16.mxu0 %v261
    %322 = vmatpush1.bf16.msra.mxu0 %v260
    %323 = vmatprep.subr.bf16.mxu0 %v265
    %324 = vmatpush1.bf16.msra.mxu0 %v264
    %325 = vmatprep.subr.bf16.mxu0 0
    %326 = vmatpush1.bf16.msra.mxu0 0
    %327 = vmatprep.subr.bf16.mxu0 0
    %328 = vmatpush1.bf16.msra.mxu0 0
    %329 = vmatprep.subr.bf16.mxu0 0
    %330 = vmatpush1.bf16.msra.mxu0 0
    %331 = vmatprep.subr.bf16.mxu0 0
    %332 = vmatpush1.bf16.msra.mxu0 0
    %333 = vmatprep.subr.bf16.mxu0 0
    %334 = vmatpush1.bf16.msra.mxu0 0
    %335 = vmatprep.subr.bf16.mxu0 0
    %336 = vmatpush1.bf16.msra.mxu0 0
    %337 = vmatprep.subr.bf16.mxu0 0
    %338 = vmatpush1.bf16.msra.mxu0 0
    %339 = vmatprep.subr.bf16.mxu0 0
    %340 = vmatpush1.bf16.msra.mxu0 0
    %341 = vmatprep.subr.bf16.mxu0 0
    %342 = vmatpush1.bf16.msra.mxu0 0
    %343 = vmatprep.subr.bf16.mxu0 0
    %344 = vmatpush1.bf16.msra.mxu0 0
    %345 = vmatprep.subr.bf16.mxu0 0
    %346 = vmatpush1.bf16.msra.mxu0 0
    %347 = vmatprep.subr.bf16.mxu0 0
    %348 = vmatpush1.bf16.msra.mxu0 0
    %349 = vmatprep.subr.bf16.mxu0 0
    %350 = vmatpush1.bf16.msra.mxu0 0
    %351 = vmatprep.subr.bf16.mxu0 0
    %352 = vmatpush1.bf16.msra.mxu0 0
    %353 = vmatprep.mubr.bf16.mxu0 0
    %354 = vmatmul.mubr.bf16.gmra.mrb[0].mxu0 %v276
    %v355 = vpop.f32.mrb[0].mxu0
    %v356 = vadd.f32 %v225, %v355
    %v357 = vpop.f32.mrb[0].mxu0
    %v358 = vadd.f32 %v229, %v357
    %v359 = vpop.f32.mrb[0].mxu0
    %v360 = vadd.f32 %v225, %v359
    %v361 = vpop.f32.mrb[0].mxu0
    %v362 = vadd.f32 %v229, %v361
    %363 = vdwg.mxu0
    %v364 = vld [vmem:[%s9] sm:$0xf]
    %v366 = vlaneseq
    %v367 = vshrl.u32 %v366, 7
    %v368 = vsub.s32 0, %v367
    %v369 = vrot.slane %v364, %v368
    %v370 = vlaneseq
    %v371 = vshrl.u32 %v370, 7
    %v372 = vsub.s32 1, %v371
    %v373 = vrot.slane %v364, %v372
    %v374 = vlaneseq
    %v375 = vshrl.u32 %v374, 7
    %v376 = vsub.s32 2, %v375
    %v377 = vrot.slane %v364, %v376
    %v378 = vlaneseq
    %v379 = vshrl.u32 %v378, 7
    %v380 = vsub.s32 3, %v379
    %v381 = vrot.slane %v364, %v380
    %s386 = smul.u32 4, 16
    %s387 = smul.u32 %s386, 8
    %s388 = sshll.u32 %s387, 4
    %389 = dma.done [#allocation4], %s388
    %s390 = smul.u32 %s386, 4
    %s391 = sshll.u32 %s390, 4
    %392 = dma.done %s106, %s391
    %v393 = vld [vmem:[%s1] sm:$0x3]
    %v394 = vld [vmem:[%s2] sm:$0x3]
    %s395 = scalar_lea.vmem %s1, 2
    %v396 = vld [vmem:[%s395] sm:$0x3]
    %s397 = scalar_lea.vmem %s2, 2
    %v398 = vld [vmem:[%s397] sm:$0x3]
    %v399 = vpack.c.bf16 %v393, %v393
    %v400 = vld [vmem:[#allocation2] sm:$0xff]
    %v401 = vld [vmem:[#allocation2 + $0x8] sm:$0xff]
    %v402 = vld [vmem:[#allocation2 + $0x10] sm:$0xff]
    %v403 = vld [vmem:[#allocation2 + $0x18] sm:$0xff]
    %v404 = vld [vmem:[#allocation2 + $0x40] sm:$0xff]
    %v405 = vld [vmem:[#allocation2 + $0x48] sm:$0xff]
    %v406 = vld [vmem:[#allocation2 + $0x50] sm:$0xff]
    %v407 = vld [vmem:[#allocation2 + $0x58] sm:$0xff]
    %v408 = vld [vmem:[#allocation2 + $0x80] sm:$0xff]
    %v409 = vld [vmem:[#allocation2 + $0x88] sm:$0xff]
    %v410 = vld [vmem:[#allocation2 + $0x90] sm:$0xff]
    %v411 = vld [vmem:[#allocation2 + $0x98] sm:$0xff]
    %v412 = vld [vmem:[#allocation2 + $0xc0] sm:$0xff]
    %v413 = vld [vmem:[#allocation2 + $0xc8] sm:$0xff]
    %v414 = vld [vmem:[#allocation2 + $0xd0] sm:$0xff]
    %v415 = vld [vmem:[#allocation2 + $0xd8] sm:$0xff]
    %v416 = vld [vmem:[#allocation2 + $0x100] sm:$0xff]
    %v417 = vld [vmem:[#allocation2 + $0x108] sm:$0xff]
    %v418 = vld [vmem:[#allocation2 + $0x110] sm:$0xff]
    %v419 = vld [vmem:[#allocation2 + $0x118] sm:$0xff]
    %v420 = vld [vmem:[#allocation2 + $0x140] sm:$0xff]
    %v421 = vld [vmem:[#allocation2 + $0x148] sm:$0xff]
    %v422 = vld [vmem:[#allocation2 + $0x150] sm:$0xff]
    %v423 = vld [vmem:[#allocation2 + $0x158] sm:$0xff]
    %v424 = vld [vmem:[#allocation2 + $0x180] sm:$0xff]
    %v425 = vld [vmem:[#allocation2 + $0x188] sm:$0xff]
    %v426 = vld [vmem:[#allocation2 + $0x190] sm:$0xff]
    %v427 = vld [vmem:[#allocation2 + $0x198] sm:$0xff]
    %v428 = vld [vmem:[#allocation2 + $0x1c0] sm:$0xff]
    %v429 = vld [vmem:[#allocation2 + $0x1c8] sm:$0xff]
    %v430 = vld [vmem:[#allocation2 + $0x1d0] sm:$0xff]
    %v431 = vld [vmem:[#allocation2 + $0x1d8] sm:$0xff]
    %432 = vmatprep.subr.bf16.mxu0 %v401
    %433 = vmatpush1.bf16.msra.mxu0 %v400
    %434 = vmatprep.subr.bf16.mxu0 %v405
    %435 = vmatpush1.bf16.msra.mxu0 %v404
    %436 = vmatprep.subr.bf16.mxu0 %v409
    %437 = vmatpush1.bf16.msra.mxu0 %v408
    %438 = vmatprep.subr.bf16.mxu0 %v413
    %439 = vmatpush1.bf16.msra.mxu0 %v412
    %440 = vmatprep.subr.bf16.mxu0 %v417
    %441 = vmatpush1.bf16.msra.mxu0 %v416
    %442 = vmatprep.subr.bf16.mxu0 %v421
    %443 = vmatpush1.bf16.msra.mxu0 %v420
    %444 = vmatprep.subr.bf16.mxu0 %v425
    %445 = vmatpush1.bf16.msra.mxu0 %v424
    %446 = vmatprep.subr.bf16.mxu0 %v429
    %447 = vmatpush1.bf16.msra.mxu0 %v428
    %448 = vmatprep.subr.bf16.mxu0 0
    %449 = vmatpush1.bf16.msra.mxu0 0
    %450 = vmatprep.subr.bf16.mxu0 0
    %451 = vmatpush1.bf16.msra.mxu0 0
    %452 = vmatprep.subr.bf16.mxu0 0
    %453 = vmatpush1.bf16.msra.mxu0 0
    %454 = vmatprep.subr.bf16.mxu0 0
    %455 = vmatpush1.bf16.msra.mxu0 0
    %456 = vmatprep.subr.bf16.mxu0 0
    %457 = vmatpush1.bf16.msra.mxu0 0
    %458 = vmatprep.subr.bf16.mxu0 0
    %459 = vmatpush1.bf16.msra.mxu0 0
    %460 = vmatprep.subr.bf16.mxu0 0
    %461 = vmatpush1.bf16.msra.mxu0 0
    %462 = vmatprep.subr.bf16.mxu0 0
    %463 = vmatpush1.bf16.msra.mxu0 0
    %464 = vmatprep.mubr.bf16.mxu0 0
    %465 = vmatmul.mubr.bf16.gmra.mrb[0].mxu0 %v399
    %v466 = vpop.f32.mrb[0].mxu0
    %v467 = vadd.f32 0.0, %v466
    %v468 = vpop.f32.mrb[0].mxu0
    %v469 = vadd.f32 0.0, %v468
    %v470 = vpop.f32.mrb[0].mxu0
    %v471 = vpop.f32.mrb[0].mxu0
    %472 = vdwg.mxu0
    %473 = vmatprep.subr.bf16.mxu0 %v403
    %474 = vmatpush1.bf16.msra.mxu0 %v402
    %475 = vmatprep.subr.bf16.mxu0 %v407
    %476 = vmatpush1.bf16.msra.mxu0 %v406
    %477 = vmatprep.subr.bf16.mxu0 %v411
    %478 = vmatpush1.bf16.msra.mxu0 %v410
    %479 = vmatprep.subr.bf16.mxu0 %v415
    %480 = vmatpush1.bf16.msra.mxu0 %v414
    %481 = vmatprep.subr.bf16.mxu0 %v419
    %482 = vmatpush1.bf16.msra.mxu0 %v418
    %483 = vmatprep.subr.bf16.mxu0 %v423
    %484 = vmatpush1.bf16.msra.mxu0 %v422
    %485 = vmatprep.subr.bf16.mxu0 %v427
    %486 = vmatpush1.bf16.msra.mxu0 %v426
    %487 = vmatprep.subr.bf16.mxu0 %v431
    %488 = vmatpush1.bf16.msra.mxu0 %v430
    %489 = vmatprep.subr.bf16.mxu0 0
    %490 = vmatpush1.bf16.msra.mxu0 0
    %491 = vmatprep.subr.bf16.mxu0 0
    %492 = vmatpush1.bf16.msra.mxu0 0
    %493 = vmatprep.subr.bf16.mxu0 0
    %494 = vmatpush1.bf16.msra.mxu0 0
    %495 = vmatprep.subr.bf16.mxu0 0
    %496 = vmatpush1.bf16.msra.mxu0 0
    %497 = vmatprep.subr.bf16.mxu0 0
    %498 = vmatpush1.bf16.msra.mxu0 0
    %499 = vmatprep.subr.bf16.mxu0 0
    %500 = vmatpush1.bf16.msra.mxu0 0
    %501 = vmatprep.subr.bf16.mxu0 0
    %502 = vmatpush1.bf16.msra.mxu0 0
    %503 = vmatprep.subr.bf16.mxu0 0
    %504 = vmatpush1.bf16.msra.mxu0 0
    %505 = vmatprep.mubr.bf16.mxu0 0
    %506 = vmatmul.mubr.bf16.gmra.mrb[0].mxu0 %v399
    %v507 = vpop.f32.mrb[0].mxu0
    %v508 = vadd.f32 0.0, %v507
    %v509 = vpop.f32.mrb[0].mxu0
    %v510 = vadd.f32 0.0, %v509
    %v511 = vpop.f32.mrb[0].mxu0
    %v512 = vpop.f32.mrb[0].mxu0
    %513 = vdwg.mxu0
    %v514 = vpack.c.bf16 %v396, %v396
    %v515 = vld [vmem:[#allocation3] sm:$0xff]
    %v516 = vld [vmem:[#allocation3 + $0x8] sm:$0xff]
    %v517 = vld [vmem:[#allocation3 + $0x10] sm:$0xff]
    %v518 = vld [vmem:[#allocation3 + $0x18] sm:$0xff]
    %v519 = vld [vmem:[#allocation3 + $0x20] sm:$0xff]
    %v520 = vld [vmem:[#allocation3 + $0x28] sm:$0xff]
    %v521 = vld [vmem:[#allocation3 + $0x30] sm:$0xff]
    %v522 = vld [vmem:[#allocation3 + $0x38] sm:$0xff]
    %v523 = vld [vmem:[#allocation3 + $0x40] sm:$0xff]
    %v524 = vld [vmem:[#allocation3 + $0x48] sm:$0xff]
    %v525 = vld [vmem:[#allocation3 + $0x50] sm:$0xff]
    %v526 = vld [vmem:[#allocation3 + $0x58] sm:$0xff]
    %v527 = vld [vmem:[#allocation3 + $0x60] sm:$0xff]
    %v528 = vld [vmem:[#allocation3 + $0x68] sm:$0xff]
    %v529 = vld [vmem:[#allocation3 + $0x70] sm:$0xff]
    %v530 = vld [vmem:[#allocation3 + $0x78] sm:$0xff]
    %v531 = vld [vmem:[#allocation3 + $0x80] sm:$0xff]
    %v532 = vld [vmem:[#allocation3 + $0x88] sm:$0xff]
    %v533 = vld [vmem:[#allocation3 + $0x90] sm:$0xff]
    %v534 = vld [vmem:[#allocation3 + $0x98] sm:$0xff]
    %v535 = vld [vmem:[#allocation3 + $0xa0] sm:$0xff]
    %v536 = vld [vmem:[#allocation3 + $0xa8] sm:$0xff]
    %v537 = vld [vmem:[#allocation3 + $0xb0] sm:$0xff]
    %v538 = vld [vmem:[#allocation3 + $0xb8] sm:$0xff]
    %v539 = vld [vmem:[#allocation3 + $0xc0] sm:$0xff]
    %v540 = vld [vmem:[#allocation3 + $0xc8] sm:$0xff]
    %v541 = vld [vmem:[#allocation3 + $0xd0] sm:$0xff]
    %v542 = vld [vmem:[#allocation3 + $0xd8] sm:$0xff]
    %v543 = vld [vmem:[#allocation3 + $0xe0] sm:$0xff]
    %v544 = vld [vmem:[#allocation3 + $0xe8] sm:$0xff]
    %v545 = vld [vmem:[#allocation3 + $0xf0] sm:$0xff]
    %v546 = vld [vmem:[#allocation3 + $0xf8] sm:$0xff]
    %547 = vmatprep.subr.bf16.mxu0 %v516
    %548 = vmatpush1.bf16.msra.mxu0 %v515
    %549 = vmatprep.subr.bf16.mxu0 %v520
    %550 = vmatpush1.bf16.msra.mxu0 %v519
    %551 = vmatprep.subr.bf16.mxu0 %v524
    %552 = vmatpush1.bf16.msra.mxu0 %v523
    %553 = vmatprep.subr.bf16.mxu0 %v528
    %554 = vmatpush1.bf16.msra.mxu0 %v527
    %555 = vmatprep.subr.bf16.mxu0 %v532
    %556 = vmatpush1.bf16.msra.mxu0 %v531
    %557 = vmatprep.subr.bf16.mxu0 %v536
    %558 = vmatpush1.bf16.msra.mxu0 %v535
    %559 = vmatprep.subr.bf16.mxu0 %v540
    %560 = vmatpush1.bf16.msra.mxu0 %v539
    %561 = vmatprep.subr.bf16.mxu0 %v544
    %562 = vmatpush1.bf16.msra.mxu0 %v543
    %563 = vmatprep.subr.bf16.mxu0 0
    %564 = vmatpush1.bf16.msra.mxu0 0
    %565 = vmatprep.subr.bf16.mxu0 0
    %566 = vmatpush1.bf16.msra.mxu0 0
    %567 = vmatprep.subr.bf16.mxu0 0
    %568 = vmatpush1.bf16.msra.mxu0 0
    %569 = vmatprep.subr.bf16.mxu0 0
    %570 = vmatpush1.bf16.msra.mxu0 0
    %571 = vmatprep.subr.bf16.mxu0 0
    %572 = vmatpush1.bf16.msra.mxu0 0
    %573 = vmatprep.subr.bf16.mxu0 0
    %574 = vmatpush1.bf16.msra.mxu0 0
    %575 = vmatprep.subr.bf16.mxu0 0
    %576 = vmatpush1.bf16.msra.mxu0 0
    %577 = vmatprep.subr.bf16.mxu0 0
    %578 = vmatpush1.bf16.msra.mxu0 0
    %579 = vmatprep.mubr.bf16.mxu0 0
    %580 = vmatmul.mubr.bf16.gmra.mrb[0].mxu0 %v514
    %v581 = vpop.f32.mrb[0].mxu0
    %v582 = vadd.f32 0.0, %v581
    %v583 = vpop.f32.mrb[0].mxu0
    %v584 = vadd.f32 0.0, %v583
    %v585 = vpop.f32.mrb[0].mxu0
    %v586 = vpop.f32.mrb[0].mxu0
    %587 = vdwg.mxu0
    %588 = vmatprep.subr.bf16.mxu0 %v518
    %589 = vmatpush1.bf16.msra.mxu0 %v517
    %590 = vmatprep.subr.bf16.mxu0 %v522
    %591 = vmatpush1.bf16.msra.mxu0 %v521
    %592 = vmatprep.subr.bf16.mxu0 %v526
    %593 = vmatpush1.bf16.msra.mxu0 %v525
    %594 = vmatprep.subr.bf16.mxu0 %v530
    %595 = vmatpush1.bf16.msra.mxu0 %v529
    %596 = vmatprep.subr.bf16.mxu0 %v534
    %597 = vmatpush1.bf16.msra.mxu0 %v533
    %598 = vmatprep.subr.bf16.mxu0 %v538
    %599 = vmatpush1.bf16.msra.mxu0 %v537
    %600 = vmatprep.subr.bf16.mxu0 %v542
    %601 = vmatpush1.bf16.msra.mxu0 %v541
    %602 = vmatprep.subr.bf16.mxu0 %v546
    %603 = vmatpush1.bf16.msra.mxu0 %v545
    %604 = vmatprep.subr.bf16.mxu0 0
    %605 = vmatpush1.bf16.msra.mxu0 0
    %606 = vmatprep.subr.bf16.mxu0 0
    %607 = vmatpush1.bf16.msra.mxu0 0
    %608 = vmatprep.subr.bf16.mxu0 0
    %609 = vmatpush1.bf16.msra.mxu0 0
    %610 = vmatprep.subr.bf16.mxu0 0
    %611 = vmatpush1.bf16.msra.mxu0 0
    %612 = vmatprep.subr.bf16.mxu0 0
    %613 = vmatpush1.bf16.msra.mxu0 0
    %614 = vmatprep.subr.bf16.mxu0 0
    %615 = vmatpush1.bf16.msra.mxu0 0
    %616 = vmatprep.subr.bf16.mxu0 0
    %617 = vmatpush1.bf16.msra.mxu0 0
    %618 = vmatprep.subr.bf16.mxu0 0
    %619 = vmatpush1.bf16.msra.mxu0 0
    %620 = vmatprep.mubr.bf16.mxu0 0
    %621 = vmatmul.mubr.bf16.gmra.mrb[0].mxu0 %v514
    %v622 = vpop.f32.mrb[0].mxu0
    %v623 = vadd.f32 0.0, %v622
    %v624 = vpop.f32.mrb[0].mxu0
    %v625 = vadd.f32 0.0, %v624
    %v626 = vpop.f32.mrb[0].mxu0
    %v627 = vpop.f32.mrb[0].mxu0
    %628 = vdwg.mxu0
    %v629 = vadd.f32 %v313, %v467
    %v630 = vadd.f32 %v315, %v469
    %v631 = vadd.f32 %v356, %v508
    %v632 = vadd.f32 %v358, %v510
    %v633 = vxor.u32 %v629, 2147483648
    %v634 = vmul.f32 %v633, 1.442695
    %v635 = vpow.pop %v634
    %v636 = vadd.f32 %v635, 1.0
    %v637 = vrcp.pop %v636
    %v638 = vmul.f32 1.0, %v637
    %v639 = vxor.u32 %v630, 2147483648
    %v640 = vmul.f32 %v639, 1.442695
    %v641 = vpow.pop %v640
    %v642 = vadd.f32 %v641, 1.0
    %v643 = vrcp.pop %v642
    %v644 = vmul.f32 1.0, %v643
    %v645 = vtanh.pop %v631
    %v646 = vxor.u32 %v632, 2147483648
    %v647 = vmul.f32 %v646, 1.442695
    %v648 = vpow.pop %v647
    %v649 = vadd.f32 %v648, 1.0
    %v650 = vrcp.pop %v649
    %v651 = vmul.f32 1.0, %v650
    %v652 = vmul.f32 %v644, %v394
    %v653 = vmul.f32 %v638, %v645
    %v654 = vadd.f32 %v652, %v653
    %v655 = vtanh.pop %v654
    %v656 = vmul.f32 %v651, %v655
    %v657 = vpack.c.bf16 %v656, %v656
    %v658 = vld [vmem:[#allocation2] sm:$0xff]
    %v659 = vld [vmem:[#allocation2 + $0x8] sm:$0xff]
    %v660 = vld [vmem:[#allocation2 + $0x10] sm:$0xff]
    %v661 = vld [vmem:[#allocation2 + $0x18] sm:$0xff]
    %v662 = vld [vmem:[#allocation2 + $0x20] sm:$0xff]
    %v663 = vld [vmem:[#allocation2 + $0x28] sm:$0xff]
    %v664 = vld [vmem:[#allocation2 + $0x30] sm:$0xff]
    %v665 = vld [vmem:[#allocation2 + $0x38] sm:$0xff]
    %v666 = vld [vmem:[#allocation2 + $0x40] sm:$0xff]
    %v667 = vld [vmem:[#allocation2 + $0x48] sm:$0xff]
    %v668 = vld [vmem:[#allocation2 + $0x50] sm:$0xff]
    %v669 = vld [vmem:[#allocation2 + $0x58] sm:$0xff]
    %v670 = vld [vmem:[#allocation2 + $0x60] sm:$0xff]
    %v671 = vld [vmem:[#allocation2 + $0x68] sm:$0xff]
    %v672 = vld [vmem:[#allocation2 + $0x70] sm:$0xff]
    %v673 = vld [vmem:[#allocation2 + $0x78] sm:$0xff]
    %v674 = vld [vmem:[#allocation2 + $0x80] sm:$0xff]
    %v675 = vld [vmem:[#allocation2 + $0x88] sm:$0xff]
    %v676 = vld [vmem:[#allocation2 + $0x90] sm:$0xff]
    %v677 = vld [vmem:[#allocation2 + $0x98] sm:$0xff]
    %v678 = vld [vmem:[#allocation2 + $0xa0] sm:$0xff]
    %v679 = vld [vmem:[#allocation2 + $0xa8] sm:$0xff]
    %v680 = vld [vmem:[#allocation2 + $0xb0] sm:$0xff]
    %v681 = vld [vmem:[#allocation2 + $0xb8] sm:$0xff]
    %v682 = vld [vmem:[#allocation2 + $0xc0] sm:$0xff]
    %v683 = vld [vmem:[#allocation2 + $0xc8] sm:$0xff]
    %v684 = vld [vmem:[#allocation2 + $0xd0] sm:$0xff]
    %v685 = vld [vmem:[#allocation2 + $0xd8] sm:$0xff]
    %v686 = vld [vmem:[#allocation2 + $0xe0] sm:$0xff]
    %v687 = vld [vmem:[#allocation2 + $0xe8] sm:$0xff]
    %v688 = vld [vmem:[#allocation2 + $0xf0] sm:$0xff]
    %v689 = vld [vmem:[#allocation2 + $0xf8] sm:$0xff]
    %v690 = vld [vmem:[#allocation2 + $0x100] sm:$0xff]
    %v691 = vld [vmem:[#allocation2 + $0x108] sm:$0xff]
    %v692 = vld [vmem:[#allocation2 + $0x110] sm:$0xff]
    %v693 = vld [vmem:[#allocation2 + $0x118] sm:$0xff]
    %v694 = vld [vmem:[#allocation2 + $0x120] sm:$0xff]
    %v695 = vld [vmem:[#allocation2 + $0x128] sm:$0xff]
    %v696 = vld [vmem:[#allocation2 + $0x130] sm:$0xff]
    %v697 = vld [vmem:[#allocation2 + $0x138] sm:$0xff]
    %v698 = vld [vmem:[#allocation2 + $0x140] sm:$0xff]
    %v699 = vld [vmem:[#allocation2 + $0x148] sm:$0xff]
    %v700 = vld [vmem:[#allocation2 + $0x150] sm:$0xff]
    %v701 = vld [vmem:[#allocation2 + $0x158] sm:$0xff]
    %v702 = vld [vmem:[#allocation2 + $0x160] sm:$0xff]
    %v703 = vld [vmem:[#allocation2 + $0x168] sm:$0xff]
    %v704 = vld [vmem:[#allocation2 + $0x170] sm:$0xff]
    %v705 = vld [vmem:[#allocation2 + $0x178] sm:$0xff]
    %v706 = vld [vmem:[#allocation2 + $0x180] sm:$0xff]
    %v707 = vld [vmem:[#allocation2 + $0x188] sm:$0xff]
    %v708 = vld [vmem:[#allocation2 + $0x190] sm:$0xff]
    %v709 = vld [vmem:[#allocation2 + $0x198] sm:$0xff]
    %v710 = vld [vmem:[#allocation2 + $0x1a0] sm:$0xff]
    %v711 = vld [vmem:[#allocation2 + $0x1a8] sm:$0xff]
    %v712 = vld [vmem:[#allocation2 + $0x1b0] sm:$0xff]
    %v713 = vld [vmem:[#allocation2 + $0x1b8] sm:$0xff]
    %v714 = vld [vmem:[#allocation2 + $0x1c0] sm:$0xff]
    %v715 = vld [vmem:[#allocation2 + $0x1c8] sm:$0xff]
    %v716 = vld [vmem:[#allocation2 + $0x1d0] sm:$0xff]
    %v717 = vld [vmem:[#allocation2 + $0x1d8] sm:$0xff]
    %v718 = vld [vmem:[#allocation2 + $0x1e0] sm:$0xff]
    %v719 = vld [vmem:[#allocation2 + $0x1e8] sm:$0xff]
    %v720 = vld [vmem:[#allocation2 + $0x1f0] sm:$0xff]
    %v721 = vld [vmem:[#allocation2 + $0x1f8] sm:$0xff]
    %722 = vmatprep.subr.bf16.mxu0 %v659
    %723 = vmatpush1.bf16.msra.mxu0 %v658
    %724 = vmatprep.subr.bf16.mxu0 %v667
    %725 = vmatpush1.bf16.msra.mxu0 %v666
    %726 = vmatprep.subr.bf16.mxu0 %v675
    %727 = vmatpush1.bf16.msra.mxu0 %v674
    %728 = vmatprep.subr.bf16.mxu0 %v683
    %729 = vmatpush1.bf16.msra.mxu0 %v682
    %730 = vmatprep.subr.bf16.mxu0 %v691
    %731 = vmatpush1.bf16.msra.mxu0 %v690
    %732 = vmatprep.subr.bf16.mxu0 %v699
    %733 = vmatpush1.bf16.msra.mxu0 %v698
    %734 = vmatprep.subr.bf16.mxu0 %v707
    %735 = vmatpush1.bf16.msra.mxu0 %v706
    %736 = vmatprep.subr.bf16.mxu0 %v715
    %737 = vmatpush1.bf16.msra.mxu0 %v714
    %738 = vmatprep.subr.bf16.mxu0 0
    %739 = vmatpush1.bf16.msra.mxu0 0
    %740 = vmatprep.subr.bf16.mxu0 0
    %741 = vmatpush1.bf16.msra.mxu0 0
    %742 = vmatprep.subr.bf16.mxu0 0
    %743 = vmatpush1.bf16.msra.mxu0 0
    %744 = vmatprep.subr.bf16.mxu0 0
    %745 = vmatpush1.bf16.msra.mxu0 0
    %746 = vmatprep.subr.bf16.mxu0 0
    %747 = vmatpush1.bf16.msra.mxu0 0
    %748 = vmatprep.subr.bf16.mxu0 0
    %749 = vmatpush1.bf16.msra.mxu0 0
    %750 = vmatprep.subr.bf16.mxu0 0
    %751 = vmatpush1.bf16.msra.mxu0 0
    %752 = vmatprep.subr.bf16.mxu0 0
    %753 = vmatpush1.bf16.msra.mxu0 0
    %754 = vmatprep.mubr.bf16.mxu0 0
    %755 = vmatmul.mubr.bf16.gmra.mrb[0].mxu0 %v657
    %v756 = vpop.f32.mrb[0].mxu0
    %v757 = vadd.f32 0.0, %v756
    %v758 = vpop.f32.mrb[0].mxu0
    %v759 = vadd.f32 0.0, %v758
    %v760 = vpop.f32.mrb[0].mxu0
    %v761 = vpop.f32.mrb[0].mxu0
    %762 = vdwg.mxu0
    %763 = vmatprep.subr.bf16.mxu0 %v661
    %764 = vmatpush1.bf16.msra.mxu0 %v660
    %765 = vmatprep.subr.bf16.mxu0 %v669
    %766 = vmatpush1.bf16.msra.mxu0 %v668
    %767 = vmatprep.subr.bf16.mxu0 %v677
    %768 = vmatpush1.bf16.msra.mxu0 %v676
    %769 = vmatprep.subr.bf16.mxu0 %v685
    %770 = vmatpush1.bf16.msra.mxu0 %v684
    %771 = vmatprep.subr.bf16.mxu0 %v693
    %772 = vmatpush1.bf16.msra.mxu0 %v692
    %773 = vmatprep.subr.bf16.mxu0 %v701
    %774 = vmatpush1.bf16.msra.mxu0 %v700
    %775 = vmatprep.subr.bf16.mxu0 %v709
    %776 = vmatpush1.bf16.msra.mxu0 %v708
    %777 = vmatprep.subr.bf16.mxu0 %v717
    %778 = vmatpush1.bf16.msra.mxu0 %v716
    %779 = vmatprep.subr.bf16.mxu0 0
    %780 = vmatpush1.bf16.msra.mxu0 0
    %781 = vmatprep.subr.bf16.mxu0 0
    %782 = vmatpush1.bf16.msra.mxu0 0
    %783 = vmatprep.subr.bf16.mxu0 0
    %784 = vmatpush1.bf16.msra.mxu0 0
    %785 = vmatprep.subr.bf16.mxu0 0
    %786 = vmatpush1.bf16.msra.mxu0 0
    %787 = vmatprep.subr.bf16.mxu0 0
    %788 = vmatpush1.bf16.msra.mxu0 0
    %789 = vmatprep.subr.bf16.mxu0 0
    %790 = vmatpush1.bf16.msra.mxu0 0
    %791 = vmatprep.subr.bf16.mxu0 0
    %792 = vmatpush1.bf16.msra.mxu0 0
    %793 = vmatprep.subr.bf16.mxu0 0
    %794 = vmatpush1.bf16.msra.mxu0 0
    %795 = vmatprep.mubr.bf16.mxu0 0
    %796 = vmatmul.mubr.bf16.gmra.mrb[0].mxu0 %v657
    %v797 = vpop.f32.mrb[0].mxu0
    %v798 = vadd.f32 0.0, %v797
    %v799 = vpop.f32.mrb[0].mxu0
    %v800 = vadd.f32 0.0, %v799
    %v801 = vpop.f32.mrb[0].mxu0
    %v802 = vpop.f32.mrb[0].mxu0
    %803 = vdwg.mxu0
    %804 = vmatprep.subr.bf16.mxu0 %v663
    %805 = vmatpush1.bf16.msra.mxu0 %v662
    %806 = vmatprep.subr.bf16.mxu0 %v671
    %807 = vmatpush1.bf16.msra.mxu0 %v670
    %808 = vmatprep.subr.bf16.mxu0 %v679
    %809 = vmatpush1.bf16.msra.mxu0 %v678
    %810 = vmatprep.subr.bf16.mxu0 %v687
    %811 = vmatpush1.bf16.msra.mxu0 %v686
    %812 = vmatprep.subr.bf16.mxu0 %v695
    %813 = vmatpush1.bf16.msra.mxu0 %v694
    %814 = vmatprep.subr.bf16.mxu0 %v703
    %815 = vmatpush1.bf16.msra.mxu0 %v702
    %816 = vmatprep.subr.bf16.mxu0 %v711
    %817 = vmatpush1.bf16.msra.mxu0 %v710
    %818 = vmatprep.subr.bf16.mxu0 %v719
    %819 = vmatpush1.bf16.msra.mxu0 %v718
    %820 = vmatprep.subr.bf16.mxu0 0
    %821 = vmatpush1.bf16.msra.mxu0 0
    %822 = vmatprep.subr.bf16.mxu0 0
    %823 = vmatpush1.bf16.msra.mxu0 0
    %824 = vmatprep.subr.bf16.mxu0 0
    %825 = vmatpush1.bf16.msra.mxu0 0
    %826 = vmatprep.subr.bf16.mxu0 0
    %827 = vmatpush1.bf16.msra.mxu0 0
    %828 = vmatprep.subr.bf16.mxu0 0
    %829 = vmatpush1.bf16.msra.mxu0 0
    %830 = vmatprep.subr.bf16.mxu0 0
    %831 = vmatpush1.bf16.msra.mxu0 0
    %832 = vmatprep.subr.bf16.mxu0 0
    %833 = vmatpush1.bf16.msra.mxu0 0
    %834 = vmatprep.subr.bf16.mxu0 0
    %835 = vmatpush1.bf16.msra.mxu0 0
    %836 = vmatprep.mubr.bf16.mxu0 0
    %837 = vmatmul.mubr.bf16.gmra.mrb[0].mxu0 %v657
    %v838 = vpop.f32.mrb[0].mxu0
    %v839 = vadd.f32 0.0, %v838
    %v840 = vpop.f32.mrb[0].mxu0
    %v841 = vadd.f32 0.0, %v840
    %v842 = vpop.f32.mrb[0].mxu0
    %v843 = vpop.f32.mrb[0].mxu0
    %844 = vdwg.mxu0
    %845 = vmatprep.subr.bf16.mxu0 %v665
    %846 = vmatpush1.bf16.msra.mxu0 %v664
    %847 = vmatprep.subr.bf16.mxu0 %v673
    %848 = vmatpush1.bf16.msra.mxu0 %v672
    %849 = vmatprep.subr.bf16.mxu0 %v681
    %850 = vmatpush1.bf16.msra.mxu0 %v680
    %851 = vmatprep.subr.bf16.mxu0 %v689
    %852 = vmatpush1.bf16.msra.mxu0 %v688
    %853 = vmatprep.subr.bf16.mxu0 %v697
    %854 = vmatpush1.bf16.msra.mxu0 %v696
    %855 = vmatprep.subr.bf16.mxu0 %v705
    %856 = vmatpush1.bf16.msra.mxu0 %v704
    %857 = vmatprep.subr.bf16.mxu0 %v713
    %858 = vmatpush1.bf16.msra.mxu0 %v712
    %859 = vmatprep.subr.bf16.mxu0 %v721
    %860 = vmatpush1.bf16.msra.mxu0 %v720
    %861 = vmatprep.subr.bf16.mxu0 0
    %862 = vmatpush1.bf16.msra.mxu0 0
    %863 = vmatprep.subr.bf16.mxu0 0
    %864 = vmatpush1.bf16.msra.mxu0 0
    %865 = vmatprep.subr.bf16.mxu0 0
    %866 = vmatpush1.bf16.msra.mxu0 0
    %867 = vmatprep.subr.bf16.mxu0 0
    %868 = vmatpush1.bf16.msra.mxu0 0
    %869 = vmatprep.subr.bf16.mxu0 0
    %870 = vmatpush1.bf16.msra.mxu0 0
    %871 = vmatprep.subr.bf16.mxu0 0
    %872 = vmatpush1.bf16.msra.mxu0 0
    %873 = vmatprep.subr.bf16.mxu0 0
    %874 = vmatpush1.bf16.msra.mxu0 0
    %875 = vmatprep.subr.bf16.mxu0 0
    %876 = vmatpush1.bf16.msra.mxu0 0
    %877 = vmatprep.mubr.bf16.mxu0 0
    %878 = vmatmul.mubr.bf16.gmra.mrb[0].mxu0 %v657
    %v879 = vpop.f32.mrb[0].mxu0
    %v880 = vadd.f32 0.0, %v879
    %v881 = vpop.f32.mrb[0].mxu0
    %v882 = vadd.f32 0.0, %v881
    %v883 = vpop.f32.mrb[0].mxu0
    %v884 = vpop.f32.mrb[0].mxu0
    %885 = vdwg.mxu0
    %v886 = vadd.f32 %v839, %v582
    %v887 = vadd.f32 %v841, %v584
    %v888 = vadd.f32 %v880, %v623
    %v889 = vadd.f32 %v882, %v625
    %v890 = vadd.f32 %v886, %v369
    %v891 = vadd.f32 %v887, %v373
    %v892 = vadd.f32 %v888, %v377
    %v893 = vadd.f32 %v889, %v381
    %v894 = vxor.u32 %v890, 2147483648
    %v895 = vmul.f32 %v894, 1.442695
    %v896 = vpow.pop %v895
    %v897 = vadd.f32 %v896, 1.0
    %v898 = vrcp.pop %v897
    %v899 = vmul.f32 1.0, %v898
    %v900 = vxor.u32 %v891, 2147483648
    %v901 = vmul.f32 %v900, 1.442695
    %v902 = vpow.pop %v901
    %v903 = vadd.f32 %v902, 1.0
    %v904 = vrcp.pop %v903
    %v905 = vmul.f32 1.0, %v904
    %v906 = vtanh.pop %v892
    %v907 = vxor.u32 %v893, 2147483648
    %v908 = vmul.f32 %v907, 1.442695
    %v909 = vpow.pop %v908
    %v910 = vadd.f32 %v909, 1.0
    %v911 = vrcp.pop %v910
    %v912 = vmul.f32 1.0, %v911
    %v913 = vmul.f32 %v905, %v398
    %v914 = vmul.f32 %v899, %v906
    %v915 = vadd.f32 %v913, %v914
    %v916 = vtanh.pop %v915
    %v917 = vmul.f32 %v912, %v916
    %v918 = vpack.c.bf16 %v917, %v917
    %919 = vmatprep.subr.bf16.mxu0 %v516
    %920 = vmatpush1.bf16.msra.mxu0 %v515
    %921 = vmatprep.subr.bf16.mxu0 %v520
    %922 = vmatpush1.bf16.msra.mxu0 %v519
    %923 = vmatprep.subr.bf16.mxu0 %v524
    %924 = vmatpush1.bf16.msra.mxu0 %v523
    %925 = vmatprep.subr.bf16.mxu0 %v528
    %926 = vmatpush1.bf16.msra.mxu0 %v527
    %927 = vmatprep.subr.bf16.mxu0 %v532
    %928 = vmatpush1.bf16.msra.mxu0 %v531
    %929 = vmatprep.subr.bf16.mxu0 %v536
    %930 = vmatpush1.bf16.msra.mxu0 %v535
    %931 = vmatprep.subr.bf16.mxu0 %v540
    %932 = vmatpush1.bf16.msra.mxu0 %v539
    %933 = vmatprep.subr.bf16.mxu0 %v544
    %934 = vmatpush1.bf16.msra.mxu0 %v543
    %935 = vmatprep.subr.bf16.mxu0 0
    %936 = vmatpush1.bf16.msra.mxu0 0
    %937 = vmatprep.subr.bf16.mxu0 0
    %938 = vmatpush1.bf16.msra.mxu0 0
    %939 = vmatprep.subr.bf16.mxu0 0
    %940 = vmatpush1.bf16.msra.mxu0 0
    %941 = vmatprep.subr.bf16.mxu0 0
    %942 = vmatpush1.bf16.msra.mxu0 0
    %943 = vmatprep.subr.bf16.mxu0 0
    %944 = vmatpush1.bf16.msra.mxu0 0
    %945 = vmatprep.subr.bf16.mxu0 0
    %946 = vmatpush1.bf16.msra.mxu0 0
    %947 = vmatprep.subr.bf16.mxu0 0
    %948 = vmatpush1.bf16.msra.mxu0 0
    %949 = vmatprep.subr.bf16.mxu0 0
    %950 = vmatpush1.bf16.msra.mxu0 0
    %951 = vmatprep.mubr.bf16.mxu0 0
    %952 = vmatmul.mubr.bf16.gmra.mrb[0].mxu0 %v918
    %v953 = vpop.f32.mrb[0].mxu0
    %v954 = vadd.f32 0.0, %v953
    %v955 = vpop.f32.mrb[0].mxu0
    %v956 = vadd.f32 0.0, %v955
    %v957 = vpop.f32.mrb[0].mxu0
    %v958 = vpop.f32.mrb[0].mxu0
    %959 = vdwg.mxu0
    %960 = vmatprep.subr.bf16.mxu0 %v518
    %961 = vmatpush1.bf16.msra.mxu0 %v517
    %962 = vmatprep.subr.bf16.mxu0 %v522
    %963 = vmatpush1.bf16.msra.mxu0 %v521
    %964 = vmatprep.subr.bf16.mxu0 %v526
    %965 = vmatpush1.bf16.msra.mxu0 %v525
    %966 = vmatprep.subr.bf16.mxu0 %v530
    %967 = vmatpush1.bf16.msra.mxu0 %v529
    %968 = vmatprep.subr.bf16.mxu0 %v534
    %969 = vmatpush1.bf16.msra.mxu0 %v533
    %970 = vmatprep.subr.bf16.mxu0 %v538
    %971 = vmatpush1.bf16.msra.mxu0 %v537
    %972 = vmatprep.subr.bf16.mxu0 %v542
    %973 = vmatpush1.bf16.msra.mxu0 %v541
    %974 = vmatprep.subr.bf16.mxu0 %v546
    %975 = vmatpush1.bf16.msra.mxu0 %v545
    %976 = vmatprep.subr.bf16.mxu0 0
    %977 = vmatpush1.bf16.msra.mxu0 0
    %978 = vmatprep.subr.bf16.mxu0 0
    %979 = vmatpush1.bf16.msra.mxu0 0
    %980 = vmatprep.subr.bf16.mxu0 0
    %981 = vmatpush1.bf16.msra.mxu0 0
    %982 = vmatprep.subr.bf16.mxu0 0
    %983 = vmatpush1.bf16.msra.mxu0 0
    %984 = vmatprep.subr.bf16.mxu0 0
    %985 = vmatpush1.bf16.msra.mxu0 0
    %986 = vmatprep.subr.bf16.mxu0 0
    %987 = vmatpush1.bf16.msra.mxu0 0
    %988 = vmatprep.subr.bf16.mxu0 0
    %989 = vmatpush1.bf16.msra.mxu0 0
    %990 = vmatprep.subr.bf16.mxu0 0
    %991 = vmatpush1.bf16.msra.mxu0 0
    %992 = vmatprep.mubr.bf16.mxu0 0
    %993 = vmatmul.mubr.bf16.gmra.mrb[0].mxu0 %v918
    %v994 = vpop.f32.mrb[0].mxu0
    %v995 = vadd.f32 0.0, %v994
    %v996 = vpop.f32.mrb[0].mxu0
    %v997 = vadd.f32 0.0, %v996
    %v998 = vpop.f32.mrb[0].mxu0
    %v999 = vpop.f32.mrb[0].mxu0
    %1000 = vdwg.mxu0
    %v1005 = vrot.slane %v757, 6
    %v1006 = vrot.slane %v759, 6
    %v1007 = vrot.slane %v798, 6
    %v1008 = vrot.slane %v800, 6
    %v1013 = vadd.f32 %v313, %v1005
    %v1014 = vadd.f32 %v315, %v1006
    %v1015 = vadd.f32 %v356, %v1007
    %v1016 = vadd.f32 %v358, %v1008
    %v1017 = vxor.u32 %v1013, 2147483648
    %v1018 = vmul.f32 %v1017, 1.442695
    %v1019 = vpow.pop %v1018
    %v1020 = vadd.f32 %v1019, 1.0
    %v1021 = vrcp.pop %v1020
    %v1022 = vmul.f32 1.0, %v1021
    %v1023 = vxor.u32 %v1014, 2147483648
    %v1024 = vmul.f32 %v1023, 1.442695
    %v1025 = vpow.pop %v1024
    %v1026 = vadd.f32 %v1025, 1.0
    %v1027 = vrcp.pop %v1026
    %v1028 = vmul.f32 1.0, %v1027
    %v1029 = vtanh.pop %v1015
    %v1030 = vxor.u32 %v1016, 2147483648
    %v1031 = vmul.f32 %v1030, 1.442695
    %v1032 = vpow.pop %v1031
    %v1033 = vadd.f32 %v1032, 1.0
    %v1034 = vrcp.pop %v1033
    %v1035 = vmul.f32 1.0, %v1034
    %v1037 = vrot.slane %v654, 6
    %v1039 = vmul.f32 %v1028, %v1037
    %v1040 = vmul.f32 %v1022, %v1029
    %v1041 = vadd.f32 %v1039, %v1040
    %v1042 = vtanh.pop %v1041
    %v1043 = vmul.f32 %v1035, %v1042
    %v1044 = vpack.c.bf16 %v1043, %v1043
    %v1046 = vrot.slane %v1044, 1
    %1048 = vmatprep.subr.bf16.mxu0 %v659
    %1049 = vmatpush1.bf16.msra.mxu0 %v658
    %1050 = vmatprep.subr.bf16.mxu0 %v667
    %1051 = vmatpush1.bf16.msra.mxu0 %v666
    %1052 = vmatprep.subr.bf16.mxu0 %v675
    %1053 = vmatpush1.bf16.msra.mxu0 %v674
    %1054 = vmatprep.subr.bf16.mxu0 %v683
    %1055 = vmatpush1.bf16.msra.mxu0 %v682
    %1056 = vmatprep.subr.bf16.mxu0 %v691
    %1057 = vmatpush1.bf16.msra.mxu0 %v690
    %1058 = vmatprep.subr.bf16.mxu0 %v699
    %1059 = vmatpush1.bf16.msra.mxu0 %v698
    %1060 = vmatprep.subr.bf16.mxu0 %v707
    %1061 = vmatpush1.bf16.msra.mxu0 %v706
    %1062 = vmatprep.subr.bf16.mxu0 %v715
    %1063 = vmatpush1.bf16.msra.mxu0 %v714
    %1064 = vmatprep.subr.bf16.mxu0 0
    %1065 = vmatpush1.bf16.msra.mxu0 0
    %1066 = vmatprep.subr.bf16.mxu0 0
    %1067 = vmatpush1.bf16.msra.mxu0 0
    %1068 = vmatprep.subr.bf16.mxu0 0
    %1069 = vmatpush1.bf16.msra.mxu0 0
    %1070 = vmatprep.subr.bf16.mxu0 0
    %1071 = vmatpush1.bf16.msra.mxu0 0
    %1072 = vmatprep.subr.bf16.mxu0 0
    %1073 = vmatpush1.bf16.msra.mxu0 0
    %1074 = vmatprep.subr.bf16.mxu0 0
    %1075 = vmatpush1.bf16.msra.mxu0 0
    %1076 = vmatprep.subr.bf16.mxu0 0
    %1077 = vmatpush1.bf16.msra.mxu0 0
    %1078 = vmatprep.subr.bf16.mxu0 0
    %1079 = vmatpush1.bf16.msra.mxu0 0
    %1080 = vmatprep.mubr.bf16.mxu0 0
    %1081 = vmatmul.mubr.bf16.gmra.mrb[0].mxu0 %v1046
    %v1082 = vpop.f32.mrb[0].mxu0
    %v1083 = vadd.f32 0.0, %v1082
    %v1084 = vpop.f32.mrb[0].mxu0
    %v1085 = vadd.f32 0.0, %v1084
    %v1086 = vpop.f32.mrb[0].mxu0
    %v1087 = vpop.f32.mrb[0].mxu0
    %1088 = vdwg.mxu0
    %1089 = vmatprep.subr.bf16.mxu0 %v661
    %1090 = vmatpush1.bf16.msra.mxu0 %v660
    %1091 = vmatprep.subr.bf16.mxu0 %v669
    %1092 = vmatpush1.bf16.msra.mxu0 %v668
    %1093 = vmatprep.subr.bf16.mxu0 %v677
    %1094 = vmatpush1.bf16.msra.mxu0 %v676
    %1095 = vmatprep.subr.bf16.mxu0 %v685
    %1096 = vmatpush1.bf16.msra.mxu0 %v684
    %1097 = vmatprep.subr.bf16.mxu0 %v693
    %1098 = vmatpush1.bf16.msra.mxu0 %v692
    %1099 = vmatprep.subr.bf16.mxu0 %v701
    %1100 = vmatpush1.bf16.msra.mxu0 %v700
    %1101 = vmatprep.subr.bf16.mxu0 %v709
    %1102 = vmatpush1.bf16.msra.mxu0 %v708
    %1103 = vmatprep.subr.bf16.mxu0 %v717
    %1104 = vmatpush1.bf16.msra.mxu0 %v716
    %1105 = vmatprep.subr.bf16.mxu0 0
    %1106 = vmatpush1.bf16.msra.mxu0 0
    %1107 = vmatprep.subr.bf16.mxu0 0
    %1108 = vmatpush1.bf16.msra.mxu0 0
    %1109 = vmatprep.subr.bf16.mxu0 0
    %1110 = vmatpush1.bf16.msra.mxu0 0
    %1111 = vmatprep.subr.bf16.mxu0 0
    %1112 = vmatpush1.bf16.msra.mxu0 0
    %1113 = vmatprep.subr.bf16.mxu0 0
    %1114 = vmatpush1.bf16.msra.mxu0 0
    %1115 = vmatprep.subr.bf16.mxu0 0
    %1116 = vmatpush1.bf16.msra.mxu0 0
    %1117 = vmatprep.subr.bf16.mxu0 0
    %1118 = vmatpush1.bf16.msra.mxu0 0
    %1119 = vmatprep.subr.bf16.mxu0 0
    %1120 = vmatpush1.bf16.msra.mxu0 0
    %1121 = vmatprep.mubr.bf16.mxu0 0
    %1122 = vmatmul.mubr.bf16.gmra.mrb[0].mxu0 %v1046
    %v1123 = vpop.f32.mrb[0].mxu0
    %v1124 = vadd.f32 0.0, %v1123
    %v1125 = vpop.f32.mrb[0].mxu0
    %v1126 = vadd.f32 0.0, %v1125
    %v1127 = vpop.f32.mrb[0].mxu0
    %v1128 = vpop.f32.mrb[0].mxu0
    %1129 = vdwg.mxu0
    %1130 = vmatprep.subr.bf16.mxu0 %v663
    %1131 = vmatpush1.bf16.msra.mxu0 %v662
    %1132 = vmatprep.subr.bf16.mxu0 %v671
    %1133 = vmatpush1.bf16.msra.mxu0 %v670
    %1134 = vmatprep.subr.bf16.mxu0 %v679
    %1135 = vmatpush1.bf16.msra.mxu0 %v678
    %1136 = vmatprep.subr.bf16.mxu0 %v687
    %1137 = vmatpush1.bf16.msra.mxu0 %v686
    %1138 = vmatprep.subr.bf16.mxu0 %v695
    %1139 = vmatpush1.bf16.msra.mxu0 %v694
    %1140 = vmatprep.subr.bf16.mxu0 %v703
    %1141 = vmatpush1.bf16.msra.mxu0 %v702
    %1142 = vmatprep.subr.bf16.mxu0 %v711
    %1143 = vmatpush1.bf16.msra.mxu0 %v710
    %1144 = vmatprep.subr.bf16.mxu0 %v719
    %1145 = vmatpush1.bf16.msra.mxu0 %v718
    %1146 = vmatprep.subr.bf16.mxu0 0
    %1147 = vmatpush1.bf16.msra.mxu0 0
    %1148 = vmatprep.subr.bf16.mxu0 0
    %1149 = vmatpush1.bf16.msra.mxu0 0
    %1150 = vmatprep.subr.bf16.mxu0 0
    %1151 = vmatpush1.bf16.msra.mxu0 0
    %1152 = vmatprep.subr.bf16.mxu0 0
    %1153 = vmatpush1.bf16.msra.mxu0 0
    %1154 = vmatprep.subr.bf16.mxu0 0
    %1155 = vmatpush1.bf16.msra.mxu0 0
    %1156 = vmatprep.subr.bf16.mxu0 0
    %1157 = vmatpush1.bf16.msra.mxu0 0
    %1158 = vmatprep.subr.bf16.mxu0 0
    %1159 = vmatpush1.bf16.msra.mxu0 0
    %1160 = vmatprep.subr.bf16.mxu0 0
    %1161 = vmatpush1.bf16.msra.mxu0 0
    %1162 = vmatprep.mubr.bf16.mxu0 0
    %1163 = vmatmul.mubr.bf16.gmra.mrb[0].mxu0 %v1046
    %v1164 = vpop.f32.mrb[0].mxu0
    %v1165 = vadd.f32 0.0, %v1164
    %v1166 = vpop.f32.mrb[0].mxu0
    %v1167 = vadd.f32 0.0, %v1166
    %v1168 = vpop.f32.mrb[0].mxu0
    %v1169 = vpop.f32.mrb[0].mxu0
    %1170 = vdwg.mxu0
    %1171 = vmatprep.subr.bf16.mxu0 %v665
    %1172 = vmatpush1.bf16.msra.mxu0 %v664
    %1173 = vmatprep.subr.bf16.mxu0 %v673
    %1174 = vmatpush1.bf16.msra.mxu0 %v672
    %1175 = vmatprep.subr.bf16.mxu0 %v681
    %1176 = vmatpush1.bf16.msra.mxu0 %v680
    %1177 = vmatprep.subr.bf16.mxu0 %v689
    %1178 = vmatpush1.bf16.msra.mxu0 %v688
    %1179 = vmatprep.subr.bf16.mxu0 %v697
    %1180 = vmatpush1.bf16.msra.mxu0 %v696
    %1181 = vmatprep.subr.bf16.mxu0 %v705
    %1182 = vmatpush1.bf16.msra.mxu0 %v704
    %1183 = vmatprep.subr.bf16.mxu0 %v713
    %1184 = vmatpush1.bf16.msra.mxu0 %v712
    %1185 = vmatprep.subr.bf16.mxu0 %v721
    %1186 = vmatpush1.bf16.msra.mxu0 %v720
    %1187 = vmatprep.subr.bf16.mxu0 0
    %1188 = vmatpush1.bf16.msra.mxu0 0
    %1189 = vmatprep.subr.bf16.mxu0 0
    %1190 = vmatpush1.bf16.msra.mxu0 0
    %1191 = vmatprep.subr.bf16.mxu0 0
    %1192 = vmatpush1.bf16.msra.mxu0 0
    %1193 = vmatprep.subr.bf16.mxu0 0
    %1194 = vmatpush1.bf16.msra.mxu0 0
    %1195 = vmatprep.subr.bf16.mxu0 0
    %1196 = vmatpush1.bf16.msra.mxu0 0
    %1197 = vmatprep.subr.bf16.mxu0 0
    %1198 = vmatpush1.bf16.msra.mxu0 0
    %1199 = vmatprep.subr.bf16.mxu0 0
    %1200 = vmatpush1.bf16.msra.mxu0 0
    %1201 = vmatprep.subr.bf16.mxu0 0
    %1202 = vmatpush1.bf16.msra.mxu0 0
    %1203 = vmatprep.mubr.bf16.mxu0 0
    %1204 = vmatmul.mubr.bf16.gmra.mrb[0].mxu0 %v1046
    %v1205 = vpop.f32.mrb[0].mxu0
    %v1206 = vadd.f32 0.0, %v1205
    %v1207 = vpop.f32.mrb[0].mxu0
    %v1208 = vadd.f32 0.0, %v1207
    %v1209 = vpop.f32.mrb[0].mxu0
    %v1210 = vpop.f32.mrb[0].mxu0
    %1211 = vdwg.mxu0
    %v1212 = vadd.f32 %v1165, %v954
    %v1213 = vadd.f32 %v1167, %v956
    %v1214 = vadd.f32 %v1206, %v995
    %v1215 = vadd.f32 %v1208, %v997
    %v1216 = vadd.f32 %v1212, %v369
    %v1217 = vadd.f32 %v1213, %v373
    %v1218 = vadd.f32 %v1214, %v377
    %v1219 = vadd.f32 %v1215, %v381
    %v1220 = vxor.u32 %v1216, 2147483648
    %v1221 = vmul.f32 %v1220, 1.442695
    %v1222 = vpow.pop %v1221
    %v1223 = vadd.f32 %v1222, 1.0
    %v1224 = vrcp.pop %v1223
    %v1225 = vmul.f32 1.0, %v1224
    %v1226 = vxor.u32 %v1217, 2147483648
    %v1227 = vmul.f32 %v1226, 1.442695
    %v1228 = vpow.pop %v1227
    %v1229 = vadd.f32 %v1228, 1.0
    %v1230 = vrcp.pop %v1229
    %v1231 = vmul.f32 1.0, %v1230
    %v1232 = vtanh.pop %v1218
    %v1233 = vxor.u32 %v1219, 2147483648
    %v1234 = vmul.f32 %v1233, 1.442695
    %v1235 = vpow.pop %v1234
    %v1236 = vadd.f32 %v1235, 1.0
    %v1237 = vrcp.pop %v1236
    %v1238 = vmul.f32 1.0, %v1237
    %v1239 = vmul.f32 %v1231, %v915
    %v1240 = vmul.f32 %v1225, %v1232
    %v1241 = vadd.f32 %v1239, %v1240
    %v1242 = vtanh.pop %v1241
    %v1243 = vmul.f32 %v1238, %v1242
    %v1244 = vpack.c.bf16 %v1243, %v1243
    %1245 = vmatprep.subr.bf16.mxu0 %v516
    %1246 = vmatpush1.bf16.msra.mxu0 %v515
    %1247 = vmatprep.subr.bf16.mxu0 %v520
    %1248 = vmatpush1.bf16.msra.mxu0 %v519
    %1249 = vmatprep.subr.bf16.mxu0 %v524
    %1250 = vmatpush1.bf16.msra.mxu0 %v523
    %1251 = vmatprep.subr.bf16.mxu0 %v528
    %1252 = vmatpush1.bf16.msra.mxu0 %v527
    %1253 = vmatprep.subr.bf16.mxu0 %v532
    %1254 = vmatpush1.bf16.msra.mxu0 %v531
    %1255 = vmatprep.subr.bf16.mxu0 %v536
    %1256 = vmatpush1.bf16.msra.mxu0 %v535
    %1257 = vmatprep.subr.bf16.mxu0 %v540
    %1258 = vmatpush1.bf16.msra.mxu0 %v539
    %1259 = vmatprep.subr.bf16.mxu0 %v544
    %1260 = vmatpush1.bf16.msra.mxu0 %v543
    %1261 = vmatprep.subr.bf16.mxu0 0
    %1262 = vmatpush1.bf16.msra.mxu0 0
    %1263 = vmatprep.subr.bf16.mxu0 0
    %1264 = vmatpush1.bf16.msra.mxu0 0
    %1265 = vmatprep.subr.bf16.mxu0 0
    %1266 = vmatpush1.bf16.msra.mxu0 0
    %1267 = vmatprep.subr.bf16.mxu0 0
    %1268 = vmatpush1.bf16.msra.mxu0 0
    %1269 = vmatprep.subr.bf16.mxu0 0
    %1270 = vmatpush1.bf16.msra.mxu0 0
    %1271 = vmatprep.subr.bf16.mxu0 0
    %1272 = vmatpush1.bf16.msra.mxu0 0
    %1273 = vmatprep.subr.bf16.mxu0 0
    %1274 = vmatpush1.bf16.msra.mxu0 0
    %1275 = vmatprep.subr.bf16.mxu0 0
    %1276 = vmatpush1.bf16.msra.mxu0 0
    %1277 = vmatprep.mubr.bf16.mxu0 0
    %1278 = vmatmul.mubr.bf16.gmra.mrb[0].mxu0 %v1244
    %v1279 = vpop.f32.mrb[0].mxu0
    %v1280 = vadd.f32 0.0, %v1279
    %v1281 = vpop.f32.mrb[0].mxu0
    %v1282 = vadd.f32 0.0, %v1281
    %v1283 = vpop.f32.mrb[0].mxu0
    %v1284 = vpop.f32.mrb[0].mxu0
    %1285 = vdwg.mxu0
    %1286 = vmatprep.subr.bf16.mxu0 %v518
    %1287 = vmatpush1.bf16.msra.mxu0 %v517
    %1288 = vmatprep.subr.bf16.mxu0 %v522
    %1289 = vmatpush1.bf16.msra.mxu0 %v521
    %1290 = vmatprep.subr.bf16.mxu0 %v526
    %1291 = vmatpush1.bf16.msra.mxu0 %v525
    %1292 = vmatprep.subr.bf16.mxu0 %v530
    %1293 = vmatpush1.bf16.msra.mxu0 %v529
    %1294 = vmatprep.subr.bf16.mxu0 %v534
    %1295 = vmatpush1.bf16.msra.mxu0 %v533
    %1296 = vmatprep.subr.bf16.mxu0 %v538
    %1297 = vmatpush1.bf16.msra.mxu0 %v537
    %1298 = vmatprep.subr.bf16.mxu0 %v542
    %1299 = vmatpush1.bf16.msra.mxu0 %v541
    %1300 = vmatprep.subr.bf16.mxu0 %v546
    %1301 = vmatpush1.bf16.msra.mxu0 %v545
    %1302 = vmatprep.subr.bf16.mxu0 0
    %1303 = vmatpush1.bf16.msra.mxu0 0
    %1304 = vmatprep.subr.bf16.mxu0 0
    %1305 = vmatpush1.bf16.msra.mxu0 0
    %1306 = vmatprep.subr.bf16.mxu0 0
    %1307 = vmatpush1.bf16.msra.mxu0 0
    %1308 = vmatprep.subr.bf16.mxu0 0
    %1309 = vmatpush1.bf16.msra.mxu0 0
    %1310 = vmatprep.subr.bf16.mxu0 0
    %1311 = vmatpush1.bf16.msra.mxu0 0
    %1312 = vmatprep.subr.bf16.mxu0 0
    %1313 = vmatpush1.bf16.msra.mxu0 0
    %1314 = vmatprep.subr.bf16.mxu0 0
    %1315 = vmatpush1.bf16.msra.mxu0 0
    %1316 = vmatprep.subr.bf16.mxu0 0
    %1317 = vmatpush1.bf16.msra.mxu0 0
    %1318 = vmatprep.mubr.bf16.mxu0 0
    %1319 = vmatmul.mubr.bf16.gmra.mrb[0].mxu0 %v1244
    %v1320 = vpop.f32.mrb[0].mxu0
    %v1321 = vadd.f32 0.0, %v1320
    %v1322 = vpop.f32.mrb[0].mxu0
    %v1323 = vadd.f32 0.0, %v1322
    %v1324 = vpop.f32.mrb[0].mxu0
    %v1325 = vpop.f32.mrb[0].mxu0
    %1326 = vdwg.mxu0
    %v1331 = vrot.slane %v1083, 4
    %v1332 = vrot.slane %v1085, 4
    %v1333 = vrot.slane %v1124, 4
    %v1334 = vrot.slane %v1126, 4
    %v1339 = vadd.f32 %v313, %v1331
    %v1340 = vadd.f32 %v315, %v1332
    %v1341 = vadd.f32 %v356, %v1333
    %v1342 = vadd.f32 %v358, %v1334
    %v1343 = vxor.u32 %v1339, 2147483648
    %v1344 = vmul.f32 %v1343, 1.442695
    %v1345 = vpow.pop %v1344
    %v1346 = vadd.f32 %v1345, 1.0
    %v1347 = vrcp.pop %v1346
    %v1348 = vmul.f32 1.0, %v1347
    %v1349 = vxor.u32 %v1340, 2147483648
    %v1350 = vmul.f32 %v1349, 1.442695
    %v1351 = vpow.pop %v1350
    %v1352 = vadd.f32 %v1351, 1.0
    %v1353 = vrcp.pop %v1352
    %v1354 = vmul.f32 1.0, %v1353
    %v1355 = vtanh.pop %v1341
    %v1356 = vxor.u32 %v1342, 2147483648
    %v1357 = vmul.f32 %v1356, 1.442695
    %v1358 = vpow.pop %v1357
    %v1359 = vadd.f32 %v1358, 1.0
    %v1360 = vrcp.pop %v1359
    %v1361 = vmul.f32 1.0, %v1360
    %v1363 = vrot.slane %v1041, 6
    %v1365 = vmul.f32 %v1354, %v1363
    %v1366 = vmul.f32 %v1348, %v1355
    %v1367 = vadd.f32 %v1365, %v1366
    %v1368 = vtanh.pop %v1367
    %v1369 = vmul.f32 %v1361, %v1368
    %v1370 = vpack.c.bf16 %v1369, %v1369
    %v1372 = vrot.slane %v1370, 2
    %1374 = vmatprep.subr.bf16.mxu0 %v659
    %1375 = vmatpush1.bf16.msra.mxu0 %v658
    %1376 = vmatprep.subr.bf16.mxu0 %v667
    %1377 = vmatpush1.bf16.msra.mxu0 %v666
    %1378 = vmatprep.subr.bf16.mxu0 %v675
    %1379 = vmatpush1.bf16.msra.mxu0 %v674
    %1380 = vmatprep.subr.bf16.mxu0 %v683
    %1381 = vmatpush1.bf16.msra.mxu0 %v682
    %1382 = vmatprep.subr.bf16.mxu0 %v691
    %1383 = vmatpush1.bf16.msra.mxu0 %v690
    %1384 = vmatprep.subr.bf16.mxu0 %v699
    %1385 = vmatpush1.bf16.msra.mxu0 %v698
    %1386 = vmatprep.subr.bf16.mxu0 %v707
    %1387 = vmatpush1.bf16.msra.mxu0 %v706
    %1388 = vmatprep.subr.bf16.mxu0 %v715
    %1389 = vmatpush1.bf16.msra.mxu0 %v714
    %1390 = vmatprep.subr.bf16.mxu0 0
    %1391 = vmatpush1.bf16.msra.mxu0 0
    %1392 = vmatprep.subr.bf16.mxu0 0
    %1393 = vmatpush1.bf16.msra.mxu0 0
    %1394 = vmatprep.subr.bf16.mxu0 0
    %1395 = vmatpush1.bf16.msra.mxu0 0
    %1396 = vmatprep.subr.bf16.mxu0 0
    %1397 = vmatpush1.bf16.msra.mxu0 0
    %1398 = vmatprep.subr.bf16.mxu0 0
    %1399 = vmatpush1.bf16.msra.mxu0 0
    %1400 = vmatprep.subr.bf16.mxu0 0
    %1401 = vmatpush1.bf16.msra.mxu0 0
    %1402 = vmatprep.subr.bf16.mxu0 0
    %1403 = vmatpush1.bf16.msra.mxu0 0
    %1404 = vmatprep.subr.bf16.mxu0 0
    %1405 = vmatpush1.bf16.msra.mxu0 0
    %1406 = vmatprep.mubr.bf16.mxu0 0
    %1407 = vmatmul.mubr.bf16.gmra.mrb[0].mxu0 %v1372
    %v1408 = vpop.f32.mrb[0].mxu0
    %v1409 = vadd.f32 0.0, %v1408
    %v1410 = vpop.f32.mrb[0].mxu0
    %v1411 = vadd.f32 0.0, %v1410
    %v1412 = vpop.f32.mrb[0].mxu0
    %v1413 = vpop.f32.mrb[0].mxu0
    %1414 = vdwg.mxu0
    %1415 = vmatprep.subr.bf16.mxu0 %v661
    %1416 = vmatpush1.bf16.msra.mxu0 %v660
    %1417 = vmatprep.subr.bf16.mxu0 %v669
    %1418 = vmatpush1.bf16.msra.mxu0 %v668
    %1419 = vmatprep.subr.bf16.mxu0 %v677
    %1420 = vmatpush1.bf16.msra.mxu0 %v676
    %1421 = vmatprep.subr.bf16.mxu0 %v685
    %1422 = vmatpush1.bf16.msra.mxu0 %v684
    %1423 = vmatprep.subr.bf16.mxu0 %v693
    %1424 = vmatpush1.bf16.msra.mxu0 %v692
    %1425 = vmatprep.subr.bf16.mxu0 %v701
    %1426 = vmatpush1.bf16.msra.mxu0 %v700
    %1427 = vmatprep.subr.bf16.mxu0 %v709
    %1428 = vmatpush1.bf16.msra.mxu0 %v708
    %1429 = vmatprep.subr.bf16.mxu0 %v717
    %1430 = vmatpush1.bf16.msra.mxu0 %v716
    %1431 = vmatprep.subr.bf16.mxu0 0
    %1432 = vmatpush1.bf16.msra.mxu0 0
    %1433 = vmatprep.subr.bf16.mxu0 0
    %1434 = vmatpush1.bf16.msra.mxu0 0
    %1435 = vmatprep.subr.bf16.mxu0 0
    %1436 = vmatpush1.bf16.msra.mxu0 0
    %1437 = vmatprep.subr.bf16.mxu0 0
    %1438 = vmatpush1.bf16.msra.mxu0 0
    %1439 = vmatprep.subr.bf16.mxu0 0
    %1440 = vmatpush1.bf16.msra.mxu0 0
    %1441 = vmatprep.subr.bf16.mxu0 0
    %1442 = vmatpush1.bf16.msra.mxu0 0
    %1443 = vmatprep.subr.bf16.mxu0 0
    %1444 = vmatpush1.bf16.msra.mxu0 0
    %1445 = vmatprep.subr.bf16.mxu0 0
    %1446 = vmatpush1.bf16.msra.mxu0 0
    %1447 = vmatprep.mubr.bf16.mxu0 0
    %1448 = vmatmul.mubr.bf16.gmra.mrb[0].mxu0 %v1372
    %v1449 = vpop.f32.mrb[0].mxu0
    %v1450 = vadd.f32 0.0, %v1449
    %v1451 = vpop.f32.mrb[0].mxu0
    %v1452 = vadd.f32 0.0, %v1451
    %v1453 = vpop.f32.mrb[0].mxu0
    %v1454 = vpop.f32.mrb[0].mxu0
    %1455 = vdwg.mxu0
    %1456 = vmatprep.subr.bf16.mxu0 %v663
    %1457 = vmatpush1.bf16.msra.mxu0 %v662
    %1458 = vmatprep.subr.bf16.mxu0 %v671
    %1459 = vmatpush1.bf16.msra.mxu0 %v670
    %1460 = vmatprep.subr.bf16.mxu0 %v679
    %1461 = vmatpush1.bf16.msra.mxu0 %v678
    %1462 = vmatprep.subr.bf16.mxu0 %v687
    %1463 = vmatpush1.bf16.msra.mxu0 %v686
    %1464 = vmatprep.subr.bf16.mxu0 %v695
    %1465 = vmatpush1.bf16.msra.mxu0 %v694
    %1466 = vmatprep.subr.bf16.mxu0 %v703
    %1467 = vmatpush1.bf16.msra.mxu0 %v702
    %1468 = vmatprep.subr.bf16.mxu0 %v711
    %1469 = vmatpush1.bf16.msra.mxu0 %v710
    %1470 = vmatprep.subr.bf16.mxu0 %v719
    %1471 = vmatpush1.bf16.msra.mxu0 %v718
    %1472 = vmatprep.subr.bf16.mxu0 0
    %1473 = vmatpush1.bf16.msra.mxu0 0
    %1474 = vmatprep.subr.bf16.mxu0 0
    %1475 = vmatpush1.bf16.msra.mxu0 0
    %1476 = vmatprep.subr.bf16.mxu0 0
    %1477 = vmatpush1.bf16.msra.mxu0 0
    %1478 = vmatprep.subr.bf16.mxu0 0
    %1479 = vmatpush1.bf16.msra.mxu0 0
    %1480 = vmatprep.subr.bf16.mxu0 0
    %1481 = vmatpush1.bf16.msra.mxu0 0
    %1482 = vmatprep.subr.bf16.mxu0 0
    %1483 = vmatpush1.bf16.msra.mxu0 0
    %1484 = vmatprep.subr.bf16.mxu0 0
    %1485 = vmatpush1.bf16.msra.mxu0 0
    %1486 = vmatprep.subr.bf16.mxu0 0
    %1487 = vmatpush1.bf16.msra.mxu0 0
    %1488 = vmatprep.mubr.bf16.mxu0 0
    %1489 = vmatmul.mubr.bf16.gmra.mrb[0].mxu0 %v1372
    %v1490 = vpop.f32.mrb[0].mxu0
    %v1491 = vadd.f32 0.0, %v1490
    %v1492 = vpop.f32.mrb[0].mxu0
    %v1493 = vadd.f32 0.0, %v1492
    %v1494 = vpop.f32.mrb[0].mxu0
    %v1495 = vpop.f32.mrb[0].mxu0
    %1496 = vdwg.mxu0
    %1497 = vmatprep.subr.bf16.mxu0 %v665
    %1498 = vmatpush1.bf16.msra.mxu0 %v664
    %1499 = vmatprep.subr.bf16.mxu0 %v673
    %1500 = vmatpush1.bf16.msra.mxu0 %v672
    %1501 = vmatprep.subr.bf16.mxu0 %v681
    %1502 = vmatpush1.bf16.msra.mxu0 %v680
    %1503 = vmatprep.subr.bf16.mxu0 %v689
    %1504 = vmatpush1.bf16.msra.mxu0 %v688
    %1505 = vmatprep.subr.bf16.mxu0 %v697
    %1506 = vmatpush1.bf16.msra.mxu0 %v696
    %1507 = vmatprep.subr.bf16.mxu0 %v705
    %1508 = vmatpush1.bf16.msra.mxu0 %v704
    %1509 = vmatprep.subr.bf16.mxu0 %v713
    %1510 = vmatpush1.bf16.msra.mxu0 %v712
    %1511 = vmatprep.subr.bf16.mxu0 %v721
    %1512 = vmatpush1.bf16.msra.mxu0 %v720
    %1513 = vmatprep.subr.bf16.mxu0 0
    %1514 = vmatpush1.bf16.msra.mxu0 0
    %1515 = vmatprep.subr.bf16.mxu0 0
    %1516 = vmatpush1.bf16.msra.mxu0 0
    %1517 = vmatprep.subr.bf16.mxu0 0
    %1518 = vmatpush1.bf16.msra.mxu0 0
    %1519 = vmatprep.subr.bf16.mxu0 0
    %1520 = vmatpush1.bf16.msra.mxu0 0
    %1521 = vmatprep.subr.bf16.mxu0 0
    %1522 = vmatpush1.bf16.msra.mxu0 0
    %1523 = vmatprep.subr.bf16.mxu0 0
    %1524 = vmatpush1.bf16.msra.mxu0 0
    %1525 = vmatprep.subr.bf16.mxu0 0
    %1526 = vmatpush1.bf16.msra.mxu0 0
    %1527 = vmatprep.subr.bf16.mxu0 0
    %1528 = vmatpush1.bf16.msra.mxu0 0
    %1529 = vmatprep.mubr.bf16.mxu0 0
    %1530 = vmatmul.mubr.bf16.gmra.mrb[0].mxu0 %v1372
    %v1531 = vpop.f32.mrb[0].mxu0
    %v1532 = vadd.f32 0.0, %v1531
    %v1533 = vpop.f32.mrb[0].mxu0
    %v1534 = vadd.f32 0.0, %v1533
    %v1535 = vpop.f32.mrb[0].mxu0
    %v1536 = vpop.f32.mrb[0].mxu0
    %1537 = vdwg.mxu0
    %v1538 = vadd.f32 %v1491, %v1280
    %v1539 = vadd.f32 %v1493, %v1282
    %v1540 = vadd.f32 %v1532, %v1321
    %v1541 = vadd.f32 %v1534, %v1323
    %v1542 = vadd.f32 %v1538, %v369
    %v1543 = vadd.f32 %v1539, %v373
    %v1544 = vadd.f32 %v1540, %v377
    %v1545 = vadd.f32 %v1541, %v381
    %v1546 = vxor.u32 %v1542, 2147483648
    %v1547 = vmul.f32 %v1546, 1.442695
    %v1548 = vpow.pop %v1547
    %v1549 = vadd.f32 %v1548, 1.0
    %v1550 = vrcp.pop %v1549
    %v1551 = vmul.f32 1.0, %v1550
    %v1552 = vxor.u32 %v1543, 2147483648
    %v1553 = vmul.f32 %v1552, 1.442695
    %v1554 = vpow.pop %v1553
    %v1555 = vadd.f32 %v1554, 1.0
    %v1556 = vrcp.pop %v1555
    %v1557 = vmul.f32 1.0, %v1556
    %v1558 = vtanh.pop %v1544
    %v1559 = vxor.u32 %v1545, 2147483648
    %v1560 = vmul.f32 %v1559, 1.442695
    %v1561 = vpow.pop %v1560
    %v1562 = vadd.f32 %v1561, 1.0
    %v1563 = vrcp.pop %v1562
    %v1564 = vmul.f32 1.0, %v1563
    %v1565 = vmul.f32 %v1557, %v1241
    %v1566 = vmul.f32 %v1551, %v1558
    %v1567 = vadd.f32 %v1565, %v1566
    %v1568 = vtanh.pop %v1567
    %v1569 = vmul.f32 %v1564, %v1568
    %v1570 = vpack.c.bf16 %v1569, %v1569
    %1571 = vmatprep.subr.bf16.mxu0 %v516
    %1572 = vmatpush1.bf16.msra.mxu0 %v515
    %1573 = vmatprep.subr.bf16.mxu0 %v520
    %1574 = vmatpush1.bf16.msra.mxu0 %v519
    %1575 = vmatprep.subr.bf16.mxu0 %v524
    %1576 = vmatpush1.bf16.msra.mxu0 %v523
    %1577 = vmatprep.subr.bf16.mxu0 %v528
    %1578 = vmatpush1.bf16.msra.mxu0 %v527
    %1579 = vmatprep.subr.bf16.mxu0 %v532
    %1580 = vmatpush1.bf16.msra.mxu0 %v531
    %1581 = vmatprep.subr.bf16.mxu0 %v536
    %1582 = vmatpush1.bf16.msra.mxu0 %v535
    %1583 = vmatprep.subr.bf16.mxu0 %v540
    %1584 = vmatpush1.bf16.msra.mxu0 %v539
    %1585 = vmatprep.subr.bf16.mxu0 %v544
    %1586 = vmatpush1.bf16.msra.mxu0 %v543
    %1587 = vmatprep.subr.bf16.mxu0 0
    %1588 = vmatpush1.bf16.msra.mxu0 0
    %1589 = vmatprep.subr.bf16.mxu0 0
    %1590 = vmatpush1.bf16.msra.mxu0 0
    %1591 = vmatprep.subr.bf16.mxu0 0
    %1592 = vmatpush1.bf16.msra.mxu0 0
    %1593 = vmatprep.subr.bf16.mxu0 0
    %1594 = vmatpush1.bf16.msra.mxu0 0
    %1595 = vmatprep.subr.bf16.mxu0 0
    %1596 = vmatpush1.bf16.msra.mxu0 0
    %1597 = vmatprep.subr.bf16.mxu0 0
    %1598 = vmatpush1.bf16.msra.mxu0 0
    %1599 = vmatprep.subr.bf16.mxu0 0
    %1600 = vmatpush1.bf16.msra.mxu0 0
    %1601 = vmatprep.subr.bf16.mxu0 0
    %1602 = vmatpush1.bf16.msra.mxu0 0
    %1603 = vmatprep.mubr.bf16.mxu0 0
    %1604 = vmatmul.mubr.bf16.gmra.mrb[0].mxu0 %v1570
    %v1605 = vpop.f32.mrb[0].mxu0
    %v1606 = vadd.f32 0.0, %v1605
    %v1607 = vpop.f32.mrb[0].mxu0
    %v1608 = vadd.f32 0.0, %v1607
    %v1609 = vpop.f32.mrb[0].mxu0
    %v1610 = vpop.f32.mrb[0].mxu0
    %1611 = vdwg.mxu0
    %1612 = vmatprep.subr.bf16.mxu0 %v518
    %1613 = vmatpush1.bf16.msra.mxu0 %v517
    %1614 = vmatprep.subr.bf16.mxu0 %v522
    %1615 = vmatpush1.bf16.msra.mxu0 %v521
    %1616 = vmatprep.subr.bf16.mxu0 %v526
    %1617 = vmatpush1.bf16.msra.mxu0 %v525
    %1618 = vmatprep.subr.bf16.mxu0 %v530
    %1619 = vmatpush1.bf16.msra.mxu0 %v529
    %1620 = vmatprep.subr.bf16.mxu0 %v534
    %1621 = vmatpush1.bf16.msra.mxu0 %v533
    %1622 = vmatprep.subr.bf16.mxu0 %v538
    %1623 = vmatpush1.bf16.msra.mxu0 %v537
    %1624 = vmatprep.subr.bf16.mxu0 %v542
    %1625 = vmatpush1.bf16.msra.mxu0 %v541
    %1626 = vmatprep.subr.bf16.mxu0 %v546
    %1627 = vmatpush1.bf16.msra.mxu0 %v545
    %1628 = vmatprep.subr.bf16.mxu0 0
    %1629 = vmatpush1.bf16.msra.mxu0 0
    %1630 = vmatprep.subr.bf16.mxu0 0
    %1631 = vmatpush1.bf16.msra.mxu0 0
    %1632 = vmatprep.subr.bf16.mxu0 0
    %1633 = vmatpush1.bf16.msra.mxu0 0
    %1634 = vmatprep.subr.bf16.mxu0 0
    %1635 = vmatpush1.bf16.msra.mxu0 0
    %1636 = vmatprep.subr.bf16.mxu0 0
    %1637 = vmatpush1.bf16.msra.mxu0 0
    %1638 = vmatprep.subr.bf16.mxu0 0
    %1639 = vmatpush1.bf16.msra.mxu0 0
    %1640 = vmatprep.subr.bf16.mxu0 0
    %1641 = vmatpush1.bf16.msra.mxu0 0
    %1642 = vmatprep.subr.bf16.mxu0 0
    %1643 = vmatpush1.bf16.msra.mxu0 0
    %1644 = vmatprep.mubr.bf16.mxu0 0
    %1645 = vmatmul.mubr.bf16.gmra.mrb[0].mxu0 %v1570
    %v1646 = vpop.f32.mrb[0].mxu0
    %v1647 = vadd.f32 0.0, %v1646
    %v1648 = vpop.f32.mrb[0].mxu0
    %v1649 = vadd.f32 0.0, %v1648
    %v1650 = vpop.f32.mrb[0].mxu0
    %v1651 = vpop.f32.mrb[0].mxu0
    %1652 = vdwg.mxu0
    %v1657 = vrot.slane %v1409, 2
    %v1658 = vrot.slane %v1411, 2
    %v1659 = vrot.slane %v1450, 2
    %v1660 = vrot.slane %v1452, 2
    %v1665 = vadd.f32 %v313, %v1657
    %v1666 = vadd.f32 %v315, %v1658
    %v1667 = vadd.f32 %v356, %v1659
    %v1668 = vadd.f32 %v358, %v1660
    %v1669 = vxor.u32 %v1665, 2147483648
    %v1670 = vmul.f32 %v1669, 1.442695
    %v1671 = vpow.pop %v1670
    %v1672 = vadd.f32 %v1671, 1.0
    %v1673 = vrcp.pop %v1672
    %v1674 = vmul.f32 1.0, %v1673
    %v1675 = vxor.u32 %v1666, 2147483648
    %v1676 = vmul.f32 %v1675, 1.442695
    %v1677 = vpow.pop %v1676
    %v1678 = vadd.f32 %v1677, 1.0
    %v1679 = vrcp.pop %v1678
    %v1680 = vmul.f32 1.0, %v1679
    %v1681 = vtanh.pop %v1667
    %v1682 = vxor.u32 %v1668, 2147483648
    %v1683 = vmul.f32 %v1682, 1.442695
    %v1684 = vpow.pop %v1683
    %v1685 = vadd.f32 %v1684, 1.0
    %v1686 = vrcp.pop %v1685
    %v1687 = vmul.f32 1.0, %v1686
    %v1689 = vrot.slane %v1367, 6
    %v1691 = vmul.f32 %v1680, %v1689
    %v1692 = vmul.f32 %v1674, %v1681
    %v1693 = vadd.f32 %v1691, %v1692
    %v1694 = vtanh.pop %v1693
    %v1695 = vmul.f32 %v1687, %v1694
    %v1696 = vpack.c.bf16 %v1695, %v1695
    %v1698 = vrot.slane %v1696, 3
    %1700 = vmatprep.subr.bf16.mxu0 %v659
    %1701 = vmatpush1.bf16.msra.mxu0 %v658
    %1702 = vmatprep.subr.bf16.mxu0 %v667
    %1703 = vmatpush1.bf16.msra.mxu0 %v666
    %1704 = vmatprep.subr.bf16.mxu0 %v675
    %1705 = vmatpush1.bf16.msra.mxu0 %v674
    %1706 = vmatprep.subr.bf16.mxu0 %v683
    %1707 = vmatpush1.bf16.msra.mxu0 %v682
    %1708 = vmatprep.subr.bf16.mxu0 %v691
    %1709 = vmatpush1.bf16.msra.mxu0 %v690
    %1710 = vmatprep.subr.bf16.mxu0 %v699
    %1711 = vmatpush1.bf16.msra.mxu0 %v698
    %1712 = vmatprep.subr.bf16.mxu0 %v707
    %1713 = vmatpush1.bf16.msra.mxu0 %v706
    %1714 = vmatprep.subr.bf16.mxu0 %v715
    %1715 = vmatpush1.bf16.msra.mxu0 %v714
    %1716 = vmatprep.subr.bf16.mxu0 0
    %1717 = vmatpush1.bf16.msra.mxu0 0
    %1718 = vmatprep.subr.bf16.mxu0 0
    %1719 = vmatpush1.bf16.msra.mxu0 0
    %1720 = vmatprep.subr.bf16.mxu0 0
    %1721 = vmatpush1.bf16.msra.mxu0 0
    %1722 = vmatprep.subr.bf16.mxu0 0
    %1723 = vmatpush1.bf16.msra.mxu0 0
    %1724 = vmatprep.subr.bf16.mxu0 0
    %1725 = vmatpush1.bf16.msra.mxu0 0
    %1726 = vmatprep.subr.bf16.mxu0 0
    %1727 = vmatpush1.bf16.msra.mxu0 0
    %1728 = vmatprep.subr.bf16.mxu0 0
    %1729 = vmatpush1.bf16.msra.mxu0 0
    %1730 = vmatprep.subr.bf16.mxu0 0
    %1731 = vmatpush1.bf16.msra.mxu0 0
    %1732 = vmatprep.mubr.bf16.mxu0 0
    %1733 = vmatmul.mubr.bf16.gmra.mrb[0].mxu0 %v1698
    %v1734 = vpop.f32.mrb[0].mxu0
    %v1735 = vadd.f32 0.0, %v1734
    %v1736 = vpop.f32.mrb[0].mxu0
    %v1737 = vadd.f32 0.0, %v1736
    %v1738 = vpop.f32.mrb[0].mxu0
    %v1739 = vpop.f32.mrb[0].mxu0
    %1740 = vdwg.mxu0
    %1741 = vmatprep.subr.bf16.mxu0 %v661
    %1742 = vmatpush1.bf16.msra.mxu0 %v660
    %1743 = vmatprep.subr.bf16.mxu0 %v669
    %1744 = vmatpush1.bf16.msra.mxu0 %v668
    %1745 = vmatprep.subr.bf16.mxu0 %v677
    %1746 = vmatpush1.bf16.msra.mxu0 %v676
    %1747 = vmatprep.subr.bf16.mxu0 %v685
    %1748 = vmatpush1.bf16.msra.mxu0 %v684
    %1749 = vmatprep.subr.bf16.mxu0 %v693
    %1750 = vmatpush1.bf16.msra.mxu0 %v692
    %1751 = vmatprep.subr.bf16.mxu0 %v701
    %1752 = vmatpush1.bf16.msra.mxu0 %v700
    %1753 = vmatprep.subr.bf16.mxu0 %v709
    %1754 = vmatpush1.bf16.msra.mxu0 %v708
    %1755 = vmatprep.subr.bf16.mxu0 %v717
    %1756 = vmatpush1.bf16.msra.mxu0 %v716
    %1757 = vmatprep.subr.bf16.mxu0 0
    %1758 = vmatpush1.bf16.msra.mxu0 0
    %1759 = vmatprep.subr.bf16.mxu0 0
    %1760 = vmatpush1.bf16.msra.mxu0 0
    %1761 = vmatprep.subr.bf16.mxu0 0
    %1762 = vmatpush1.bf16.msra.mxu0 0
    %1763 = vmatprep.subr.bf16.mxu0 0
    %1764 = vmatpush1.bf16.msra.mxu0 0
    %1765 = vmatprep.subr.bf16.mxu0 0
    %1766 = vmatpush1.bf16.msra.mxu0 0
    %1767 = vmatprep.subr.bf16.mxu0 0
    %1768 = vmatpush1.bf16.msra.mxu0 0
    %1769 = vmatprep.subr.bf16.mxu0 0
    %1770 = vmatpush1.bf16.msra.mxu0 0
    %1771 = vmatprep.subr.bf16.mxu0 0
    %1772 = vmatpush1.bf16.msra.mxu0 0
    %1773 = vmatprep.mubr.bf16.mxu0 0
    %1774 = vmatmul.mubr.bf16.gmra.mrb[0].mxu0 %v1698
    %v1775 = vpop.f32.mrb[0].mxu0
    %v1776 = vadd.f32 0.0, %v1775
    %v1777 = vpop.f32.mrb[0].mxu0
    %v1778 = vadd.f32 0.0, %v1777
    %v1779 = vpop.f32.mrb[0].mxu0
    %v1780 = vpop.f32.mrb[0].mxu0
    %1781 = vdwg.mxu0
    %1782 = vmatprep.subr.bf16.mxu0 %v663
    %1783 = vmatpush1.bf16.msra.mxu0 %v662
    %1784 = vmatprep.subr.bf16.mxu0 %v671
    %1785 = vmatpush1.bf16.msra.mxu0 %v670
    %1786 = vmatprep.subr.bf16.mxu0 %v679
    %1787 = vmatpush1.bf16.msra.mxu0 %v678
    %1788 = vmatprep.subr.bf16.mxu0 %v687
    %1789 = vmatpush1.bf16.msra.mxu0 %v686
    %1790 = vmatprep.subr.bf16.mxu0 %v695
    %1791 = vmatpush1.bf16.msra.mxu0 %v694
    %1792 = vmatprep.subr.bf16.mxu0 %v703
    %1793 = vmatpush1.bf16.msra.mxu0 %v702
    %1794 = vmatprep.subr.bf16.mxu0 %v711
    %1795 = vmatpush1.bf16.msra.mxu0 %v710
    %1796 = vmatprep.subr.bf16.mxu0 %v719
    %1797 = vmatpush1.bf16.msra.mxu0 %v718
    %1798 = vmatprep.subr.bf16.mxu0 0
    %1799 = vmatpush1.bf16.msra.mxu0 0
    %1800 = vmatprep.subr.bf16.mxu0 0
    %1801 = vmatpush1.bf16.msra.mxu0 0
    %1802 = vmatprep.subr.bf16.mxu0 0
    %1803 = vmatpush1.bf16.msra.mxu0 0
    %1804 = vmatprep.subr.bf16.mxu0 0
    %1805 = vmatpush1.bf16.msra.mxu0 0
    %1806 = vmatprep.subr.bf16.mxu0 0
    %1807 = vmatpush1.bf16.msra.mxu0 0
    %1808 = vmatprep.subr.bf16.mxu0 0
    %1809 = vmatpush1.bf16.msra.mxu0 0
    %1810 = vmatprep.subr.bf16.mxu0 0
    %1811 = vmatpush1.bf16.msra.mxu0 0
    %1812 = vmatprep.subr.bf16.mxu0 0
    %1813 = vmatpush1.bf16.msra.mxu0 0
    %1814 = vmatprep.mubr.bf16.mxu0 0
    %1815 = vmatmul.mubr.bf16.gmra.mrb[0].mxu0 %v1698
    %v1816 = vpop.f32.mrb[0].mxu0
    %v1817 = vadd.f32 0.0, %v1816
    %v1818 = vpop.f32.mrb[0].mxu0
    %v1819 = vadd.f32 0.0, %v1818
    %v1820 = vpop.f32.mrb[0].mxu0
    %v1821 = vpop.f32.mrb[0].mxu0
    %1822 = vdwg.mxu0
    %1823 = vmatprep.subr.bf16.mxu0 %v665
    %1824 = vmatpush1.bf16.msra.mxu0 %v664
    %1825 = vmatprep.subr.bf16.mxu0 %v673
    %1826 = vmatpush1.bf16.msra.mxu0 %v672
    %1827 = vmatprep.subr.bf16.mxu0 %v681
    %1828 = vmatpush1.bf16.msra.mxu0 %v680
    %1829 = vmatprep.subr.bf16.mxu0 %v689
    %1830 = vmatpush1.bf16.msra.mxu0 %v688
    %1831 = vmatprep.subr.bf16.mxu0 %v697
    %1832 = vmatpush1.bf16.msra.mxu0 %v696
    %1833 = vmatprep.subr.bf16.mxu0 %v705
    %1834 = vmatpush1.bf16.msra.mxu0 %v704
    %1835 = vmatprep.subr.bf16.mxu0 %v713
    %1836 = vmatpush1.bf16.msra.mxu0 %v712
    %1837 = vmatprep.subr.bf16.mxu0 %v721
    %1838 = vmatpush1.bf16.msra.mxu0 %v720
    %1839 = vmatprep.subr.bf16.mxu0 0
    %1840 = vmatpush1.bf16.msra.mxu0 0
    %1841 = vmatprep.subr.bf16.mxu0 0
    %1842 = vmatpush1.bf16.msra.mxu0 0
    %1843 = vmatprep.subr.bf16.mxu0 0
    %1844 = vmatpush1.bf16.msra.mxu0 0
    %1845 = vmatprep.subr.bf16.mxu0 0
    %1846 = vmatpush1.bf16.msra.mxu0 0
    %1847 = vmatprep.subr.bf16.mxu0 0
    %1848 = vmatpush1.bf16.msra.mxu0 0
    %1849 = vmatprep.subr.bf16.mxu0 0
    %1850 = vmatpush1.bf16.msra.mxu0 0
    %1851 = vmatprep.subr.bf16.mxu0 0
    %1852 = vmatpush1.bf16.msra.mxu0 0
    %1853 = vmatprep.subr.bf16.mxu0 0
    %1854 = vmatpush1.bf16.msra.mxu0 0
    %1855 = vmatprep.mubr.bf16.mxu0 0
    %1856 = vmatmul.mubr.bf16.gmra.mrb[0].mxu0 %v1698
    %v1857 = vpop.f32.mrb[0].mxu0
    %v1858 = vadd.f32 0.0, %v1857
    %v1859 = vpop.f32.mrb[0].mxu0
    %v1860 = vadd.f32 0.0, %v1859
    %v1861 = vpop.f32.mrb[0].mxu0
    %v1862 = vpop.f32.mrb[0].mxu0
    %1863 = vdwg.mxu0
    %v1864 = vadd.f32 %v1817, %v1606
    %v1865 = vadd.f32 %v1819, %v1608
    %v1866 = vadd.f32 %v1858, %v1647
    %v1867 = vadd.f32 %v1860, %v1649
    %v1868 = vadd.f32 %v1864, %v369
    %v1869 = vadd.f32 %v1865, %v373
    %v1870 = vadd.f32 %v1866, %v377
    %v1871 = vadd.f32 %v1867, %v381
    %v1872 = vxor.u32 %v1868, 2147483648
    %v1873 = vmul.f32 %v1872, 1.442695
    %v1874 = vpow.pop %v1873
    %v1875 = vadd.f32 %v1874, 1.0
    %v1876 = vrcp.pop %v1875
    %v1877 = vmul.f32 1.0, %v1876
    %v1878 = vxor.u32 %v1869, 2147483648
    %v1879 = vmul.f32 %v1878, 1.442695
    %v1880 = vpow.pop %v1879
    %v1881 = vadd.f32 %v1880, 1.0
    %v1882 = vrcp.pop %v1881
    %v1883 = vmul.f32 1.0, %v1882
    %v1884 = vtanh.pop %v1870
    %v1885 = vxor.u32 %v1871, 2147483648
    %v1886 = vmul.f32 %v1885, 1.442695
    %v1887 = vpow.pop %v1886
    %v1888 = vadd.f32 %v1887, 1.0
    %v1889 = vrcp.pop %v1888
    %v1890 = vmul.f32 1.0, %v1889
    %v1891 = vmul.f32 %v1883, %v1567
    %v1892 = vmul.f32 %v1877, %v1884
    %v1893 = vadd.f32 %v1891, %v1892
    %v1894 = vtanh.pop %v1893
    %v1895 = vmul.f32 %v1890, %v1894
    %v1896 = vpack.c.bf16 %v1895, %v1895
    %1897 = vmatprep.subr.bf16.mxu0 %v516
    %1898 = vmatpush1.bf16.msra.mxu0 %v515
    %1899 = vmatprep.subr.bf16.mxu0 %v520
    %1900 = vmatpush1.bf16.msra.mxu0 %v519
    %1901 = vmatprep.subr.bf16.mxu0 %v524
    %1902 = vmatpush1.bf16.msra.mxu0 %v523
    %1903 = vmatprep.subr.bf16.mxu0 %v528
    %1904 = vmatpush1.bf16.msra.mxu0 %v527
    %1905 = vmatprep.subr.bf16.mxu0 %v532
    %1906 = vmatpush1.bf16.msra.mxu0 %v531
    %1907 = vmatprep.subr.bf16.mxu0 %v536
    %1908 = vmatpush1.bf16.msra.mxu0 %v535
    %1909 = vmatprep.subr.bf16.mxu0 %v540
    %1910 = vmatpush1.bf16.msra.mxu0 %v539
    %1911 = vmatprep.subr.bf16.mxu0 %v544
    %1912 = vmatpush1.bf16.msra.mxu0 %v543
    %1913 = vmatprep.subr.bf16.mxu0 0
    %1914 = vmatpush1.bf16.msra.mxu0 0
    %1915 = vmatprep.subr.bf16.mxu0 0
    %1916 = vmatpush1.bf16.msra.mxu0 0
    %1917 = vmatprep.subr.bf16.mxu0 0
    %1918 = vmatpush1.bf16.msra.mxu0 0
    %1919 = vmatprep.subr.bf16.mxu0 0
    %1920 = vmatpush1.bf16.msra.mxu0 0
    %1921 = vmatprep.subr.bf16.mxu0 0
    %1922 = vmatpush1.bf16.msra.mxu0 0
    %1923 = vmatprep.subr.bf16.mxu0 0
    %1924 = vmatpush1.bf16.msra.mxu0 0
    %1925 = vmatprep.subr.bf16.mxu0 0
    %1926 = vmatpush1.bf16.msra.mxu0 0
    %1927 = vmatprep.subr.bf16.mxu0 0
    %1928 = vmatpush1.bf16.msra.mxu0 0
    %1929 = vmatprep.mubr.bf16.mxu0 0
    %1930 = vmatmul.mubr.bf16.gmra.mrb[0].mxu0 %v1896
    %v1931 = vpop.f32.mrb[0].mxu0
    %v1932 = vadd.f32 0.0, %v1931
    %v1933 = vpop.f32.mrb[0].mxu0
    %v1934 = vadd.f32 0.0, %v1933
    %v1935 = vpop.f32.mrb[0].mxu0
    %v1936 = vpop.f32.mrb[0].mxu0
    %1937 = vdwg.mxu0
    %1938 = vmatprep.subr.bf16.mxu0 %v518
    %1939 = vmatpush1.bf16.msra.mxu0 %v517
    %1940 = vmatprep.subr.bf16.mxu0 %v522
    %1941 = vmatpush1.bf16.msra.mxu0 %v521
    %1942 = vmatprep.subr.bf16.mxu0 %v526
    %1943 = vmatpush1.bf16.msra.mxu0 %v525
    %1944 = vmatprep.subr.bf16.mxu0 %v530
    %1945 = vmatpush1.bf16.msra.mxu0 %v529
    %1946 = vmatprep.subr.bf16.mxu0 %v534
    %1947 = vmatpush1.bf16.msra.mxu0 %v533
    %1948 = vmatprep.subr.bf16.mxu0 %v538
    %1949 = vmatpush1.bf16.msra.mxu0 %v537
    %1950 = vmatprep.subr.bf16.mxu0 %v542
    %1951 = vmatpush1.bf16.msra.mxu0 %v541
    %1952 = vmatprep.subr.bf16.mxu0 %v546
    %1953 = vmatpush1.bf16.msra.mxu0 %v545
    %1954 = vmatprep.subr.bf16.mxu0 0
    %1955 = vmatpush1.bf16.msra.mxu0 0
    %1956 = vmatprep.subr.bf16.mxu0 0
    %1957 = vmatpush1.bf16.msra.mxu0 0
    %1958 = vmatprep.subr.bf16.mxu0 0
    %1959 = vmatpush1.bf16.msra.mxu0 0
    %1960 = vmatprep.subr.bf16.mxu0 0
    %1961 = vmatpush1.bf16.msra.mxu0 0
    %1962 = vmatprep.subr.bf16.mxu0 0
    %1963 = vmatpush1.bf16.msra.mxu0 0
    %1964 = vmatprep.subr.bf16.mxu0 0
    %1965 = vmatpush1.bf16.msra.mxu0 0
    %1966 = vmatprep.subr.bf16.mxu0 0
    %1967 = vmatpush1.bf16.msra.mxu0 0
    %1968 = vmatprep.subr.bf16.mxu0 0
    %1969 = vmatpush1.bf16.msra.mxu0 0
    %1970 = vmatprep.mubr.bf16.mxu0 0
    %1971 = vmatmul.mubr.bf16.gmra.mrb[0].mxu0 %v1896
    %v1972 = vpop.f32.mrb[0].mxu0
    %v1973 = vadd.f32 0.0, %v1972
    %v1974 = vpop.f32.mrb[0].mxu0
    %v1975 = vadd.f32 0.0, %v1974
    %v1976 = vpop.f32.mrb[0].mxu0
    %v1977 = vpop.f32.mrb[0].mxu0
    %1978 = vdwg.mxu0
    %v1979 = vadd.f32 %v317, %v1735
    %v1980 = vadd.f32 %v319, %v1737
    %v1981 = vadd.f32 %v360, %v1776
    %v1982 = vadd.f32 %v362, %v1778
    %v1983 = vxor.u32 %v1979, 2147483648
    %v1984 = vmul.f32 %v1983, 1.442695
    %v1985 = vpow.pop %v1984
    %v1986 = vadd.f32 %v1985, 1.0
    %v1987 = vrcp.pop %v1986
    %v1988 = vmul.f32 1.0, %v1987
    %v1989 = vxor.u32 %v1980, 2147483648
    %v1990 = vmul.f32 %v1989, 1.442695
    %v1991 = vpow.pop %v1990
    %v1992 = vadd.f32 %v1991, 1.0
    %v1993 = vrcp.pop %v1992
    %v1994 = vmul.f32 1.0, %v1993
    %v1995 = vtanh.pop %v1981
    %v1996 = vxor.u32 %v1982, 2147483648
    %v1997 = vmul.f32 %v1996, 1.442695
    %v1998 = vpow.pop %v1997
    %v1999 = vadd.f32 %v1998, 1.0
    %v2000 = vrcp.pop %v1999
    %v2001 = vmul.f32 1.0, %v2000
    %v2003 = vrot.slane %v1693, 6
    %v2005 = vmul.f32 %v1994, %v2003
    %v2006 = vmul.f32 %v1988, %v1995
    %v2007 = vadd.f32 %v2005, %v2006
    %v2008 = vtanh.pop %v2007
    %v2009 = vmul.f32 %v2001, %v2008
    %v2010 = vpack.c.bf16 %v2009, %v2009
    %2011 = vmatprep.subr.bf16.mxu0 %v659
    %2012 = vmatpush1.bf16.msra.mxu0 %v658
    %2013 = vmatprep.subr.bf16.mxu0 %v667
    %2014 = vmatpush1.bf16.msra.mxu0 %v666
    %2015 = vmatprep.subr.bf16.mxu0 %v675
    %2016 = vmatpush1.bf16.msra.mxu0 %v674
    %2017 = vmatprep.subr.bf16.mxu0 %v683
    %2018 = vmatpush1.bf16.msra.mxu0 %v682
    %2019 = vmatprep.subr.bf16.mxu0 %v691
    %2020 = vmatpush1.bf16.msra.mxu0 %v690
    %2021 = vmatprep.subr.bf16.mxu0 %v699
    %2022 = vmatpush1.bf16.msra.mxu0 %v698
    %2023 = vmatprep.subr.bf16.mxu0 %v707
    %2024 = vmatpush1.bf16.msra.mxu0 %v706
    %2025 = vmatprep.subr.bf16.mxu0 %v715
    %2026 = vmatpush1.bf16.msra.mxu0 %v714
    %2027 = vmatprep.subr.bf16.mxu0 0
    %2028 = vmatpush1.bf16.msra.mxu0 0
    %2029 = vmatprep.subr.bf16.mxu0 0
    %2030 = vmatpush1.bf16.msra.mxu0 0
    %2031 = vmatprep.subr.bf16.mxu0 0
    %2032 = vmatpush1.bf16.msra.mxu0 0
    %2033 = vmatprep.subr.bf16.mxu0 0
    %2034 = vmatpush1.bf16.msra.mxu0 0
    %2035 = vmatprep.subr.bf16.mxu0 0
    %2036 = vmatpush1.bf16.msra.mxu0 0
    %2037 = vmatprep.subr.bf16.mxu0 0
    %2038 = vmatpush1.bf16.msra.mxu0 0
    %2039 = vmatprep.subr.bf16.mxu0 0
    %2040 = vmatpush1.bf16.msra.mxu0 0
    %2041 = vmatprep.subr.bf16.mxu0 0
    %2042 = vmatpush1.bf16.msra.mxu0 0
    %2043 = vmatprep.mubr.bf16.mxu0 0
    %2044 = vmatmul.mubr.bf16.gmra.mrb[0].mxu0 %v2010
    %v2045 = vpop.f32.mrb[0].mxu0
    %v2046 = vadd.f32 0.0, %v2045
    %v2047 = vpop.f32.mrb[0].mxu0
    %v2048 = vadd.f32 0.0, %v2047
    %v2049 = vpop.f32.mrb[0].mxu0
    %v2050 = vpop.f32.mrb[0].mxu0
    %2051 = vdwg.mxu0
    %2052 = vmatprep.subr.bf16.mxu0 %v661
    %2053 = vmatpush1.bf16.msra.mxu0 %v660
    %2054 = vmatprep.subr.bf16.mxu0 %v669
    %2055 = vmatpush1.bf16.msra.mxu0 %v668
    %2056 = vmatprep.subr.bf16.mxu0 %v677
    %2057 = vmatpush1.bf16.msra.mxu0 %v676
    %2058 = vmatprep.subr.bf16.mxu0 %v685
    %2059 = vmatpush1.bf16.msra.mxu0 %v684
    %2060 = vmatprep.subr.bf16.mxu0 %v693
    %2061 = vmatpush1.bf16.msra.mxu0 %v692
    %2062 = vmatprep.subr.bf16.mxu0 %v701
    %2063 = vmatpush1.bf16.msra.mxu0 %v700
    %2064 = vmatprep.subr.bf16.mxu0 %v709
    %2065 = vmatpush1.bf16.msra.mxu0 %v708
    %2066 = vmatprep.subr.bf16.mxu0 %v717
    %2067 = vmatpush1.bf16.msra.mxu0 %v716
    %2068 = vmatprep.subr.bf16.mxu0 0
    %2069 = vmatpush1.bf16.msra.mxu0 0
    %2070 = vmatprep.subr.bf16.mxu0 0
    %2071 = vmatpush1.bf16.msra.mxu0 0
    %2072 = vmatprep.subr.bf16.mxu0 0
    %2073 = vmatpush1.bf16.msra.mxu0 0
    %2074 = vmatprep.subr.bf16.mxu0 0
    %2075 = vmatpush1.bf16.msra.mxu0 0
    %2076 = vmatprep.subr.bf16.mxu0 0
    %2077 = vmatpush1.bf16.msra.mxu0 0
    %2078 = vmatprep.subr.bf16.mxu0 0
    %2079 = vmatpush1.bf16.msra.mxu0 0
    %2080 = vmatprep.subr.bf16.mxu0 0
    %2081 = vmatpush1.bf16.msra.mxu0 0
    %2082 = vmatprep.subr.bf16.mxu0 0
    %2083 = vmatpush1.bf16.msra.mxu0 0
    %2084 = vmatprep.mubr.bf16.mxu0 0
    %2085 = vmatmul.mubr.bf16.gmra.mrb[0].mxu0 %v2010
    %v2086 = vpop.f32.mrb[0].mxu0
    %v2087 = vadd.f32 0.0, %v2086
    %v2088 = vpop.f32.mrb[0].mxu0
    %v2089 = vadd.f32 0.0, %v2088
    %v2090 = vpop.f32.mrb[0].mxu0
    %v2091 = vpop.f32.mrb[0].mxu0
    %2092 = vdwg.mxu0
    %2093 = vmatprep.subr.bf16.mxu0 %v663
    %2094 = vmatpush1.bf16.msra.mxu0 %v662
    %2095 = vmatprep.subr.bf16.mxu0 %v671
    %2096 = vmatpush1.bf16.msra.mxu0 %v670
    %2097 = vmatprep.subr.bf16.mxu0 %v679
    %2098 = vmatpush1.bf16.msra.mxu0 %v678
    %2099 = vmatprep.subr.bf16.mxu0 %v687
    %2100 = vmatpush1.bf16.msra.mxu0 %v686
    %2101 = vmatprep.subr.bf16.mxu0 %v695
    %2102 = vmatpush1.bf16.msra.mxu0 %v694
    %2103 = vmatprep.subr.bf16.mxu0 %v703
    %2104 = vmatpush1.bf16.msra.mxu0 %v702
    %2105 = vmatprep.subr.bf16.mxu0 %v711
    %2106 = vmatpush1.bf16.msra.mxu0 %v710
    %2107 = vmatprep.subr.bf16.mxu0 %v719
    %2108 = vmatpush1.bf16.msra.mxu0 %v718
    %2109 = vmatprep.subr.bf16.mxu0 0
    %2110 = vmatpush1.bf16.msra.mxu0 0
    %2111 = vmatprep.subr.bf16.mxu0 0
    %2112 = vmatpush1.bf16.msra.mxu0 0
    %2113 = vmatprep.subr.bf16.mxu0 0
    %2114 = vmatpush1.bf16.msra.mxu0 0
    %2115 = vmatprep.subr.bf16.mxu0 0
    %2116 = vmatpush1.bf16.msra.mxu0 0
    %2117 = vmatprep.subr.bf16.mxu0 0
    %2118 = vmatpush1.bf16.msra.mxu0 0
    %2119 = vmatprep.subr.bf16.mxu0 0
    %2120 = vmatpush1.bf16.msra.mxu0 0
    %2121 = vmatprep.subr.bf16.mxu0 0
    %2122 = vmatpush1.bf16.msra.mxu0 0
    %2123 = vmatprep.subr.bf16.mxu0 0
    %2124 = vmatpush1.bf16.msra.mxu0 0
    %2125 = vmatprep.mubr.bf16.mxu0 0
    %2126 = vmatmul.mubr.bf16.gmra.mrb[0].mxu0 %v2010
    %v2127 = vpop.f32.mrb[0].mxu0
    %v2128 = vadd.f32 0.0, %v2127
    %v2129 = vpop.f32.mrb[0].mxu0
    %v2130 = vadd.f32 0.0, %v2129
    %v2131 = vpop.f32.mrb[0].mxu0
    %v2132 = vpop.f32.mrb[0].mxu0
    %2133 = vdwg.mxu0
    %2134 = vmatprep.subr.bf16.mxu0 %v665
    %2135 = vmatpush1.bf16.msra.mxu0 %v664
    %2136 = vmatprep.subr.bf16.mxu0 %v673
    %2137 = vmatpush1.bf16.msra.mxu0 %v672
    %2138 = vmatprep.subr.bf16.mxu0 %v681
    %2139 = vmatpush1.bf16.msra.mxu0 %v680
    %2140 = vmatprep.subr.bf16.mxu0 %v689
    %2141 = vmatpush1.bf16.msra.mxu0 %v688
    %2142 = vmatprep.subr.bf16.mxu0 %v697
    %2143 = vmatpush1.bf16.msra.mxu0 %v696
    %2144 = vmatprep.subr.bf16.mxu0 %v705
    %2145 = vmatpush1.bf16.msra.mxu0 %v704
    %2146 = vmatprep.subr.bf16.mxu0 %v713
    %2147 = vmatpush1.bf16.msra.mxu0 %v712
    %2148 = vmatprep.subr.bf16.mxu0 %v721
    %2149 = vmatpush1.bf16.msra.mxu0 %v720
    %2150 = vmatprep.subr.bf16.mxu0 0
    %2151 = vmatpush1.bf16.msra.mxu0 0
    %2152 = vmatprep.subr.bf16.mxu0 0
    %2153 = vmatpush1.bf16.msra.mxu0 0
    %2154 = vmatprep.subr.bf16.mxu0 0
    %2155 = vmatpush1.bf16.msra.mxu0 0
    %2156 = vmatprep.subr.bf16.mxu0 0
    %2157 = vmatpush1.bf16.msra.mxu0 0
    %2158 = vmatprep.subr.bf16.mxu0 0
    %2159 = vmatpush1.bf16.msra.mxu0 0
    %2160 = vmatprep.subr.bf16.mxu0 0
    %2161 = vmatpush1.bf16.msra.mxu0 0
    %2162 = vmatprep.subr.bf16.mxu0 0
    %2163 = vmatpush1.bf16.msra.mxu0 0
    %2164 = vmatprep.subr.bf16.mxu0 0
    %2165 = vmatpush1.bf16.msra.mxu0 0
    %2166 = vmatprep.mubr.bf16.mxu0 0
    %2167 = vmatmul.mubr.bf16.gmra.mrb[0].mxu0 %v2010
    %v2168 = vpop.f32.mrb[0].mxu0
    %v2169 = vadd.f32 0.0, %v2168
    %v2170 = vpop.f32.mrb[0].mxu0
    %v2171 = vadd.f32 0.0, %v2170
    %v2172 = vpop.f32.mrb[0].mxu0
    %v2173 = vpop.f32.mrb[0].mxu0
    %2174 = vdwg.mxu0
    %v2175 = vadd.f32 %v2128, %v1932
    %v2176 = vadd.f32 %v2130, %v1934
    %v2177 = vadd.f32 %v2169, %v1973
    %v2178 = vadd.f32 %v2171, %v1975
    %v2179 = vadd.f32 %v2175, %v369
    %v2180 = vadd.f32 %v2176, %v373
    %v2181 = vadd.f32 %v2177, %v377
    %v2182 = vadd.f32 %v2178, %v381
    %v2183 = vxor.u32 %v2179, 2147483648
    %v2184 = vmul.f32 %v2183, 1.442695
    %v2185 = vpow.pop %v2184
    %v2186 = vadd.f32 %v2185, 1.0
    %v2187 = vrcp.pop %v2186
    %v2188 = vmul.f32 1.0, %v2187
    %v2189 = vxor.u32 %v2180, 2147483648
    %v2190 = vmul.f32 %v2189, 1.442695
    %v2191 = vpow.pop %v2190
    %v2192 = vadd.f32 %v2191, 1.0
    %v2193 = vrcp.pop %v2192
    %v2194 = vmul.f32 1.0, %v2193
    %v2195 = vtanh.pop %v2181
    %v2196 = vxor.u32 %v2182, 2147483648
    %v2197 = vmul.f32 %v2196, 1.442695
    %v2198 = vpow.pop %v2197
    %v2199 = vadd.f32 %v2198, 1.0
    %v2200 = vrcp.pop %v2199
    %v2201 = vmul.f32 1.0, %v2200
    %v2202 = vmul.f32 %v2194, %v1893
    %v2203 = vmul.f32 %v2188, %v2195
    %v2204 = vadd.f32 %v2202, %v2203
    %v2205 = vtanh.pop %v2204
    %v2206 = vmul.f32 %v2201, %v2205
    %v2207 = vpack.c.bf16 %v2206, %v2206
    %2208 = vmatprep.subr.bf16.mxu0 %v516
    %2209 = vmatpush1.bf16.msra.mxu0 %v515
    %2210 = vmatprep.subr.bf16.mxu0 %v520
    %2211 = vmatpush1.bf16.msra.mxu0 %v519
    %2212 = vmatprep.subr.bf16.mxu0 %v524
    %2213 = vmatpush1.bf16.msra.mxu0 %v523
    %2214 = vmatprep.subr.bf16.mxu0 %v528
    %2215 = vmatpush1.bf16.msra.mxu0 %v527
    %2216 = vmatprep.subr.bf16.mxu0 %v532
    %2217 = vmatpush1.bf16.msra.mxu0 %v531
    %2218 = vmatprep.subr.bf16.mxu0 %v536
    %2219 = vmatpush1.bf16.msra.mxu0 %v535
    %2220 = vmatprep.subr.bf16.mxu0 %v540
    %2221 = vmatpush1.bf16.msra.mxu0 %v539
    %2222 = vmatprep.subr.bf16.mxu0 %v544
    %2223 = vmatpush1.bf16.msra.mxu0 %v543
    %2224 = vmatprep.subr.bf16.mxu0 0
    %2225 = vmatpush1.bf16.msra.mxu0 0
    %2226 = vmatprep.subr.bf16.mxu0 0
    %2227 = vmatpush1.bf16.msra.mxu0 0
    %2228 = vmatprep.subr.bf16.mxu0 0
    %2229 = vmatpush1.bf16.msra.mxu0 0
    %2230 = vmatprep.subr.bf16.mxu0 0
    %2231 = vmatpush1.bf16.msra.mxu0 0
    %2232 = vmatprep.subr.bf16.mxu0 0
    %2233 = vmatpush1.bf16.msra.mxu0 0
    %2234 = vmatprep.subr.bf16.mxu0 0
    %2235 = vmatpush1.bf16.msra.mxu0 0
    %2236 = vmatprep.subr.bf16.mxu0 0
    %2237 = vmatpush1.bf16.msra.mxu0 0
    %2238 = vmatprep.subr.bf16.mxu0 0
    %2239 = vmatpush1.bf16.msra.mxu0 0
    %2240 = vmatprep.mubr.bf16.mxu0 0
    %2241 = vmatmul.mubr.bf16.gmra.mrb[0].mxu0 %v2207
    %v2242 = vpop.f32.mrb[0].mxu0
    %v2243 = vadd.f32 0.0, %v2242
    %v2244 = vpop.f32.mrb[0].mxu0
    %v2245 = vadd.f32 0.0, %v2244
    %v2246 = vpop.f32.mrb[0].mxu0
    %v2247 = vpop.f32.mrb[0].mxu0
    %2248 = vdwg.mxu0
    %2249 = vmatprep.subr.bf16.mxu0 %v518
    %2250 = vmatpush1.bf16.msra.mxu0 %v517
    %2251 = vmatprep.subr.bf16.mxu0 %v522
    %2252 = vmatpush1.bf16.msra.mxu0 %v521
    %2253 = vmatprep.subr.bf16.mxu0 %v526
    %2254 = vmatpush1.bf16.msra.mxu0 %v525
    %2255 = vmatprep.subr.bf16.mxu0 %v530
    %2256 = vmatpush1.bf16.msra.mxu0 %v529
    %2257 = vmatprep.subr.bf16.mxu0 %v534
    %2258 = vmatpush1.bf16.msra.mxu0 %v533
    %2259 = vmatprep.subr.bf16.mxu0 %v538
    %2260 = vmatpush1.bf16.msra.mxu0 %v537
    %2261 = vmatprep.subr.bf16.mxu0 %v542
    %2262 = vmatpush1.bf16.msra.mxu0 %v541
    %2263 = vmatprep.subr.bf16.mxu0 %v546
    %2264 = vmatpush1.bf16.msra.mxu0 %v545
    %2265 = vmatprep.subr.bf16.mxu0 0
    %2266 = vmatpush1.bf16.msra.mxu0 0
    %2267 = vmatprep.subr.bf16.mxu0 0
    %2268 = vmatpush1.bf16.msra.mxu0 0
    %2269 = vmatprep.subr.bf16.mxu0 0
    %2270 = vmatpush1.bf16.msra.mxu0 0
    %2271 = vmatprep.subr.bf16.mxu0 0
    %2272 = vmatpush1.bf16.msra.mxu0 0
    %2273 = vmatprep.subr.bf16.mxu0 0
    %2274 = vmatpush1.bf16.msra.mxu0 0
    %2275 = vmatprep.subr.bf16.mxu0 0
    %2276 = vmatpush1.bf16.msra.mxu0 0
    %2277 = vmatprep.subr.bf16.mxu0 0
    %2278 = vmatpush1.bf16.msra.mxu0 0
    %2279 = vmatprep.subr.bf16.mxu0 0
    %2280 = vmatpush1.bf16.msra.mxu0 0
    %2281 = vmatprep.mubr.bf16.mxu0 0
    %2282 = vmatmul.mubr.bf16.gmra.mrb[0].mxu0 %v2207
    %v2283 = vpop.f32.mrb[0].mxu0
    %v2284 = vadd.f32 0.0, %v2283
    %v2285 = vpop.f32.mrb[0].mxu0
    %v2286 = vadd.f32 0.0, %v2285
    %v2287 = vpop.f32.mrb[0].mxu0
    %v2288 = vpop.f32.mrb[0].mxu0
    %2289 = vdwg.mxu0
    %v2294 = vrot.slane %v2046, 6
    %v2295 = vrot.slane %v2048, 6
    %v2296 = vrot.slane %v2087, 6
    %v2297 = vrot.slane %v2089, 6
    %v2302 = vadd.f32 %v317, %v2294
    %v2303 = vadd.f32 %v319, %v2295
    %v2304 = vadd.f32 %v360, %v2296
    %v2305 = vadd.f32 %v362, %v2297
    %v2306 = vxor.u32 %v2302, 2147483648
    %v2307 = vmul.f32 %v2306, 1.442695
    %v2308 = vpow.pop %v2307
    %v2309 = vadd.f32 %v2308, 1.0
    %v2310 = vrcp.pop %v2309
    %v2311 = vmul.f32 1.0, %v2310
    %v2312 = vxor.u32 %v2303, 2147483648
    %v2313 = vmul.f32 %v2312, 1.442695
    %v2314 = vpow.pop %v2313
    %v2315 = vadd.f32 %v2314, 1.0
    %v2316 = vrcp.pop %v2315
    %v2317 = vmul.f32 1.0, %v2316
    %v2318 = vtanh.pop %v2304
    %v2319 = vxor.u32 %v2305, 2147483648
    %v2320 = vmul.f32 %v2319, 1.442695
    %v2321 = vpow.pop %v2320
    %v2322 = vadd.f32 %v2321, 1.0
    %v2323 = vrcp.pop %v2322
    %v2324 = vmul.f32 1.0, %v2323
    %v2326 = vrot.slane %v2007, 6
    %v2328 = vmul.f32 %v2317, %v2326
    %v2329 = vmul.f32 %v2311, %v2318
    %v2330 = vadd.f32 %v2328, %v2329
    %v2331 = vtanh.pop %v2330
    %v2332 = vmul.f32 %v2324, %v2331
    %v2333 = vpack.c.bf16 %v2332, %v2332
    %v2335 = vrot.slane %v2333, 1
    %2337 = vmatprep.subr.bf16.mxu0 %v659
    %2338 = vmatpush1.bf16.msra.mxu0 %v658
    %2339 = vmatprep.subr.bf16.mxu0 %v667
    %2340 = vmatpush1.bf16.msra.mxu0 %v666
    %2341 = vmatprep.subr.bf16.mxu0 %v675
    %2342 = vmatpush1.bf16.msra.mxu0 %v674
    %2343 = vmatprep.subr.bf16.mxu0 %v683
    %2344 = vmatpush1.bf16.msra.mxu0 %v682
    %2345 = vmatprep.subr.bf16.mxu0 %v691
    %2346 = vmatpush1.bf16.msra.mxu0 %v690
    %2347 = vmatprep.subr.bf16.mxu0 %v699
    %2348 = vmatpush1.bf16.msra.mxu0 %v698
    %2349 = vmatprep.subr.bf16.mxu0 %v707
    %2350 = vmatpush1.bf16.msra.mxu0 %v706
    %2351 = vmatprep.subr.bf16.mxu0 %v715
    %2352 = vmatpush1.bf16.msra.mxu0 %v714
    %2353 = vmatprep.subr.bf16.mxu0 0
    %2354 = vmatpush1.bf16.msra.mxu0 0
    %2355 = vmatprep.subr.bf16.mxu0 0
    %2356 = vmatpush1.bf16.msra.mxu0 0
    %2357 = vmatprep.subr.bf16.mxu0 0
    %2358 = vmatpush1.bf16.msra.mxu0 0
    %2359 = vmatprep.subr.bf16.mxu0 0
    %2360 = vmatpush1.bf16.msra.mxu0 0
    %2361 = vmatprep.subr.bf16.mxu0 0
    %2362 = vmatpush1.bf16.msra.mxu0 0
    %2363 = vmatprep.subr.bf16.mxu0 0
    %2364 = vmatpush1.bf16.msra.mxu0 0
    %2365 = vmatprep.subr.bf16.mxu0 0
    %2366 = vmatpush1.bf16.msra.mxu0 0
    %2367 = vmatprep.subr.bf16.mxu0 0
    %2368 = vmatpush1.bf16.msra.mxu0 0
    %2369 = vmatprep.mubr.bf16.mxu0 0
    %2370 = vmatmul.mubr.bf16.gmra.mrb[0].mxu0 %v2335
    %v2371 = vpop.f32.mrb[0].mxu0
    %v2372 = vadd.f32 0.0, %v2371
    %v2373 = vpop.f32.mrb[0].mxu0
    %v2374 = vadd.f32 0.0, %v2373
    %v2375 = vpop.f32.mrb[0].mxu0
    %v2376 = vpop.f32.mrb[0].mxu0
    %2377 = vdwg.mxu0
    %2378 = vmatprep.subr.bf16.mxu0 %v661
    %2379 = vmatpush1.bf16.msra.mxu0 %v660
    %2380 = vmatprep.subr.bf16.mxu0 %v669
    %2381 = vmatpush1.bf16.msra.mxu0 %v668
    %2382 = vmatprep.subr.bf16.mxu0 %v677
    %2383 = vmatpush1.bf16.msra.mxu0 %v676
    %2384 = vmatprep.subr.bf16.mxu0 %v685
    %2385 = vmatpush1.bf16.msra.mxu0 %v684
    %2386 = vmatprep.subr.bf16.mxu0 %v693
    %2387 = vmatpush1.bf16.msra.mxu0 %v692
    %2388 = vmatprep.subr.bf16.mxu0 %v701
    %2389 = vmatpush1.bf16.msra.mxu0 %v700
    %2390 = vmatprep.subr.bf16.mxu0 %v709
    %2391 = vmatpush1.bf16.msra.mxu0 %v708
    %2392 = vmatprep.subr.bf16.mxu0 %v717
    %2393 = vmatpush1.bf16.msra.mxu0 %v716
    %2394 = vmatprep.subr.bf16.mxu0 0
    %2395 = vmatpush1.bf16.msra.mxu0 0
    %2396 = vmatprep.subr.bf16.mxu0 0
    %2397 = vmatpush1.bf16.msra.mxu0 0
    %2398 = vmatprep.subr.bf16.mxu0 0
    %2399 = vmatpush1.bf16.msra.mxu0 0
    %2400 = vmatprep.subr.bf16.mxu0 0
    %2401 = vmatpush1.bf16.msra.mxu0 0
    %2402 = vmatprep.subr.bf16.mxu0 0
    %2403 = vmatpush1.bf16.msra.mxu0 0
    %2404 = vmatprep.subr.bf16.mxu0 0
    %2405 = vmatpush1.bf16.msra.mxu0 0
    %2406 = vmatprep.subr.bf16.mxu0 0
    %2407 = vmatpush1.bf16.msra.mxu0 0
    %2408 = vmatprep.subr.bf16.mxu0 0
    %2409 = vmatpush1.bf16.msra.mxu0 0
    %2410 = vmatprep.mubr.bf16.mxu0 0
    %2411 = vmatmul.mubr.bf16.gmra.mrb[0].mxu0 %v2335
    %v2412 = vpop.f32.mrb[0].mxu0
    %v2413 = vadd.f32 0.0, %v2412
    %v2414 = vpop.f32.mrb[0].mxu0
    %v2415 = vadd.f32 0.0, %v2414
    %v2416 = vpop.f32.mrb[0].mxu0
    %v2417 = vpop.f32.mrb[0].mxu0
    %2418 = vdwg.mxu0
    %2419 = vmatprep.subr.bf16.mxu0 %v663
    %2420 = vmatpush1.bf16.msra.mxu0 %v662
    %2421 = vmatprep.subr.bf16.mxu0 %v671
    %2422 = vmatpush1.bf16.msra.mxu0 %v670
    %2423 = vmatprep.subr.bf16.mxu0 %v679
    %2424 = vmatpush1.bf16.msra.mxu0 %v678
    %2425 = vmatprep.subr.bf16.mxu0 %v687
    %2426 = vmatpush1.bf16.msra.mxu0 %v686
    %2427 = vmatprep.subr.bf16.mxu0 %v695
    %2428 = vmatpush1.bf16.msra.mxu0 %v694
    %2429 = vmatprep.subr.bf16.mxu0 %v703
    %2430 = vmatpush1.bf16.msra.mxu0 %v702
    %2431 = vmatprep.subr.bf16.mxu0 %v711
    %2432 = vmatpush1.bf16.msra.mxu0 %v710
    %2433 = vmatprep.subr.bf16.mxu0 %v719
    %2434 = vmatpush1.bf16.msra.mxu0 %v718
    %2435 = vmatprep.subr.bf16.mxu0 0
    %2436 = vmatpush1.bf16.msra.mxu0 0
    %2437 = vmatprep.subr.bf16.mxu0 0
    %2438 = vmatpush1.bf16.msra.mxu0 0
    %2439 = vmatprep.subr.bf16.mxu0 0
    %2440 = vmatpush1.bf16.msra.mxu0 0
    %2441 = vmatprep.subr.bf16.mxu0 0
    %2442 = vmatpush1.bf16.msra.mxu0 0
    %2443 = vmatprep.subr.bf16.mxu0 0
    %2444 = vmatpush1.bf16.msra.mxu0 0
    %2445 = vmatprep.subr.bf16.mxu0 0
    %2446 = vmatpush1.bf16.msra.mxu0 0
    %2447 = vmatprep.subr.bf16.mxu0 0
    %2448 = vmatpush1.bf16.msra.mxu0 0
    %2449 = vmatprep.subr.bf16.mxu0 0
    %2450 = vmatpush1.bf16.msra.mxu0 0
    %2451 = vmatprep.mubr.bf16.mxu0 0
    %2452 = vmatmul.mubr.bf16.gmra.mrb[0].mxu0 %v2335
    %v2453 = vpop.f32.mrb[0].mxu0
    %v2454 = vadd.f32 0.0, %v2453
    %v2455 = vpop.f32.mrb[0].mxu0
    %v2456 = vadd.f32 0.0, %v2455
    %v2457 = vpop.f32.mrb[0].mxu0
    %v2458 = vpop.f32.mrb[0].mxu0
    %2459 = vdwg.mxu0
    %2460 = vmatprep.subr.bf16.mxu0 %v665
    %2461 = vmatpush1.bf16.msra.mxu0 %v664
    %2462 = vmatprep.subr.bf16.mxu0 %v673
    %2463 = vmatpush1.bf16.msra.mxu0 %v672
    %2464 = vmatprep.subr.bf16.mxu0 %v681
    %2465 = vmatpush1.bf16.msra.mxu0 %v680
    %2466 = vmatprep.subr.bf16.mxu0 %v689
    %2467 = vmatpush1.bf16.msra.mxu0 %v688
    %2468 = vmatprep.subr.bf16.mxu0 %v697
    %2469 = vmatpush1.bf16.msra.mxu0 %v696
    %2470 = vmatprep.subr.bf16.mxu0 %v705
    %2471 = vmatpush1.bf16.msra.mxu0 %v704
    %2472 = vmatprep.subr.bf16.mxu0 %v713
    %2473 = vmatpush1.bf16.msra.mxu0 %v712
    %2474 = vmatprep.subr.bf16.mxu0 %v721
    %2475 = vmatpush1.bf16.msra.mxu0 %v720
    %2476 = vmatprep.subr.bf16.mxu0 0
    %2477 = vmatpush1.bf16.msra.mxu0 0
    %2478 = vmatprep.subr.bf16.mxu0 0
    %2479 = vmatpush1.bf16.msra.mxu0 0
    %2480 = vmatprep.subr.bf16.mxu0 0
    %2481 = vmatpush1.bf16.msra.mxu0 0
    %2482 = vmatprep.subr.bf16.mxu0 0
    %2483 = vmatpush1.bf16.msra.mxu0 0
    %2484 = vmatprep.subr.bf16.mxu0 0
    %2485 = vmatpush1.bf16.msra.mxu0 0
    %2486 = vmatprep.subr.bf16.mxu0 0
    %2487 = vmatpush1.bf16.msra.mxu0 0
    %2488 = vmatprep.subr.bf16.mxu0 0
    %2489 = vmatpush1.bf16.msra.mxu0 0
    %2490 = vmatprep.subr.bf16.mxu0 0
    %2491 = vmatpush1.bf16.msra.mxu0 0
    %2492 = vmatprep.mubr.bf16.mxu0 0
    %2493 = vmatmul.mubr.bf16.gmra.mrb[0].mxu0 %v2335
    %v2494 = vpop.f32.mrb[0].mxu0
    %v2495 = vadd.f32 0.0, %v2494
    %v2496 = vpop.f32.mrb[0].mxu0
    %v2497 = vadd.f32 0.0, %v2496
    %v2498 = vpop.f32.mrb[0].mxu0
    %v2499 = vpop.f32.mrb[0].mxu0
    %2500 = vdwg.mxu0
    %v2501 = vadd.f32 %v2454, %v2243
    %v2502 = vadd.f32 %v2456, %v2245
    %v2503 = vadd.f32 %v2495, %v2284
    %v2504 = vadd.f32 %v2497, %v2286
    %v2505 = vadd.f32 %v2501, %v369
    %v2506 = vadd.f32 %v2502, %v373
    %v2507 = vadd.f32 %v2503, %v377
    %v2508 = vadd.f32 %v2504, %v381
    %v2509 = vxor.u32 %v2505, 2147483648
    %v2510 = vmul.f32 %v2509, 1.442695
    %v2511 = vpow.pop %v2510
    %v2512 = vadd.f32 %v2511, 1.0
    %v2513 = vrcp.pop %v2512
    %v2514 = vmul.f32 1.0, %v2513
    %v2515 = vxor.u32 %v2506, 2147483648
    %v2516 = vmul.f32 %v2515, 1.442695
    %v2517 = vpow.pop %v2516
    %v2518 = vadd.f32 %v2517, 1.0
    %v2519 = vrcp.pop %v2518
    %v2520 = vmul.f32 1.0, %v2519
    %v2521 = vtanh.pop %v2507
    %v2522 = vxor.u32 %v2508, 2147483648
    %v2523 = vmul.f32 %v2522, 1.442695
    %v2524 = vpow.pop %v2523
    %v2525 = vadd.f32 %v2524, 1.0
    %v2526 = vrcp.pop %v2525
    %v2527 = vmul.f32 1.0, %v2526
    %v2528 = vmul.f32 %v2520, %v2204
    %v2529 = vmul.f32 %v2514, %v2521
    %v2530 = vadd.f32 %v2528, %v2529
    %v2531 = vtanh.pop %v2530
    %v2532 = vmul.f32 %v2527, %v2531
    %v2533 = vpack.c.bf16 %v2532, %v2532
    %2534 = vmatprep.subr.bf16.mxu0 %v516
    %2535 = vmatpush1.bf16.msra.mxu0 %v515
    %2536 = vmatprep.subr.bf16.mxu0 %v520
    %2537 = vmatpush1.bf16.msra.mxu0 %v519
    %2538 = vmatprep.subr.bf16.mxu0 %v524
    %2539 = vmatpush1.bf16.msra.mxu0 %v523
    %2540 = vmatprep.subr.bf16.mxu0 %v528
    %2541 = vmatpush1.bf16.msra.mxu0 %v527
    %2542 = vmatprep.subr.bf16.mxu0 %v532
    %2543 = vmatpush1.bf16.msra.mxu0 %v531
    %2544 = vmatprep.subr.bf16.mxu0 %v536
    %2545 = vmatpush1.bf16.msra.mxu0 %v535
    %2546 = vmatprep.subr.bf16.mxu0 %v540
    %2547 = vmatpush1.bf16.msra.mxu0 %v539
    %2548 = vmatprep.subr.bf16.mxu0 %v544
    %2549 = vmatpush1.bf16.msra.mxu0 %v543
    %2550 = vmatprep.subr.bf16.mxu0 0
    %2551 = vmatpush1.bf16.msra.mxu0 0
    %2552 = vmatprep.subr.bf16.mxu0 0
    %2553 = vmatpush1.bf16.msra.mxu0 0
    %2554 = vmatprep.subr.bf16.mxu0 0
    %2555 = vmatpush1.bf16.msra.mxu0 0
    %2556 = vmatprep.subr.bf16.mxu0 0
    %2557 = vmatpush1.bf16.msra.mxu0 0
    %2558 = vmatprep.subr.bf16.mxu0 0
    %2559 = vmatpush1.bf16.msra.mxu0 0
    %2560 = vmatprep.subr.bf16.mxu0 0
    %2561 = vmatpush1.bf16.msra.mxu0 0
    %2562 = vmatprep.subr.bf16.mxu0 0
    %2563 = vmatpush1.bf16.msra.mxu0 0
    %2564 = vmatprep.subr.bf16.mxu0 0
    %2565 = vmatpush1.bf16.msra.mxu0 0
    %2566 = vmatprep.mubr.bf16.mxu0 0
    %2567 = vmatmul.mubr.bf16.gmra.mrb[0].mxu0 %v2533
    %v2568 = vpop.f32.mrb[0].mxu0
    %v2569 = vadd.f32 0.0, %v2568
    %v2570 = vpop.f32.mrb[0].mxu0
    %v2571 = vadd.f32 0.0, %v2570
    %v2572 = vpop.f32.mrb[0].mxu0
    %v2573 = vpop.f32.mrb[0].mxu0
    %2574 = vdwg.mxu0
    %2575 = vmatprep.subr.bf16.mxu0 %v518
    %2576 = vmatpush1.bf16.msra.mxu0 %v517
    %2577 = vmatprep.subr.bf16.mxu0 %v522
    %2578 = vmatpush1.bf16.msra.mxu0 %v521
    %2579 = vmatprep.subr.bf16.mxu0 %v526
    %2580 = vmatpush1.bf16.msra.mxu0 %v525
    %2581 = vmatprep.subr.bf16.mxu0 %v530
    %2582 = vmatpush1.bf16.msra.mxu0 %v529
    %2583 = vmatprep.subr.bf16.mxu0 %v534
    %2584 = vmatpush1.bf16.msra.mxu0 %v533
    %2585 = vmatprep.subr.bf16.mxu0 %v538
    %2586 = vmatpush1.bf16.msra.mxu0 %v537
    %2587 = vmatprep.subr.bf16.mxu0 %v542
    %2588 = vmatpush1.bf16.msra.mxu0 %v541
    %2589 = vmatprep.subr.bf16.mxu0 %v546
    %2590 = vmatpush1.bf16.msra.mxu0 %v545
    %2591 = vmatprep.subr.bf16.mxu0 0
    %2592 = vmatpush1.bf16.msra.mxu0 0
    %2593 = vmatprep.subr.bf16.mxu0 0
    %2594 = vmatpush1.bf16.msra.mxu0 0
    %2595 = vmatprep.subr.bf16.mxu0 0
    %2596 = vmatpush1.bf16.msra.mxu0 0
    %2597 = vmatprep.subr.bf16.mxu0 0
    %2598 = vmatpush1.bf16.msra.mxu0 0
    %2599 = vmatprep.subr.bf16.mxu0 0
    %2600 = vmatpush1.bf16.msra.mxu0 0
    %2601 = vmatprep.subr.bf16.mxu0 0
    %2602 = vmatpush1.bf16.msra.mxu0 0
    %2603 = vmatprep.subr.bf16.mxu0 0
    %2604 = vmatpush1.bf16.msra.mxu0 0
    %2605 = vmatprep.subr.bf16.mxu0 0
    %2606 = vmatpush1.bf16.msra.mxu0 0
    %2607 = vmatprep.mubr.bf16.mxu0 0
    %2608 = vmatmul.mubr.bf16.gmra.mrb[0].mxu0 %v2533
    %v2609 = vpop.f32.mrb[0].mxu0
    %v2610 = vadd.f32 0.0, %v2609
    %v2611 = vpop.f32.mrb[0].mxu0
    %v2612 = vadd.f32 0.0, %v2611
    %v2613 = vpop.f32.mrb[0].mxu0
    %v2614 = vpop.f32.mrb[0].mxu0
    %2615 = vdwg.mxu0
    %v2620 = vrot.slane %v2372, 4
    %v2621 = vrot.slane %v2374, 4
    %v2622 = vrot.slane %v2413, 4
    %v2623 = vrot.slane %v2415, 4
    %v2628 = vadd.f32 %v317, %v2620
    %v2629 = vadd.f32 %v319, %v2621
    %v2630 = vadd.f32 %v360, %v2622
    %v2631 = vadd.f32 %v362, %v2623
    %v2632 = vxor.u32 %v2628, 2147483648
    %v2633 = vmul.f32 %v2632, 1.442695
    %v2634 = vpow.pop %v2633
    %v2635 = vadd.f32 %v2634, 1.0
    %v2636 = vrcp.pop %v2635
    %v2637 = vmul.f32 1.0, %v2636
    %v2638 = vxor.u32 %v2629, 2147483648
    %v2639 = vmul.f32 %v2638, 1.442695
    %v2640 = vpow.pop %v2639
    %v2641 = vadd.f32 %v2640, 1.0
    %v2642 = vrcp.pop %v2641
    %v2643 = vmul.f32 1.0, %v2642
    %v2644 = vtanh.pop %v2630
    %v2645 = vxor.u32 %v2631, 2147483648
    %v2646 = vmul.f32 %v2645, 1.442695
    %v2647 = vpow.pop %v2646
    %v2648 = vadd.f32 %v2647, 1.0
    %v2649 = vrcp.pop %v2648
    %v2650 = vmul.f32 1.0, %v2649
    %v2652 = vrot.slane %v2330, 6
    %v2654 = vmul.f32 %v2643, %v2652
    %v2655 = vmul.f32 %v2637, %v2644
    %v2656 = vadd.f32 %v2654, %v2655
    %v2657 = vtanh.pop %v2656
    %v2658 = vmul.f32 %v2650, %v2657
    %v2659 = vpack.c.bf16 %v2658, %v2658
    %v2661 = vrot.slane %v2659, 2
    %2663 = vmatprep.subr.bf16.mxu0 %v659
    %2664 = vmatpush1.bf16.msra.mxu0 %v658
    %2665 = vmatprep.subr.bf16.mxu0 %v667
    %2666 = vmatpush1.bf16.msra.mxu0 %v666
    %2667 = vmatprep.subr.bf16.mxu0 %v675
    %2668 = vmatpush1.bf16.msra.mxu0 %v674
    %2669 = vmatprep.subr.bf16.mxu0 %v683
    %2670 = vmatpush1.bf16.msra.mxu0 %v682
    %2671 = vmatprep.subr.bf16.mxu0 %v691
    %2672 = vmatpush1.bf16.msra.mxu0 %v690
    %2673 = vmatprep.subr.bf16.mxu0 %v699
    %2674 = vmatpush1.bf16.msra.mxu0 %v698
    %2675 = vmatprep.subr.bf16.mxu0 %v707
    %2676 = vmatpush1.bf16.msra.mxu0 %v706
    %2677 = vmatprep.subr.bf16.mxu0 %v715
    %2678 = vmatpush1.bf16.msra.mxu0 %v714
    %2679 = vmatprep.subr.bf16.mxu0 0
    %2680 = vmatpush1.bf16.msra.mxu0 0
    %2681 = vmatprep.subr.bf16.mxu0 0
    %2682 = vmatpush1.bf16.msra.mxu0 0
    %2683 = vmatprep.subr.bf16.mxu0 0
    %2684 = vmatpush1.bf16.msra.mxu0 0
    %2685 = vmatprep.subr.bf16.mxu0 0
    %2686 = vmatpush1.bf16.msra.mxu0 0
    %2687 = vmatprep.subr.bf16.mxu0 0
    %2688 = vmatpush1.bf16.msra.mxu0 0
    %2689 = vmatprep.subr.bf16.mxu0 0
    %2690 = vmatpush1.bf16.msra.mxu0 0
    %2691 = vmatprep.subr.bf16.mxu0 0
    %2692 = vmatpush1.bf16.msra.mxu0 0
    %2693 = vmatprep.subr.bf16.mxu0 0
    %2694 = vmatpush1.bf16.msra.mxu0 0
    %2695 = vmatprep.mubr.bf16.mxu0 0
    %2696 = vmatmul.mubr.bf16.gmra.mrb[0].mxu0 %v2661
    %v2697 = vpop.f32.mrb[0].mxu0
    %v2698 = vadd.f32 0.0, %v2697
    %v2699 = vpop.f32.mrb[0].mxu0
    %v2700 = vadd.f32 0.0, %v2699
    %v2701 = vpop.f32.mrb[0].mxu0
    %v2702 = vpop.f32.mrb[0].mxu0
    %2703 = vdwg.mxu0
    %2704 = vmatprep.subr.bf16.mxu0 %v661
    %2705 = vmatpush1.bf16.msra.mxu0 %v660
    %2706 = vmatprep.subr.bf16.mxu0 %v669
    %2707 = vmatpush1.bf16.msra.mxu0 %v668
    %2708 = vmatprep.subr.bf16.mxu0 %v677
    %2709 = vmatpush1.bf16.msra.mxu0 %v676
    %2710 = vmatprep.subr.bf16.mxu0 %v685
    %2711 = vmatpush1.bf16.msra.mxu0 %v684
    %2712 = vmatprep.subr.bf16.mxu0 %v693
    %2713 = vmatpush1.bf16.msra.mxu0 %v692
    %2714 = vmatprep.subr.bf16.mxu0 %v701
    %2715 = vmatpush1.bf16.msra.mxu0 %v700
    %2716 = vmatprep.subr.bf16.mxu0 %v709
    %2717 = vmatpush1.bf16.msra.mxu0 %v708
    %2718 = vmatprep.subr.bf16.mxu0 %v717
    %2719 = vmatpush1.bf16.msra.mxu0 %v716
    %2720 = vmatprep.subr.bf16.mxu0 0
    %2721 = vmatpush1.bf16.msra.mxu0 0
    %2722 = vmatprep.subr.bf16.mxu0 0
    %2723 = vmatpush1.bf16.msra.mxu0 0
    %2724 = vmatprep.subr.bf16.mxu0 0
    %2725 = vmatpush1.bf16.msra.mxu0 0
    %2726 = vmatprep.subr.bf16.mxu0 0
    %2727 = vmatpush1.bf16.msra.mxu0 0
    %2728 = vmatprep.subr.bf16.mxu0 0
    %2729 = vmatpush1.bf16.msra.mxu0 0
    %2730 = vmatprep.subr.bf16.mxu0 0
    %2731 = vmatpush1.bf16.msra.mxu0 0
    %2732 = vmatprep.subr.bf16.mxu0 0
    %2733 = vmatpush1.bf16.msra.mxu0 0
    %2734 = vmatprep.subr.bf16.mxu0 0
    %2735 = vmatpush1.bf16.msra.mxu0 0
    %2736 = vmatprep.mubr.bf16.mxu0 0
    %2737 = vmatmul.mubr.bf16.gmra.mrb[0].mxu0 %v2661
    %v2738 = vpop.f32.mrb[0].mxu0
    %v2739 = vadd.f32 0.0, %v2738
    %v2740 = vpop.f32.mrb[0].mxu0
    %v2741 = vadd.f32 0.0, %v2740
    %v2742 = vpop.f32.mrb[0].mxu0
    %v2743 = vpop.f32.mrb[0].mxu0
    %2744 = vdwg.mxu0
    %2745 = vmatprep.subr.bf16.mxu0 %v663
    %2746 = vmatpush1.bf16.msra.mxu0 %v662
    %2747 = vmatprep.subr.bf16.mxu0 %v671
    %2748 = vmatpush1.bf16.msra.mxu0 %v670
    %2749 = vmatprep.subr.bf16.mxu0 %v679
    %2750 = vmatpush1.bf16.msra.mxu0 %v678
    %2751 = vmatprep.subr.bf16.mxu0 %v687
    %2752 = vmatpush1.bf16.msra.mxu0 %v686
    %2753 = vmatprep.subr.bf16.mxu0 %v695
    %2754 = vmatpush1.bf16.msra.mxu0 %v694
    %2755 = vmatprep.subr.bf16.mxu0 %v703
    %2756 = vmatpush1.bf16.msra.mxu0 %v702
    %2757 = vmatprep.subr.bf16.mxu0 %v711
    %2758 = vmatpush1.bf16.msra.mxu0 %v710
    %2759 = vmatprep.subr.bf16.mxu0 %v719
    %2760 = vmatpush1.bf16.msra.mxu0 %v718
    %2761 = vmatprep.subr.bf16.mxu0 0
    %2762 = vmatpush1.bf16.msra.mxu0 0
    %2763 = vmatprep.subr.bf16.mxu0 0
    %2764 = vmatpush1.bf16.msra.mxu0 0
    %2765 = vmatprep.subr.bf16.mxu0 0
    %2766 = vmatpush1.bf16.msra.mxu0 0
    %2767 = vmatprep.subr.bf16.mxu0 0
    %2768 = vmatpush1.bf16.msra.mxu0 0
    %2769 = vmatprep.subr.bf16.mxu0 0
    %2770 = vmatpush1.bf16.msra.mxu0 0
    %2771 = vmatprep.subr.bf16.mxu0 0
    %2772 = vmatpush1.bf16.msra.mxu0 0
    %2773 = vmatprep.subr.bf16.mxu0 0
    %2774 = vmatpush1.bf16.msra.mxu0 0
    %2775 = vmatprep.subr.bf16.mxu0 0
    %2776 = vmatpush1.bf16.msra.mxu0 0
    %2777 = vmatprep.mubr.bf16.mxu0 0
    %2778 = vmatmul.mubr.bf16.gmra.mrb[0].mxu0 %v2661
    %v2779 = vpop.f32.mrb[0].mxu0
    %v2780 = vadd.f32 0.0, %v2779
    %v2781 = vpop.f32.mrb[0].mxu0
    %v2782 = vadd.f32 0.0, %v2781
    %v2783 = vpop.f32.mrb[0].mxu0
    %v2784 = vpop.f32.mrb[0].mxu0
    %2785 = vdwg.mxu0
    %2786 = vmatprep.subr.bf16.mxu0 %v665
    %2787 = vmatpush1.bf16.msra.mxu0 %v664
    %2788 = vmatprep.subr.bf16.mxu0 %v673
    %2789 = vmatpush1.bf16.msra.mxu0 %v672
    %2790 = vmatprep.subr.bf16.mxu0 %v681
    %2791 = vmatpush1.bf16.msra.mxu0 %v680
    %2792 = vmatprep.subr.bf16.mxu0 %v689
    %2793 = vmatpush1.bf16.msra.mxu0 %v688
    %2794 = vmatprep.subr.bf16.mxu0 %v697
    %2795 = vmatpush1.bf16.msra.mxu0 %v696
    %2796 = vmatprep.subr.bf16.mxu0 %v705
    %2797 = vmatpush1.bf16.msra.mxu0 %v704
    %2798 = vmatprep.subr.bf16.mxu0 %v713
    %2799 = vmatpush1.bf16.msra.mxu0 %v712
    %2800 = vmatprep.subr.bf16.mxu0 %v721
    %2801 = vmatpush1.bf16.msra.mxu0 %v720
    %2802 = vmatprep.subr.bf16.mxu0 0
    %2803 = vmatpush1.bf16.msra.mxu0 0
    %2804 = vmatprep.subr.bf16.mxu0 0
    %2805 = vmatpush1.bf16.msra.mxu0 0
    %2806 = vmatprep.subr.bf16.mxu0 0
    %2807 = vmatpush1.bf16.msra.mxu0 0
    %2808 = vmatprep.subr.bf16.mxu0 0
    %2809 = vmatpush1.bf16.msra.mxu0 0
    %2810 = vmatprep.subr.bf16.mxu0 0
    %2811 = vmatpush1.bf16.msra.mxu0 0
    %2812 = vmatprep.subr.bf16.mxu0 0
    %2813 = vmatpush1.bf16.msra.mxu0 0
    %2814 = vmatprep.subr.bf16.mxu0 0
    %2815 = vmatpush1.bf16.msra.mxu0 0
    %2816 = vmatprep.subr.bf16.mxu0 0
    %2817 = vmatpush1.bf16.msra.mxu0 0
    %2818 = vmatprep.mubr.bf16.mxu0 0
    %2819 = vmatmul.mubr.bf16.gmra.mrb[0].mxu0 %v2661
    %v2820 = vpop.f32.mrb[0].mxu0
    %v2821 = vadd.f32 0.0, %v2820
    %v2822 = vpop.f32.mrb[0].mxu0
    %v2823 = vadd.f32 0.0, %v2822
    %v2824 = vpop.f32.mrb[0].mxu0
    %v2825 = vpop.f32.mrb[0].mxu0
    %2826 = vdwg.mxu0
    %v2827 = vadd.f32 %v2780, %v2569
    %v2828 = vadd.f32 %v2782, %v2571
    %v2829 = vadd.f32 %v2821, %v2610
    %v2830 = vadd.f32 %v2823, %v2612
    %v2831 = vadd.f32 %v2827, %v369
    %v2832 = vadd.f32 %v2828, %v373
    %v2833 = vadd.f32 %v2829, %v377
    %v2834 = vadd.f32 %v2830, %v381
    %v2835 = vxor.u32 %v2831, 2147483648
    %v2836 = vmul.f32 %v2835, 1.442695
    %v2837 = vpow.pop %v2836
    %v2838 = vadd.f32 %v2837, 1.0
    %v2839 = vrcp.pop %v2838
    %v2840 = vmul.f32 1.0, %v2839
    %v2841 = vxor.u32 %v2832, 2147483648
    %v2842 = vmul.f32 %v2841, 1.442695
    %v2843 = vpow.pop %v2842
    %v2844 = vadd.f32 %v2843, 1.0
    %v2845 = vrcp.pop %v2844
    %v2846 = vmul.f32 1.0, %v2845
    %v2847 = vtanh.pop %v2833
    %v2848 = vxor.u32 %v2834, 2147483648
    %v2849 = vmul.f32 %v2848, 1.442695
    %v2850 = vpow.pop %v2849
    %v2851 = vadd.f32 %v2850, 1.0
    %v2852 = vrcp.pop %v2851
    %v2853 = vmul.f32 1.0, %v2852
    %v2854 = vmul.f32 %v2846, %v2530
    %v2855 = vmul.f32 %v2840, %v2847
    %v2856 = vadd.f32 %v2854, %v2855
    %v2857 = vtanh.pop %v2856
    %v2858 = vmul.f32 %v2853, %v2857
    %v2859 = vpack.c.bf16 %v2858, %v2858
    %2860 = vmatprep.subr.bf16.mxu0 %v516
    %2861 = vmatpush1.bf16.msra.mxu0 %v515
    %2862 = vmatprep.subr.bf16.mxu0 %v520
    %2863 = vmatpush1.bf16.msra.mxu0 %v519
    %2864 = vmatprep.subr.bf16.mxu0 %v524
    %2865 = vmatpush1.bf16.msra.mxu0 %v523
    %2866 = vmatprep.subr.bf16.mxu0 %v528
    %2867 = vmatpush1.bf16.msra.mxu0 %v527
    %2868 = vmatprep.subr.bf16.mxu0 %v532
    %2869 = vmatpush1.bf16.msra.mxu0 %v531
    %2870 = vmatprep.subr.bf16.mxu0 %v536
    %2871 = vmatpush1.bf16.msra.mxu0 %v535
    %2872 = vmatprep.subr.bf16.mxu0 %v540
    %2873 = vmatpush1.bf16.msra.mxu0 %v539
    %2874 = vmatprep.subr.bf16.mxu0 %v544
    %2875 = vmatpush1.bf16.msra.mxu0 %v543
    %2876 = vmatprep.subr.bf16.mxu0 0
    %2877 = vmatpush1.bf16.msra.mxu0 0
    %2878 = vmatprep.subr.bf16.mxu0 0
    %2879 = vmatpush1.bf16.msra.mxu0 0
    %2880 = vmatprep.subr.bf16.mxu0 0
    %2881 = vmatpush1.bf16.msra.mxu0 0
    %2882 = vmatprep.subr.bf16.mxu0 0
    %2883 = vmatpush1.bf16.msra.mxu0 0
    %2884 = vmatprep.subr.bf16.mxu0 0
    %2885 = vmatpush1.bf16.msra.mxu0 0
    %2886 = vmatprep.subr.bf16.mxu0 0
    %2887 = vmatpush1.bf16.msra.mxu0 0
    %2888 = vmatprep.subr.bf16.mxu0 0
    %2889 = vmatpush1.bf16.msra.mxu0 0
    %2890 = vmatprep.subr.bf16.mxu0 0
    %2891 = vmatpush1.bf16.msra.mxu0 0
    %2892 = vmatprep.mubr.bf16.mxu0 0
    %2893 = vmatmul.mubr.bf16.gmra.mrb[0].mxu0 %v2859
    %v2894 = vpop.f32.mrb[0].mxu0
    %v2895 = vadd.f32 0.0, %v2894
    %v2896 = vpop.f32.mrb[0].mxu0
    %v2897 = vadd.f32 0.0, %v2896
    %v2898 = vpop.f32.mrb[0].mxu0
    %v2899 = vpop.f32.mrb[0].mxu0
    %2900 = vdwg.mxu0
    %2901 = vmatprep.subr.bf16.mxu0 %v518
    %2902 = vmatpush1.bf16.msra.mxu0 %v517
    %2903 = vmatprep.subr.bf16.mxu0 %v522
    %2904 = vmatpush1.bf16.msra.mxu0 %v521
    %2905 = vmatprep.subr.bf16.mxu0 %v526
    %2906 = vmatpush1.bf16.msra.mxu0 %v525
    %2907 = vmatprep.subr.bf16.mxu0 %v530
    %2908 = vmatpush1.bf16.msra.mxu0 %v529
    %2909 = vmatprep.subr.bf16.mxu0 %v534
    %2910 = vmatpush1.bf16.msra.mxu0 %v533
    %2911 = vmatprep.subr.bf16.mxu0 %v538
    %2912 = vmatpush1.bf16.msra.mxu0 %v537
    %2913 = vmatprep.subr.bf16.mxu0 %v542
    %2914 = vmatpush1.bf16.msra.mxu0 %v541
    %2915 = vmatprep.subr.bf16.mxu0 %v546
    %2916 = vmatpush1.bf16.msra.mxu0 %v545
    %2917 = vmatprep.subr.bf16.mxu0 0
    %2918 = vmatpush1.bf16.msra.mxu0 0
    %2919 = vmatprep.subr.bf16.mxu0 0
    %2920 = vmatpush1.bf16.msra.mxu0 0
    %2921 = vmatprep.subr.bf16.mxu0 0
    %2922 = vmatpush1.bf16.msra.mxu0 0
    %2923 = vmatprep.subr.bf16.mxu0 0
    %2924 = vmatpush1.bf16.msra.mxu0 0
    %2925 = vmatprep.subr.bf16.mxu0 0
    %2926 = vmatpush1.bf16.msra.mxu0 0
    %2927 = vmatprep.subr.bf16.mxu0 0
    %2928 = vmatpush1.bf16.msra.mxu0 0
    %2929 = vmatprep.subr.bf16.mxu0 0
    %2930 = vmatpush1.bf16.msra.mxu0 0
    %2931 = vmatprep.subr.bf16.mxu0 0
    %2932 = vmatpush1.bf16.msra.mxu0 0
    %2933 = vmatprep.mubr.bf16.mxu0 0
    %2934 = vmatmul.mubr.bf16.gmra.mrb[0].mxu0 %v2859
    %v2935 = vpop.f32.mrb[0].mxu0
    %v2936 = vadd.f32 0.0, %v2935
    %v2937 = vpop.f32.mrb[0].mxu0
    %v2938 = vadd.f32 0.0, %v2937
    %v2939 = vpop.f32.mrb[0].mxu0
    %v2940 = vpop.f32.mrb[0].mxu0
    %2941 = vdwg.mxu0
    %v2946 = vrot.slane %v2698, 2
    %v2947 = vrot.slane %v2700, 2
    %v2948 = vrot.slane %v2739, 2
    %v2949 = vrot.slane %v2741, 2
    %v2954 = vadd.f32 %v317, %v2946
    %v2955 = vadd.f32 %v319, %v2947
    %v2956 = vadd.f32 %v360, %v2948
    %v2957 = vadd.f32 %v362, %v2949
    %v2958 = vxor.u32 %v2954, 2147483648
    %v2959 = vmul.f32 %v2958, 1.442695
    %v2960 = vpow.pop %v2959
    %v2961 = vadd.f32 %v2960, 1.0
    %v2962 = vrcp.pop %v2961
    %v2963 = vmul.f32 1.0, %v2962
    %v2964 = vxor.u32 %v2955, 2147483648
    %v2965 = vmul.f32 %v2964, 1.442695
    %v2966 = vpow.pop %v2965
    %v2967 = vadd.f32 %v2966, 1.0
    %v2968 = vrcp.pop %v2967
    %v2969 = vmul.f32 1.0, %v2968
    %v2970 = vtanh.pop %v2956
    %v2971 = vxor.u32 %v2957, 2147483648
    %v2972 = vmul.f32 %v2971, 1.442695
    %v2973 = vpow.pop %v2972
    %v2974 = vadd.f32 %v2973, 1.0
    %v2975 = vrcp.pop %v2974
    %v2976 = vmul.f32 1.0, %v2975
    %v2978 = vrot.slane %v2656, 6
    %v2980 = vmul.f32 %v2969, %v2978
    %v2981 = vmul.f32 %v2963, %v2970
    %v2982 = vadd.f32 %v2980, %v2981
    %v2983 = vtanh.pop %v2982
    %v2984 = vmul.f32 %v2976, %v2983
    %v2985 = vpack.c.bf16 %v2984, %v2984
    %v2987 = vrot.slane %v2985, 3
    %2989 = vmatprep.subr.bf16.mxu0 %v663
    %2990 = vmatpush1.bf16.msra.mxu0 %v662
    %2991 = vmatprep.subr.bf16.mxu0 %v671
    %2992 = vmatpush1.bf16.msra.mxu0 %v670
    %2993 = vmatprep.subr.bf16.mxu0 %v679
    %2994 = vmatpush1.bf16.msra.mxu0 %v678
    %2995 = vmatprep.subr.bf16.mxu0 %v687
    %2996 = vmatpush1.bf16.msra.mxu0 %v686
    %2997 = vmatprep.subr.bf16.mxu0 %v695
    %2998 = vmatpush1.bf16.msra.mxu0 %v694
    %2999 = vmatprep.subr.bf16.mxu0 %v703
    %3000 = vmatpush1.bf16.msra.mxu0 %v702
    %3001 = vmatprep.subr.bf16.mxu0 %v711
    %3002 = vmatpush1.bf16.msra.mxu0 %v710
    %3003 = vmatprep.subr.bf16.mxu0 %v719
    %3004 = vmatpush1.bf16.msra.mxu0 %v718
    %3005 = vmatprep.subr.bf16.mxu0 0
    %3006 = vmatpush1.bf16.msra.mxu0 0
    %3007 = vmatprep.subr.bf16.mxu0 0
    %3008 = vmatpush1.bf16.msra.mxu0 0
    %3009 = vmatprep.subr.bf16.mxu0 0
    %3010 = vmatpush1.bf16.msra.mxu0 0
    %3011 = vmatprep.subr.bf16.mxu0 0
    %3012 = vmatpush1.bf16.msra.mxu0 0
    %3013 = vmatprep.subr.bf16.mxu0 0
    %3014 = vmatpush1.bf16.msra.mxu0 0
    %3015 = vmatprep.subr.bf16.mxu0 0
    %3016 = vmatpush1.bf16.msra.mxu0 0
    %3017 = vmatprep.subr.bf16.mxu0 0
    %3018 = vmatpush1.bf16.msra.mxu0 0
    %3019 = vmatprep.subr.bf16.mxu0 0
    %3020 = vmatpush1.bf16.msra.mxu0 0
    %3021 = vmatprep.mubr.bf16.mxu0 0
    %3022 = vmatmul.mubr.bf16.gmra.mrb[0].mxu0 %v2987
    %v3023 = vpop.f32.mrb[0].mxu0
    %v3024 = vadd.f32 %v2895, %v3023
    %v3025 = vpop.f32.mrb[0].mxu0
    %v3026 = vadd.f32 %v2897, %v3025
    %v3027 = vpop.f32.mrb[0].mxu0
    %v3028 = vpop.f32.mrb[0].mxu0
    %3029 = vdwg.mxu0
    %3030 = vmatprep.subr.bf16.mxu0 %v665
    %3031 = vmatpush1.bf16.msra.mxu0 %v664
    %3032 = vmatprep.subr.bf16.mxu0 %v673
    %3033 = vmatpush1.bf16.msra.mxu0 %v672
    %3034 = vmatprep.subr.bf16.mxu0 %v681
    %3035 = vmatpush1.bf16.msra.mxu0 %v680
    %3036 = vmatprep.subr.bf16.mxu0 %v689
    %3037 = vmatpush1.bf16.msra.mxu0 %v688
    %3038 = vmatprep.subr.bf16.mxu0 %v697
    %3039 = vmatpush1.bf16.msra.mxu0 %v696
    %3040 = vmatprep.subr.bf16.mxu0 %v705
    %3041 = vmatpush1.bf16.msra.mxu0 %v704
    %3042 = vmatprep.subr.bf16.mxu0 %v713
    %3043 = vmatpush1.bf16.msra.mxu0 %v712
    %3044 = vmatprep.subr.bf16.mxu0 %v721
    %3045 = vmatpush1.bf16.msra.mxu0 %v720
    %3046 = vmatprep.subr.bf16.mxu0 0
    %3047 = vmatpush1.bf16.msra.mxu0 0
    %3048 = vmatprep.subr.bf16.mxu0 0
    %3049 = vmatpush1.bf16.msra.mxu0 0
    %3050 = vmatprep.subr.bf16.mxu0 0
    %3051 = vmatpush1.bf16.msra.mxu0 0
    %3052 = vmatprep.subr.bf16.mxu0 0
    %3053 = vmatpush1.bf16.msra.mxu0 0
    %3054 = vmatprep.subr.bf16.mxu0 0
    %3055 = vmatpush1.bf16.msra.mxu0 0
    %3056 = vmatprep.subr.bf16.mxu0 0
    %3057 = vmatpush1.bf16.msra.mxu0 0
    %3058 = vmatprep.subr.bf16.mxu0 0
    %3059 = vmatpush1.bf16.msra.mxu0 0
    %3060 = vmatprep.subr.bf16.mxu0 0
    %3061 = vmatpush1.bf16.msra.mxu0 0
    %3062 = vmatprep.mubr.bf16.mxu0 0
    %3063 = vmatmul.mubr.bf16.gmra.mrb[0].mxu0 %v2987
    %v3064 = vpop.f32.mrb[0].mxu0
    %v3065 = vadd.f32 %v2936, %v3064
    %v3066 = vpop.f32.mrb[0].mxu0
    %v3067 = vadd.f32 %v2938, %v3066
    %v3068 = vpop.f32.mrb[0].mxu0
    %v3069 = vpop.f32.mrb[0].mxu0
    %3070 = vdwg.mxu0
    %v3071 = vadd.f32 %v3024, %v369
    %v3072 = vadd.f32 %v3026, %v373
    %v3073 = vadd.f32 %v3065, %v377
    %v3074 = vadd.f32 %v3067, %v381
    %v3075 = vxor.u32 %v3071, 2147483648
    %v3076 = vmul.f32 %v3075, 1.442695
    %v3077 = vpow.pop %v3076
    %v3078 = vadd.f32 %v3077, 1.0
    %v3079 = vrcp.pop %v3078
    %v3080 = vmul.f32 1.0, %v3079
    %v3081 = vxor.u32 %v3072, 2147483648
    %v3082 = vmul.f32 %v3081, 1.442695
    %v3083 = vpow.pop %v3082
    %v3084 = vadd.f32 %v3083, 1.0
    %v3085 = vrcp.pop %v3084
    %v3086 = vmul.f32 1.0, %v3085
    %v3087 = vtanh.pop %v3073
    %v3088 = vxor.u32 %v3074, 2147483648
    %v3089 = vmul.f32 %v3088, 1.442695
    %v3090 = vpow.pop %v3089
    %v3091 = vadd.f32 %v3090, 1.0
    %v3092 = vrcp.pop %v3091
    %v3093 = vmul.f32 1.0, %v3092
    %v3094 = vmul.f32 %v3086, %v2856
    %v3095 = vmul.f32 %v3080, %v3087
    %v3096 = vadd.f32 %v3094, %v3095
    %v3097 = vtanh.pop %v3096
    %v3098 = vmul.f32 %v3093, %v3097
    %v3099 = vmax.f32 %v3098, 0.0
    %v3100 = vpack.c.bf16 %v3099, %v3099
    %v3101 = vld [vmem:[#allocation8] sm:$0xf]
    %v3102 = vld [vmem:[#allocation8 + $0x4] sm:$0xf]
    %v3103 = vld [vmem:[#allocation8 + $0x8] sm:$0xf]
    %v3104 = vld [vmem:[#allocation8 + $0xc] sm:$0xf]
    %v3105 = vld [vmem:[#allocation8 + $0x10] sm:$0xf]
    %v3106 = vld [vmem:[#allocation8 + $0x14] sm:$0xf]
    %v3107 = vld [vmem:[#allocation8 + $0x18] sm:$0xf]
    %v3108 = vld [vmem:[#allocation8 + $0x1c] sm:$0xf]
    %v3109 = vld [vmem:[#allocation8 + $0x20] sm:$0xf]
    %v3110 = vld [vmem:[#allocation8 + $0x24] sm:$0xf]
    %v3111 = vld [vmem:[#allocation8 + $0x28] sm:$0xf]
    %v3112 = vld [vmem:[#allocation8 + $0x2c] sm:$0xf]
    %v3113 = vld [vmem:[#allocation8 + $0x30] sm:$0xf]
    %v3114 = vld [vmem:[#allocation8 + $0x34] sm:$0xf]
    %v3115 = vld [vmem:[#allocation8 + $0x38] sm:$0xf]
    %v3116 = vld [vmem:[#allocation8 + $0x3c] sm:$0xf]
    %v3117 = vld [vmem:[%s11] sm:$0x1]
    %v3119 = vlaneseq
    %v3120 = vshrl.u32 %v3119, 7
    %v3121 = vsub.s32 0, %v3120
    %v3122 = vrot.slane %v3117, %v3121
    %v3140 = vunpack.c.l.b16 %v3101
    %v3141 = vunpack.c.l.b16 %v3102
    %v3142 = vunpack.c.l.b16 %v3103
    %v3143 = vunpack.c.l.b16 %v3104
    %v3144 = vunpack.c.l.b16 %v3105
    %v3145 = vunpack.c.l.b16 %v3106
    %v3146 = vunpack.c.l.b16 %v3107
    %v3147 = vunpack.c.l.b16 %v3108
    %v3148 = vunpack.c.l.b16 %v3109
    %v3149 = vunpack.c.l.b16 %v3110
    %v3150 = vunpack.c.l.b16 %v3111
    %v3151 = vunpack.c.l.b16 %v3112
    %v3152 = vunpack.c.l.b16 %v3113
    %v3153 = vunpack.c.l.b16 %v3114
    %v3154 = vunpack.c.l.b16 %v3115
    %v3155 = vunpack.c.l.b16 %v3116
    %v3156 = vpack.c.b16 %v3141, %v3140
    %v3157 = vpack.c.b16 %v3143, %v3142
    %v3158 = vpack.c.b16 %v3145, %v3144
    %v3159 = vpack.c.b16 %v3147, %v3146
    %v3160 = vpack.c.b16 %v3149, %v3148
    %v3161 = vpack.c.b16 %v3151, %v3150
    %v3162 = vpack.c.b16 %v3153, %v3152
    %v3163 = vpack.c.b16 %v3155, %v3154
    %3172 = vmatprep.subr.bf16.mxu0 0
    %3173 = vmatpush1.bf16.msra.mxu0 %v3156
    %3174 = vmatprep.subr.bf16.mxu0 0
    %3175 = vmatpush1.bf16.msra.mxu0 %v3157
    %3176 = vmatprep.subr.bf16.mxu0 0
    %3177 = vmatpush1.bf16.msra.mxu0 %v3158
    %3178 = vmatprep.subr.bf16.mxu0 0
    %3179 = vmatpush1.bf16.msra.mxu0 %v3159
    %3180 = vmatprep.subr.bf16.mxu0 0
    %3181 = vmatpush1.bf16.msra.mxu0 %v3160
    %3182 = vmatprep.subr.bf16.mxu0 0
    %3183 = vmatpush1.bf16.msra.mxu0 %v3161
    %3184 = vmatprep.subr.bf16.mxu0 0
    %3185 = vmatpush1.bf16.msra.mxu0 %v3162
    %3186 = vmatprep.subr.bf16.mxu0 0
    %3187 = vmatpush1.bf16.msra.mxu0 %v3163
    %3188 = vmatprep.subr.bf16.mxu0 0
    %3189 = vmatpush1.bf16.msra.mxu0 0
    %3190 = vmatprep.subr.bf16.mxu0 0
    %3191 = vmatpush1.bf16.msra.mxu0 0
    %3192 = vmatprep.subr.bf16.mxu0 0
    %3193 = vmatpush1.bf16.msra.mxu0 0
    %3194 = vmatprep.subr.bf16.mxu0 0
    %3195 = vmatpush1.bf16.msra.mxu0 0
    %3196 = vmatprep.subr.bf16.mxu0 0
    %3197 = vmatpush1.bf16.msra.mxu0 0
    %3198 = vmatprep.subr.bf16.mxu0 0
    %3199 = vmatpush1.bf16.msra.mxu0 0
    %3200 = vmatprep.subr.bf16.mxu0 0
    %3201 = vmatpush1.bf16.msra.mxu0 0
    %3202 = vmatprep.subr.bf16.mxu0 0
    %3203 = vmatpush1.bf16.msra.mxu0 0
    %3204 = vmatprep.mubr.bf16.mxu0 0
    %3205 = vmatmul.mubr.bf16.gmra.mrb[0].mxu0 %v3100
    %v3206 = vpop.f32.mrb[0].mxu0
    %v3207 = vadd.f32 %v3122, %v3206
    %v3208 = vpop.f32.mrb[0].mxu0
    %v3209 = vpop.f32.mrb[0].mxu0
    %v3210 = vpop.f32.mrb[0].mxu0
    %3211 = vdwg.mxu0
    %3212 = vst [vmem:[#allocation10] sm:$0x3] %v3207
    %3213 = vst [vmem:[#allocation11 - $0x6] sm:$0xc0] %v2984
    %s3214 = scalar_lea.vmem [#allocation11], 2
    %3215 = vst [vmem:[%s3214] sm:$0x3] %v3098
    %3216 = vst [vmem:[#allocation13 - $0x6] sm:$0xc0] %v2982
    %s3217 = scalar_lea.vmem [#allocation13], 2
    %3218 = vst [vmem:[%s3217] sm:$0x3] %v3096
    // Predicated region
    $region50: #{tpu_custom_call.1} parent=1 // pred_check
      _
    $region51: #{tpu_custom_call.1} parent=1 // pred_check_branch
      %3220 = sbr.rel (0) target = $region53
    $region52: #{tpu_custom_call.1} parent=1 // pred_region
      %s3222 = ssub.s32 32, 32
      %3223 = vsyncadd [#allocation7], %s3222
      %s3225 = sshll.u32 [#allocation10], 4
      %s3226 = int_to_ptr.vmem [resolvable:$true] %s3225
      %3228 = dma.vmem_to_hbm [thread:$0]  %s3226, 32, %s12, [#allocation7]
    $region53: #{tpu_custom_call.1} parent=1 // pred_fallthru
      _
    // Predicated region
    $region54: #{tpu_custom_call.1} parent=1 // pred_check
      _
    $region55: #{tpu_custom_call.1} parent=1 // pred_check_branch
      %3230 = sbr.rel (0) target = $region57
    $region56: #{tpu_custom_call.1} parent=1 // pred_region
      %s3232 = ssub.s32 64, 64
      %3233 = vsyncadd [#allocation12], %s3232
      %s3234 = sshll.u32 [#allocation11], 4
      %s3235 = int_to_ptr.vmem [resolvable:$true] %s3234
      %3240 = dma.vmem_to_hbm [thread:$0]  %s3235, 64, %s13, [#allocation12], 32, 32, 2
    $region57: #{tpu_custom_call.1} parent=1 // pred_fallthru
      _
    // Predicated region
    $region58: #{tpu_custom_call.1} parent=1 // pred_check
      _
    $region59: #{tpu_custom_call.1} parent=1 // pred_check_branch
      %3242 = sbr.rel (0) target = $region61
    $region60: #{tpu_custom_call.1} parent=1 // pred_region
      %s3244 = ssub.s32 64, 64
      %3245 = vsyncadd [#allocation12], %s3244
      %s3246 = sshll.u32 [#allocation13], 4
      %s3247 = int_to_ptr.vmem [resolvable:$true] %s3246
      %3252 = dma.vmem_to_hbm [thread:$0]  %s3247, 64, %s14, [#allocation12], 32, 32, 2
    $region61: #{tpu_custom_call.1} parent=1 // pred_fallthru
      _
    // Predicated region
    $region62: #{tpu_custom_call.1} parent=1 // pred_check
      _
    $region63: #{tpu_custom_call.1} parent=1 // pred_check_branch
      %3254 = sbr.rel (0) target = $region65
    $region64: #{tpu_custom_call.1} parent=1 // pred_region
      %3255 = dma.done [#allocation7], 32
    $region65: #{tpu_custom_call.1} parent=1 // pred_fallthru
      _
    // Predicated region
    $region66: #{tpu_custom_call.1} parent=1 // pred_check
      _
    $region67: #{tpu_custom_call.1} parent=1 // pred_check_branch
      %3257 = sbr.rel (0) target = $region69
    $region68: #{tpu_custom_call.1} parent=1 // pred_region
      %3258 = dma.done [#allocation12], 64
    $region69: #{tpu_custom_call.1} parent=1 // pred_fallthru
      _
    // Predicated region
    $region70: #{tpu_custom_call.1} parent=1 // pred_check
      _
    $region71: #{tpu_custom_call.1} parent=1 // pred_check_branch
      %3260 = sbr.rel (0) target = $region73
    $region72: #{tpu_custom_call.1} parent=1 // pred_region
      %3261 = dma.done [#allocation12], 64
    $region73: #{tpu_custom_call.1} parent=1 // pred_fallthru
      _
    %3262 = vsyncpa [#allocation6], 1
    %3263 = vsyncpa [#allocation9], 1
    %3264 = vsyncpa [#allocation7], 1
    %3265 = vsyncpa [#allocation12], 1
  %3266 = vsyncmov [#allocation4]
  %s3267 = vpop.sfrf %3266
  %p3268 = scmp.eq.s32.totalorder %s3267, 0
  %p3269 = pneg %p3268
  %3271 = shalt.err (%p3269)
  %s3272 = scalar_lea.sflag [#allocation4], 1
  %3273 = vsyncmov %s3272
  %s3274 = vpop.sfrf %3273
  %p3275 = scmp.eq.s32.totalorder %s3274, 0
  %p3276 = pneg %p3275
  %3278 = shalt.err (%p3276)

</llo_original>
